<compile_context>
chip_gen: v7x
topology: tpu7x:2x2x1
jax: 0.10.0
libtpu: 0.0.40
codegen_flags: <defaults>
</compile_context>

<pallas_src>
from functools import partial

import jax
import jax.numpy as jnp
from jax.experimental import pallas as pl
from jax.experimental.pallas import tpu as pltpu


# ----------------------------- Pallas kernel --------------------------------

def _fused_attention_kernel(x_ref, wqkv_ref, bqkv_ref, wproj_ref, bproj_ref,
                            o_ref, *, num_heads, matmul_dtype):
    """One grid step = `Bt` batch elements: qkv-linear -> MHA -> proj-linear."""
    Bt, N, C = x_ref.shape
    hd = C // num_heads

    # Flatten the batch tile so the projection matmuls see Bt*N rows.  Leading-dim
    # reshape is a free retiling (N % 8 == 0 guaranteed by _pick_batch_tile).
    x = x_ref[...].reshape(Bt * N, C).astype(matmul_dtype)

    # qkv projection against the VMEM-resident [C, 3C] weight.  The softmax scale
    # is pre-folded into the q columns of w_qkv / b_qkv at init.
    qkv = jnp.dot(x, wqkv_ref[...], preferred_element_type=jnp.float32)
    qkv = qkv + bqkv_ref[...]                                     # [Bt*N, 3C] f32

    # Regroup channels into head-batched operands [G, N, hd], G = heads*Bt.
    # Static lane slices + leading-axis stack; the reshape only splits/merges
    # non-minor dims so it is a pure retiling.
    def split_heads(block):
        base = block * C
        hs = [qkv[:, base + h * hd: base + (h + 1) * hd] for h in range(num_heads)]
        return (jnp.stack(hs, axis=0)                      # [heads, Bt*N, hd]
                .reshape(num_heads * Bt, N, hd)            # [G, N, hd]
                .astype(matmul_dtype))

    q = split_heads(0)
    k = split_heads(1)
    v = split_heads(2)

    # All heads / batch elements in ONE batched contraction and ONE softmax.
    s = jnp.einsum('gnd,gmd->gnm', q, k,
                   preferred_element_type=jnp.float32)            # [G, N, N]
    s = s - jnp.max(s, axis=-1, keepdims=True)
    p = jnp.exp(s)
    p = p * (1.0 / jnp.sum(p, axis=-1, keepdims=True))            # exact reciprocal
    o = jnp.einsum('gnm,gmd->gnd', p.astype(matmul_dtype), v,
                   preferred_element_type=jnp.float32)            # [G, N, hd]

    # Back to [Bt*N, C] with head-major channels (matches w_proj row order).
    o = o.reshape(num_heads, Bt * N, hd)
    attn_out = jnp.concatenate([o[h] for h in range(num_heads)], axis=-1)

    # Output projection.  NOTE: for C < 128 stages this store is a masked vst
    # (accepted per review); it is lane-dense at PVT stages 2-4 (C=128/320/512).
    y = jnp.dot(attn_out.astype(matmul_dtype), wproj_ref[...],
                preferred_element_type=jnp.float32)
    y = y + bproj_ref[...]
    o_ref[...] = y.reshape(Bt, N, C).astype(o_ref.dtype)


# ------------------------------ Wrapper --------------------------------------

def _pick_batch_tile(B, N, target_rows=256):
    """Batch elements per grid step: Bt*N ~ 256 MXU rows (use target_rows=128 on
    v5e), while keeping >= 2 grid steps so both v7x TCs / v6e megacore work."""
    if N % 8 != 0:
        return 1              # keep in-kernel leading-dim reshapes tile-aligned
    divisors = [d for d in range(1, B + 1) if B % d == 0]
    fits = [d for d in divisors if d * N <= target_rows] or [1]
    two_steps = [d for d in fits if B // d >= 2]
    return max(two_steps or fits)


def fused_attention(x, w_qkv, b_qkv, w_proj, b_proj, *, num_heads,
                    matmul_dtype=jnp.bfloat16, batch_tile=None):
    """x: [B, N, C] -> [B, N, C].  Single fused pallas_call, grid over batch tiles."""
    B, N, C = x.shape
    Bt = batch_tile or _pick_batch_tile(B, N)
    assert B % Bt == 0 and C % num_heads == 0

    # bf16 MXU operands (single pass on v6e/v7x) with f32 accumulation in-kernel.
    # In a real model the weight cast (like the scale fold) is a one-time
    # constant transform, not per-call work.
    wq = w_qkv.astype(matmul_dtype)
    wp = w_proj.astype(matmul_dtype)
    bq = b_qkv.reshape(1, 3 * C).astype(jnp.float32)
    bp = b_proj.reshape(1, C).astype(jnp.float32)

    kernel = partial(_fused_attention_kernel, num_heads=num_heads,
                     matmul_dtype=matmul_dtype)
    return pl.pallas_call(
        kernel,
        out_shape=jax.ShapeDtypeStruct((B, N, C), x.dtype),
        grid=(B // Bt,),
        in_specs=[
            pl.BlockSpec((Bt, N, C), lambda b: (b, 0, 0)),     # x (per batch tile)
            # Weights/biases: constant index_map -> fetched once, VMEM-resident
            # across grid steps.  (pipeline_mode=pl.Buffered(1) could halve their
            # VMEM footprint on v7x; left at the default for portability.)
            pl.BlockSpec((C, 3 * C), lambda b: (0, 0)),        # w_qkv
            pl.BlockSpec((1, 3 * C), lambda b: (0, 0)),        # b_qkv
            pl.BlockSpec((C, C), lambda b: (0, 0)),            # w_proj
            pl.BlockSpec((1, C), lambda b: (0, 0)),            # b_proj
        ],
        out_specs=pl.BlockSpec((Bt, N, C), lambda b: (b, 0, 0)),
        compiler_params=pltpu.CompilerParams(
            dimension_semantics=("parallel",)),
    )(x, wq, bq, wp, bp)


class AttentionPallas:
    """JAX/Pallas port of pvt_v2.Attention (forward path, sr_ratio=1, linear=False)."""

    def __init__(self, dim, num_heads=8, qkv_bias=False, qk_scale=None, key=None):
        assert dim % num_heads == 0
        self.dim = dim
        self.num_heads = num_heads
        head_dim = dim // num_heads
        self.scale = qk_scale or head_dim ** (-0.5)

        key = jax.random.PRNGKey(0) if key is None else key
        k1, k2, k3, k4 = jax.random.split(key, 4)
        std = 0.02  # PVT uses trunc_normal_(std=.02) for its Linear layers.
        w_qkv = (std * jax.random.normal(k1, (dim, 3 * dim))).astype(jnp.float32)
        b_qkv = ((std * jax.random.normal(k2, (3 * dim,))) if qkv_bias
                 else jnp.zeros((3 * dim,))).astype(jnp.float32)
        w_proj = (std * jax.random.normal(k3, (dim, dim))).astype(jnp.float32)
        b_proj = (std * jax.random.normal(k4, (dim,))).astype(jnp.float32)

        # Fold the 1/sqrt(head_dim) softmax scale into the q columns of the qkv
        # projection (one-time constant transform -> zero per-step VPU cost).
        qscale = jnp.concatenate([jnp.full((dim,), self.scale),
                                  jnp.ones((2 * dim,))]).astype(jnp.float32)
        self.w_qkv = w_qkv * qscale[None, :]
        self.b_qkv = b_qkv * qscale
        self.w_proj = w_proj
        self.b_proj = b_proj
        # Unfolded copies kept only for the pure-JAX reference.
        self._w_qkv_raw, self._b_qkv_raw = w_qkv, b_qkv

    def __call__(self, x, H, W, matmul_dtype=jnp.bfloat16):
        # H, W unused on this forward path; dropouts are identity (p=0.0).
        return fused_attention(x, self.w_qkv, self.b_qkv, self.w_proj, self.b_proj,
                               num_heads=self.num_heads, matmul_dtype=matmul_dtype)


# ------------------------------ Reference ------------------------------------

def reference_attention(mod, x):
    """Pure-JAX f32 re-implementation of the PyTorch forward (unfolded weights)."""
    B, N, C = x.shape
    nh = mod.num_heads
    hd = C // nh
    qkv = x @ mod._w_qkv_raw + mod._b_qkv_raw
    qkv = qkv.reshape(B, N, 3, nh, hd).transpose(2, 0, 3, 1, 4)
    q, k, v = qkv[0], qkv[1], qkv[2]
    attn = jnp.einsum("bhnd,bhmd->bhnm", q, k) * mod.scale
    attn = jax.nn.softmax(attn, axis=-1)
    out = jnp.einsum("bhnm,bhmd->bhnd", attn, v)
    out = out.transpose(0, 2, 1, 3).reshape(B, N, C)
    return out @ mod.w_proj + mod.b_proj


# -------------------------------- Main ----------------------------------------

if __name__ == "__main__":
    B, C = 4, 64
    Hsp, Wsp = 8, 16            # N = 128 tokens -> full-lane softmax reductions
    num_heads = 2               # head_dim = 32
    N = Hsp * Wsp

    key = jax.random.PRNGKey(0)
    kx, kp = jax.random.split(key)
    x = jax.random.normal(kx, (B, N, C), dtype=jnp.float32)

    mod = AttentionPallas(dim=C, num_heads=num_heads, qkv_bias=True, key=kp)
    y_ref = reference_attention(mod, x)

    # 1) f32-operand path: tight check of the fused kernel's logic.
    y32 = jax.block_until_ready(mod(x, Hsp, Wsp, matmul_dtype=jnp.float32))
    assert y32.shape == (B, N, C)
    err32 = float(jnp.max(jnp.abs(y32 - y_ref)))
    assert jnp.allclose(y32, y_ref, atol=2e-4, rtol=1e-3), f"f32 path max abs diff {err32}"

    # 2) default bf16-operand path (single-pass MXU on v6e/v7x): bf16-sized tolerance,
    #    accumulation is still f32 inside the kernel.
    ybf = jax.block_until_ready(mod(x, Hsp, Wsp))
    assert ybf.shape == (B, N, C)
    errbf = float(jnp.max(jnp.abs(ybf - y_ref)))
    assert jnp.allclose(ybf, y_ref, atol=5e-4, rtol=5e-2), f"bf16 path max abs diff {errbf}"

    print("KERNEL_OK")
</pallas_src>

<mosaic_0001>
module attributes {stable_mosaic.version = 11 : i64} {
  func.func @_fused_attention_kernel(%arg0: i32, %arg1: memref<2x128x64xf32, #tpu.memory_space<vmem>>, %arg2: memref<64x192xf32, #tpu.memory_space<vmem>>, %arg3: memref<1x192xf32, #tpu.memory_space<vmem>>, %arg4: memref<64x64xf32, #tpu.memory_space<vmem>>, %arg5: memref<1x64xf32, #tpu.memory_space<vmem>>, %arg6: memref<2x128x64xf32, #tpu.memory_space<vmem>>) attributes {dimension_semantics = [#tpu.dimension_semantics<parallel>], iteration_bounds = array<i64: 2>, scalar_prefetch = 0 : i64, scratch_operands = 0 : i64, tpu.core_type = #tpu.core_type<tc>, window_params = [{transform_indices = @transform_0, window_bounds = array<i64: 2, 128, 64>}, {pipeline_mode = #tpu.pipeline_mode<synchronous>, transform_indices = @transform_1, window_bounds = array<i64: 64, 192>}, {pipeline_mode = #tpu.pipeline_mode<synchronous>, transform_indices = @transform_2, window_bounds = array<i64: 1, 192>}, {pipeline_mode = #tpu.pipeline_mode<synchronous>, transform_indices = @transform_3, window_bounds = array<i64: 64, 64>}, {pipeline_mode = #tpu.pipeline_mode<synchronous>, transform_indices = @transform_4, window_bounds = array<i64: 1, 64>}, {transform_indices = @transform_5, window_bounds = array<i64: 2, 128, 64>}]} {
    %c0 = arith.constant 0 : index
    %c0_0 = arith.constant 0 : index
    %c0_1 = arith.constant 0 : index
    %0 = vector.load %arg1[%c0, %c0_0, %c0_1] : memref<2x128x64xf32, #tpu.memory_space<vmem>>, vector<2x128x64xf32>
    %1 = vector.shape_cast %0 : vector<2x128x64xf32> to vector<256x64xf32>
    %c0_2 = arith.constant 0 : index
    %c0_3 = arith.constant 0 : index
    %2 = vector.load %arg2[%c0_2, %c0_3] : memref<64x192xf32, #tpu.memory_space<vmem>>, vector<64x192xf32>
    %cst = arith.constant dense<0.000000e+00> : vector<256x192xf32>
    %3 = tpu.matmul %1, %2, %cst {dimension_numbers = #tpu.dot_dimension_numbers<[1], [0], [0], [1], [0, 0, 1, 1], [], []>} : vector<256x64xf32>, vector<64x192xf32>, vector<256x192xf32> -> vector<256x192xf32>
    %c0_4 = arith.constant 0 : index
    %c0_5 = arith.constant 0 : index
    %4 = vector.load %arg3[%c0_4, %c0_5] : memref<1x192xf32, #tpu.memory_space<vmem>>, vector<1x192xf32>
    %5 = vector.broadcast %4 : vector<1x192xf32> to vector<256x192xf32>
    %6 = arith.addf %3, %5 : vector<256x192xf32>
    %7 = vector.extract_strided_slice %6 {offsets = [0, 0], sizes = [256, 32], strides = [1, 1]} : vector<256x192xf32> to vector<256x32xf32>
    %8 = vector.extract_strided_slice %6 {offsets = [0, 32], sizes = [256, 32], strides = [1, 1]} : vector<256x192xf32> to vector<256x32xf32>
    %9 = vector.shape_cast %7 : vector<256x32xf32> to vector<1x256x32xf32>
    %10 = vector.shape_cast %8 : vector<256x32xf32> to vector<1x256x32xf32>
    %11 = tpu.concatenate %9, %10 in 0 : vector<1x256x32xf32>, vector<1x256x32xf32> -> vector<2x256x32xf32>
    %12 = vector.shape_cast %11 : vector<2x256x32xf32> to vector<4x128x32xf32>
    %13 = vector.extract_strided_slice %6 {offsets = [0, 64], sizes = [256, 32], strides = [1, 1]} : vector<256x192xf32> to vector<256x32xf32>
    %14 = vector.extract_strided_slice %6 {offsets = [0, 96], sizes = [256, 32], strides = [1, 1]} : vector<256x192xf32> to vector<256x32xf32>
    %15 = vector.shape_cast %13 : vector<256x32xf32> to vector<1x256x32xf32>
    %16 = vector.shape_cast %14 : vector<256x32xf32> to vector<1x256x32xf32>
    %17 = tpu.concatenate %15, %16 in 0 : vector<1x256x32xf32>, vector<1x256x32xf32> -> vector<2x256x32xf32>
    %18 = vector.shape_cast %17 : vector<2x256x32xf32> to vector<4x128x32xf32>
    %19 = vector.extract_strided_slice %6 {offsets = [0, 128], sizes = [256, 32], strides = [1, 1]} : vector<256x192xf32> to vector<256x32xf32>
    %20 = vector.extract_strided_slice %6 {offsets = [0, 160], sizes = [256, 32], strides = [1, 1]} : vector<256x192xf32> to vector<256x32xf32>
    %21 = vector.shape_cast %19 : vector<256x32xf32> to vector<1x256x32xf32>
    %22 = vector.shape_cast %20 : vector<256x32xf32> to vector<1x256x32xf32>
    %23 = tpu.concatenate %21, %22 in 0 : vector<1x256x32xf32>, vector<1x256x32xf32> -> vector<2x256x32xf32>
    %24 = vector.shape_cast %23 : vector<2x256x32xf32> to vector<4x128x32xf32>
    "tpu.trace_start"() <{level = 10 : i32, message = "gnd,gmd->gnm"}> : () -> ()
    %cst_6 = arith.constant dense<0.000000e+00> : vector<4x128x128xf32>
    %25 = tpu.matmul %12, %18, %cst_6 {dimension_numbers = #tpu.dot_dimension_numbers<[2], [2], [1], [1], [0, 0, 0, 1, 1, 1], [0], [0]>} : vector<4x128x32xf32>, vector<4x128x32xf32>, vector<4x128x128xf32> -> vector<4x128x128xf32>
    "tpu.trace_stop"() : () -> ()
    %cst_7 = arith.constant dense<0xFF800000> : vector<4x128xf32>
    %26 = vector.multi_reduction <maximumf>, %25, %cst_7 [2] : vector<4x128x128xf32> to vector<4x128xf32>
    %27 = vector.shape_cast %26 : vector<4x128xf32> to vector<4x128x1xf32>
    %28 = vector.broadcast %27 : vector<4x128x1xf32> to vector<4x128x128xf32>
    %29 = arith.subf %25, %28 : vector<4x128x128xf32>
    %30 = math.exp %29 : vector<4x128x128xf32>
    %cst_8 = arith.constant dense<0.000000e+00> : vector<4x128xf32>
    %31 = vector.multi_reduction <add>, %30, %cst_8 [2] : vector<4x128x128xf32> to vector<4x128xf32>
    %32 = vector.shape_cast %31 : vector<4x128xf32> to vector<4x128x1xf32>
    %cst_9 = arith.constant 1.000000e+00 : f32
    %33 = vector.broadcast %cst_9 : f32 to vector<4x128x1xf32>
    %34 = arith.divf %33, %32 : vector<4x128x1xf32>
    %35 = vector.broadcast %34 : vector<4x128x1xf32> to vector<4x128x128xf32>
    %36 = arith.mulf %30, %35 : vector<4x128x128xf32>
    "tpu.trace_start"() <{level = 10 : i32, message = "gnm,gmd->gnd"}> : () -> ()
    %cst_10 = arith.constant dense<0.000000e+00> : vector<4x128x32xf32>
    %37 = tpu.matmul %36, %24, %cst_10 {dimension_numbers = #tpu.dot_dimension_numbers<[2], [1], [1], [2], [0, 0, 0, 1, 1, 2], [0], [0]>} : vector<4x128x128xf32>, vector<4x128x32xf32>, vector<4x128x32xf32> -> vector<4x128x32xf32>
    "tpu.trace_stop"() : () -> ()
    %38 = vector.shape_cast %37 : vector<4x128x32xf32> to vector<2x256x32xf32>
    %39 = vector.extract_strided_slice %38 {offsets = [0, 0, 0], sizes = [1, 256, 32], strides = [1, 1, 1]} : vector<2x256x32xf32> to vector<1x256x32xf32>
    %40 = vector.shape_cast %39 : vector<1x256x32xf32> to vector<256x32xf32>
    %41 = vector.extract_strided_slice %38 {offsets = [1, 0, 0], sizes = [1, 256, 32], strides = [1, 1, 1]} : vector<2x256x32xf32> to vector<1x256x32xf32>
    %42 = vector.shape_cast %41 : vector<1x256x32xf32> to vector<256x32xf32>
    %43 = tpu.concatenate %40, %42 in 1 : vector<256x32xf32>, vector<256x32xf32> -> vector<256x64xf32>
    %c0_11 = arith.constant 0 : index
    %c0_12 = arith.constant 0 : index
    %44 = vector.load %arg4[%c0_11, %c0_12] : memref<64x64xf32, #tpu.memory_space<vmem>>, vector<64x64xf32>
    %cst_13 = arith.constant dense<0.000000e+00> : vector<256x64xf32>
    %45 = tpu.matmul %43, %44, %cst_13 {dimension_numbers = #tpu.dot_dimension_numbers<[1], [0], [0], [1], [0, 0, 1, 1], [], []>} : vector<256x64xf32>, vector<64x64xf32>, vector<256x64xf32> -> vector<256x64xf32>
    %c0_14 = arith.constant 0 : index
    %c0_15 = arith.constant 0 : index
    %46 = vector.load %arg5[%c0_14, %c0_15] : memref<1x64xf32, #tpu.memory_space<vmem>>, vector<1x64xf32>
    %47 = vector.broadcast %46 : vector<1x64xf32> to vector<256x64xf32>
    %48 = arith.addf %45, %47 : vector<256x64xf32>
    %49 = vector.shape_cast %48 : vector<256x64xf32> to vector<2x128x64xf32>
    %c0_16 = arith.constant 0 : index
    %c0_17 = arith.constant 0 : index
    %c0_18 = arith.constant 0 : index
    %50 = vector.load %arg6[%c0_16, %c0_17, %c0_18] : memref<2x128x64xf32, #tpu.memory_space<vmem>>, vector<2x128x64xf32>
    tpu.vector_store %arg6[%c0_16, %c0_17, %c0_18], %49 {strides = array<i32>} : memref<2x128x64xf32, #tpu.memory_space<vmem>>, vector<2x128x64xf32>,
    return
  }
  func.func @transform_0(%arg0: i32) -> (i32, i32, i32) {
    %c0_i32 = arith.constant 0 : i32
    %c0_i32_0 = arith.constant 0 : i32
    %c0_i32_1 = arith.constant 0 : i32
    return %arg0, %c0_i32, %c0_i32_0 : i32, i32, i32
  }
  func.func @transform_1(%arg0: i32) -> (i32, i32) {
    %c0_i32 = arith.constant 0 : i32
    %c0_i32_0 = arith.constant 0 : i32
    %c0_i32_1 = arith.constant 0 : i32
    return %c0_i32, %c0_i32_0 : i32, i32
  }
  func.func @transform_2(%arg0: i32) -> (i32, i32) {
    %c0_i32 = arith.constant 0 : i32
    %c0_i32_0 = arith.constant 0 : i32
    %c0_i32_1 = arith.constant 0 : i32
    return %c0_i32, %c0_i32_0 : i32, i32
  }
  func.func @transform_3(%arg0: i32) -> (i32, i32) {
    %c0_i32 = arith.constant 0 : i32
    %c0_i32_0 = arith.constant 0 : i32
    %c0_i32_1 = arith.constant 0 : i32
    return %c0_i32, %c0_i32_0 : i32, i32
  }
  func.func @transform_4(%arg0: i32) -> (i32, i32) {
    %c0_i32 = arith.constant 0 : i32
    %c0_i32_0 = arith.constant 0 : i32
    %c0_i32_1 = arith.constant 0 : i32
    return %c0_i32, %c0_i32_0 : i32, i32
  }
  func.func @transform_5(%arg0: i32) -> (i32, i32, i32) {
    %c0_i32 = arith.constant 0 : i32
    %c0_i32_0 = arith.constant 0 : i32
    %c0_i32_1 = arith.constant 0 : i32
    return %arg0, %c0_i32, %c0_i32_0 : i32, i32, i32
  }
}

</mosaic_0001>

<llo_original>
// kernel: tpu_custom_call.1
$region0: #{tpu_custom_call.1}
  #allocation0 [shape = 'u32[]', space=smem, size = 0x4, offset = 0x4, fixed_abs, tag = 'smem constant byte address 0x4 - core index']
  #allocation1 [shape = 'u32[144,128]{1,0:T(1,128)}', space=vmem, size = 0x12000, scoped, tag = 'internal scratch']
  %s0 = inlined_call_operand.vmem [shape: f32[4,128,64], index: 0, kind: input, shape index: {}]
  %s1 = inlined_call_operand.vmem [shape: f32[64,192], index: 1, kind: input, shape index: {}]
  %s2 = inlined_call_operand.vmem [shape: f32[1,192], index: 2, kind: input, shape index: {}]
  %s3 = inlined_call_operand.vmem [shape: f32[64,64], index: 3, kind: input, shape index: {}]
  %s4 = inlined_call_operand.vmem [shape: f32[1,64], index: 4, kind: input, shape index: {}]
  %s5 = inlined_call_operand.vmem [shape: f32[4,128,64], index: 5, kind: output, shape index: {}]
  %s6 = sld [smem:[#allocation0]]
  $region53: #{tpu_custom_call.1} parent=0
    _
  %s8 = ssub.s32 1, %s6
  %s9 = scalar_select 0, %s8, %s6
  loop: start=0, step=1, limit=4
  $region2: #{tpu_custom_call.1} parent=0 // loop_pre_header
    _
  $region3: #{tpu_custom_call.1} parent=0 // loop_header
    %s11 = sphi 0, %s15
    %p12 = scmp.ge.s32.totalorder %s11, 4
    %s21 = sphi 0, %s23
    %s24 = sphi 0, %s21
    %s25 = sphi 0, %s24
    %s41 = sphi 0, %s25
    %s45 = sphi 0, %s45
    %s47 = sphi 0, %s45
    %s48 = sphi 0, %s47
    %s62 = sphi 0, %s48
    %s66 = sphi 0, %s66
    %s68 = sphi 0, %s66
    %s69 = sphi 0, %s68
    %s83 = sphi 0, %s69
    %s87 = sphi 0, %s87
    %s89 = sphi 0, %s87
    %s90 = sphi 0, %s89
    %s104 = sphi 0, %s90
    %s108 = sphi 0, %s108
    %s110 = sphi 0, %s108
    %s111 = sphi 0, %s110
    %s125 = sphi 0, %s111
    %s131 = sphi 0, %s133
    %s134 = sphi 0, %s131
    %s135 = sphi 0, %s134
    %s151 = sphi 0, %s135
  $region4: #{tpu_custom_call.1} parent=0 // loop_header_branch
    %14 = sbr.rel (%p12) target = $region8
  $region5: #{tpu_custom_call.1} parent=0 // loop_body
    %s16 = ssub.s32 %s11, 1
    %s17 = ssub.s32 %s11, 2
    %s18 = sadd.s32 %s11, 1
    %s19 = ssub.s32 %s11, %s18
    %p20 = scmp.eq.s32.totalorder %s19, 0
    %s22 = sadd.s32 %s21, 1
    %s23 = scalar_select %p20, %s21, %s22
    %p26 = pneg %p20
    %p27 = scmp.eq.s32.totalorder %s11, 1
    %p28 = por %p26, %p27
    %p29 = scmp.ne.s32.totalorder %s21, %s24
    %p30 = scmp.eq.s32.totalorder %s11, 0
    %p31 = por %p29, %p30
    %p32 = scmp.ne.s32.totalorder %s21, %s24
    %p33 = scmp.eq.s32.totalorder %s16, 1
    %p34 = por %p32, %p33
    %p35 = scmp.ne.s32.totalorder %s24, %s25
    %p36 = scmp.eq.s32.totalorder %s16, 0
    %p37 = por %p35, %p36
    %p38 = scmp.ne.s32.totalorder %s24, %s25
    %p39 = scmp.eq.s32.totalorder %s17, 1
    %p40 = por %p38, %p39
    %p42 = scmp.ne.s32.totalorder %s25, %s41
    %p43 = scmp.eq.s32.totalorder %s17, 0
    %p44 = por %p42, %p43
    %s46 = sadd.s32 %s45, 1
    %p49 = scmp.eq.s32.totalorder %s11, 1
    %p50 = scmp.ne.s32.totalorder %s45, %s47
    %p51 = scmp.eq.s32.totalorder %s11, 0
    %p52 = por %p50, %p51
    %p53 = scmp.ne.s32.totalorder %s45, %s47
    %p54 = scmp.eq.s32.totalorder %s16, 1
    %p55 = por %p53, %p54
    %p56 = scmp.ne.s32.totalorder %s47, %s48
    %p57 = scmp.eq.s32.totalorder %s16, 0
    %p58 = por %p56, %p57
    %p59 = scmp.ne.s32.totalorder %s47, %s48
    %p60 = scmp.eq.s32.totalorder %s17, 1
    %p61 = por %p59, %p60
    %p63 = scmp.ne.s32.totalorder %s48, %s62
    %p64 = scmp.eq.s32.totalorder %s17, 0
    %p65 = por %p63, %p64
    %s67 = sadd.s32 %s66, 1
    %p70 = scmp.eq.s32.totalorder %s11, 1
    %p71 = scmp.ne.s32.totalorder %s66, %s68
    %p72 = scmp.eq.s32.totalorder %s11, 0
    %p73 = por %p71, %p72
    %p74 = scmp.ne.s32.totalorder %s66, %s68
    %p75 = scmp.eq.s32.totalorder %s16, 1
    %p76 = por %p74, %p75
    %p77 = scmp.ne.s32.totalorder %s68, %s69
    %p78 = scmp.eq.s32.totalorder %s16, 0
    %p79 = por %p77, %p78
    %p80 = scmp.ne.s32.totalorder %s68, %s69
    %p81 = scmp.eq.s32.totalorder %s17, 1
    %p82 = por %p80, %p81
    %p84 = scmp.ne.s32.totalorder %s69, %s83
    %p85 = scmp.eq.s32.totalorder %s17, 0
    %p86 = por %p84, %p85
    %s88 = sadd.s32 %s87, 1
    %p91 = scmp.eq.s32.totalorder %s11, 1
    %p92 = scmp.ne.s32.totalorder %s87, %s89
    %p93 = scmp.eq.s32.totalorder %s11, 0
    %p94 = por %p92, %p93
    %p95 = scmp.ne.s32.totalorder %s87, %s89
    %p96 = scmp.eq.s32.totalorder %s16, 1
    %p97 = por %p95, %p96
    %p98 = scmp.ne.s32.totalorder %s89, %s90
    %p99 = scmp.eq.s32.totalorder %s16, 0
    %p100 = por %p98, %p99
    %p101 = scmp.ne.s32.totalorder %s89, %s90
    %p102 = scmp.eq.s32.totalorder %s17, 1
    %p103 = por %p101, %p102
    %p105 = scmp.ne.s32.totalorder %s90, %s104
    %p106 = scmp.eq.s32.totalorder %s17, 0
    %p107 = por %p105, %p106
    %s109 = sadd.s32 %s108, 1
    %p112 = scmp.eq.s32.totalorder %s11, 1
    %p113 = scmp.ne.s32.totalorder %s108, %s110
    %p114 = scmp.eq.s32.totalorder %s11, 0
    %p115 = por %p113, %p114
    %p116 = scmp.ne.s32.totalorder %s108, %s110
    %p117 = scmp.eq.s32.totalorder %s16, 1
    %p118 = por %p116, %p117
    %p119 = scmp.ne.s32.totalorder %s110, %s111
    %p120 = scmp.eq.s32.totalorder %s16, 0
    %p121 = por %p119, %p120
    %p122 = scmp.ne.s32.totalorder %s110, %s111
    %p123 = scmp.eq.s32.totalorder %s17, 1
    %p124 = por %p122, %p123
    %p126 = scmp.ne.s32.totalorder %s111, %s125
    %p127 = scmp.eq.s32.totalorder %s17, 0
    %p128 = por %p126, %p127
    %s129 = ssub.s32 %s11, %s18
    %p130 = scmp.eq.s32.totalorder %s129, 0
    %s132 = sadd.s32 %s131, 1
    %s133 = scalar_select %p130, %s131, %s132
    %p136 = pneg %p130
    %p137 = scmp.eq.s32.totalorder %s11, 1
    %p138 = por %p136, %p137
    %p139 = scmp.ne.s32.totalorder %s131, %s134
    %p140 = scmp.eq.s32.totalorder %s11, 0
    %p141 = por %p139, %p140
    %p142 = scmp.ne.s32.totalorder %s131, %s134
    %p143 = scmp.eq.s32.totalorder %s16, 1
    %p144 = por %p142, %p143
    %p145 = scmp.ne.s32.totalorder %s134, %s135
    %p146 = scmp.eq.s32.totalorder %s16, 0
    %p147 = por %p145, %p146
    %p148 = scmp.ne.s32.totalorder %s134, %s135
    %p149 = scmp.eq.s32.totalorder %s17, 1
    %p150 = por %p148, %p149
    %p152 = scmp.ne.s32.totalorder %s135, %s151
    %p153 = scmp.eq.s32.totalorder %s17, 0
    %p154 = por %p152, %p153
    %p155 = scmp.le.s32.totalorder 1, %s11
    %p156 = scmp.lt.s32.totalorder %s11, 3
    %p157 = pnand %p155, %p156
    %p158 = pneg %p157
    // Predicated region
    $region9: #{tpu_custom_call.1} parent=5 // pred_check
      _
    $region10: #{tpu_custom_call.1} parent=5 // pred_check_branch
      %160 = sbr.rel (%p157) target = $region12
    $region11: #{tpu_custom_call.1} parent=5 // pred_region
      %s161 = ssub.s32 %s11, 1
      // Predicated region
      $region13: #{tpu_custom_call.1} parent=11 // pred_check
        %p162 = pneg %p58
      $region14: #{tpu_custom_call.1} parent=11 // pred_check_branch
        %164 = sbr.rel (%p162) target = $region16
      $region15: #{tpu_custom_call.1} parent=11 // pred_region
        _
      $region16: #{tpu_custom_call.1} parent=11 // pred_fallthru
        _
      // Predicated region
      $region17: #{tpu_custom_call.1} parent=11 // pred_check
        %p165 = pneg %p79
      $region18: #{tpu_custom_call.1} parent=11 // pred_check_branch
        %167 = sbr.rel (%p165) target = $region20
      $region19: #{tpu_custom_call.1} parent=11 // pred_region
        _
      $region20: #{tpu_custom_call.1} parent=11 // pred_fallthru
        _
      // Predicated region
      $region21: #{tpu_custom_call.1} parent=11 // pred_check
        %p168 = pneg %p100
      $region22: #{tpu_custom_call.1} parent=11 // pred_check_branch
        %170 = sbr.rel (%p168) target = $region24
      $region23: #{tpu_custom_call.1} parent=11 // pred_region
        _
      $region24: #{tpu_custom_call.1} parent=11 // pred_fallthru
        _
      // Predicated region
      $region25: #{tpu_custom_call.1} parent=11 // pred_check
        %p171 = pneg %p121
      $region26: #{tpu_custom_call.1} parent=11 // pred_check_branch
        %173 = sbr.rel (%p171) target = $region28
      $region27: #{tpu_custom_call.1} parent=11 // pred_region
        _
      $region28: #{tpu_custom_call.1} parent=11 // pred_fallthru
        _
    $region12: #{tpu_custom_call.1} parent=5 // pred_fallthru
      _
    %p174 = scmp.lt.s32.totalorder %s11, 2
    // Predicated region
    $region29: #{tpu_custom_call.1} parent=5 // pred_check
      %p175 = pneg %p174
    $region30: #{tpu_custom_call.1} parent=5 // pred_check_branch
      %177 = sbr.rel (%p175) target = $region32
    $region31: #{tpu_custom_call.1} parent=5 // pred_region
      // Predicated region
      $region33: #{tpu_custom_call.1} parent=31 // pred_check
        %p178 = pneg %p31
      $region34: #{tpu_custom_call.1} parent=31 // pred_check_branch
        %180 = sbr.rel (%p178) target = $region36
      $region35: #{tpu_custom_call.1} parent=31 // pred_region
        %s181 = smul.u32 2, %s11
        %p182 = scmp.lt.s32.totalorder %s181, 3
        %s183 = scalar_select %p182, %s181, 3
        %s184 = smul.addr %s183, 16
        %s185 = smul.addr %s184, 8
        %s186 = scalar_lea.vmem %s0, %s185
        %s187 = smul.u32 2, %s11
      $region36: #{tpu_custom_call.1} parent=31 // pred_fallthru
        _
    $region32: #{tpu_custom_call.1} parent=5 // pred_fallthru
      _
    %p188 = scmp.le.s32.totalorder 1, %s11
    %p189 = scmp.lt.s32.totalorder %s11, 3
    %p190 = pnand %p188, %p189
    %p191 = pneg %p190
    // Predicated region
    $region37: #{tpu_custom_call.1} parent=5 // pred_check
      _
    $region38: #{tpu_custom_call.1} parent=5 // pred_check_branch
      %193 = sbr.rel (%p190) target = $region40
    $region39: #{tpu_custom_call.1} parent=5 // pred_region
      %s194 = ssub.s32 %s11, 1
      %s195 = smul.u32 2, %s16
      %p196 = scmp.lt.s32.totalorder %s195, 3
      %s197 = scalar_select %p196, %s195, 3
      %s198 = smul.addr %s197, 16
      %s199 = smul.addr %s198, 8
      %s200 = scalar_lea.vmem %s0, %s199
      %p201 = pneg %p37
      %p202 = pneg %p34
      %p203 = pneg %p58
      %p204 = pneg %p55
      %p205 = pneg %p79
      %p206 = pneg %p76
      %p207 = pneg %p100
      %p208 = pneg %p97
      %p209 = pneg %p121
      %p210 = pneg %p118
      %p211 = pneg %p147
      %p212 = pneg %p144
      %s213 = smul.u32 2, %s16
      %p214 = scmp.lt.s32.totalorder %s213, 3
      %s215 = scalar_select %p214, %s213, 3
      %s216 = smul.addr %s215, 16
      %s217 = smul.addr %s216, 8
      %s218 = scalar_lea.vmem %s5, %s217
      %s219 = smul.u32 2, %s16
      %p220 = scmp.lt.s32.totalorder %s219, 3
      %s221 = scalar_select %p220, %s219, 3
      %s222 = smul.addr %s221, 16
      %s223 = smul.addr %s222, 8
      %s224 = scalar_lea.vmem %s0, %s223
      %s225 = smul.u32 2, %s16
      %s226 = smul.u32 2, %s16
      %p227 = scmp.lt.s32.totalorder %s226, 3
      %s228 = scalar_select %p227, %s226, 3
      %s229 = smul.addr %s228, 16
      %s230 = smul.addr %s229, 8
      %s231 = scalar_lea.vmem %s5, %s230
      %s232 = smul.u32 2, %s16
      %v233 = vld [vmem:[%s224] sm:$0xff]
      %v234 = vld [vmem:[%s224 + $0x8] sm:$0xff]
      %v235 = vld [vmem:[%s224 + $0x10] sm:$0xff]
      %v236 = vld [vmem:[%s224 + $0x18] sm:$0xff]
      %v237 = vld [vmem:[%s224 + $0x20] sm:$0xff]
      %v238 = vld [vmem:[%s224 + $0x28] sm:$0xff]
      %v239 = vld [vmem:[%s224 + $0x30] sm:$0xff]
      %v240 = vld [vmem:[%s224 + $0x38] sm:$0xff]
      %v241 = vld [vmem:[%s224 + $0x40] sm:$0xff]
      %v242 = vld [vmem:[%s224 + $0x48] sm:$0xff]
      %v243 = vld [vmem:[%s224 + $0x50] sm:$0xff]
      %v244 = vld [vmem:[%s224 + $0x58] sm:$0xff]
      %v245 = vld [vmem:[%s224 + $0x60] sm:$0xff]
      %v246 = vld [vmem:[%s224 + $0x68] sm:$0xff]
      %v247 = vld [vmem:[%s224 + $0x70] sm:$0xff]
      %v248 = vld [vmem:[%s224 + $0x78] sm:$0xff]
      %v249 = vld [vmem:[%s224 + $0x80] sm:$0xff]
      %v250 = vld [vmem:[%s224 + $0x88] sm:$0xff]
      %v251 = vld [vmem:[%s224 + $0x90] sm:$0xff]
      %v252 = vld [vmem:[%s224 + $0x98] sm:$0xff]
      %v253 = vld [vmem:[%s224 + $0xa0] sm:$0xff]
      %v254 = vld [vmem:[%s224 + $0xa8] sm:$0xff]
      %v255 = vld [vmem:[%s224 + $0xb0] sm:$0xff]
      %v256 = vld [vmem:[%s224 + $0xb8] sm:$0xff]
      %v257 = vld [vmem:[%s224 + $0xc0] sm:$0xff]
      %v258 = vld [vmem:[%s224 + $0xc8] sm:$0xff]
      %v259 = vld [vmem:[%s224 + $0xd0] sm:$0xff]
      %v260 = vld [vmem:[%s224 + $0xd8] sm:$0xff]
      %v261 = vld [vmem:[%s224 + $0xe0] sm:$0xff]
      %v262 = vld [vmem:[%s224 + $0xe8] sm:$0xff]
      %v263 = vld [vmem:[%s224 + $0xf0] sm:$0xff]
      %v264 = vld [vmem:[%s224 + $0xf8] sm:$0xff]
      %v265 = vld [vmem:[%s1] sm:$0xff]
      %v266 = vld [vmem:[%s1 + $0x8] sm:$0xff]
      %v267 = vld [vmem:[%s1 + $0x10] sm:$0xff]
      %v268 = vld [vmem:[%s1 + $0x18] sm:$0xff]
      %v269 = vld [vmem:[%s1 + $0x20] sm:$0xff]
      %v270 = vld [vmem:[%s1 + $0x28] sm:$0xff]
      %v271 = vld [vmem:[%s1 + $0x30] sm:$0xff]
      %v272 = vld [vmem:[%s1 + $0x38] sm:$0xff]
      %v273 = vld [vmem:[%s1 + $0x40] sm:$0xff]
      %v274 = vld [vmem:[%s1 + $0x48] sm:$0xff]
      %v275 = vld [vmem:[%s1 + $0x50] sm:$0xff]
      %v276 = vld [vmem:[%s1 + $0x58] sm:$0xff]
      %v277 = vld [vmem:[%s1 + $0x60] sm:$0xff]
      %v278 = vld [vmem:[%s1 + $0x68] sm:$0xff]
      %v279 = vld [vmem:[%s1 + $0x70] sm:$0xff]
      %v280 = vld [vmem:[%s1 + $0x78] sm:$0xff]
      %v281 = vld [vmem:[%s2] sm:$0x3]
      %v283 = vlaneseq
      %v284 = vshrl.u32 %v283, 7
      %v285 = vsub.s32 0, %v284
      %v286 = vrot.slane %v281, %v285
      %v287 = vlaneseq
      %v288 = vshrl.u32 %v287, 7
      %v289 = vsub.s32 1, %v288
      %v290 = vrot.slane %v281, %v289
      %vm293 = vcmask 523264
      %v295 = vsel %vm293, %v233, 0
      %v298 = vsel %vm293, %v234, 0
      %v301 = vsel %vm293, %v235, 0
      %v304 = vsel %vm293, %v236, 0
      %v307 = vsel %vm293, %v237, 0
      %v310 = vsel %vm293, %v238, 0
      %v313 = vsel %vm293, %v239, 0
      %v316 = vsel %vm293, %v240, 0
      %v319 = vsel %vm293, %v241, 0
      %v322 = vsel %vm293, %v242, 0
      %v325 = vsel %vm293, %v243, 0
      %v328 = vsel %vm293, %v244, 0
      %v331 = vsel %vm293, %v245, 0
      %v334 = vsel %vm293, %v246, 0
      %v337 = vsel %vm293, %v247, 0
      %v340 = vsel %vm293, %v248, 0
      %v343 = vsel %vm293, %v249, 0
      %v346 = vsel %vm293, %v250, 0
      %v349 = vsel %vm293, %v251, 0
      %v352 = vsel %vm293, %v252, 0
      %v355 = vsel %vm293, %v253, 0
      %v358 = vsel %vm293, %v254, 0
      %v361 = vsel %vm293, %v255, 0
      %v364 = vsel %vm293, %v256, 0
      %v367 = vsel %vm293, %v257, 0
      %v370 = vsel %vm293, %v258, 0
      %v373 = vsel %vm293, %v259, 0
      %v376 = vsel %vm293, %v260, 0
      %v379 = vsel %vm293, %v261, 0
      %v382 = vsel %vm293, %v262, 0
      %v385 = vsel %vm293, %v263, 0
      %v388 = vsel %vm293, %v264, 0
      %390 = vmatprep.subr.mxu0 %v266
      %391 = vmatpush1.msra.mxu0 %v265
      %392 = vmatprep.subr.mxu0 %v268
      %393 = vmatpush1.msra.mxu0 %v267
      %394 = vmatprep.subr.mxu0 %v270
      %395 = vmatpush1.msra.mxu0 %v269
      %396 = vmatprep.subr.mxu0 %v272
      %397 = vmatpush1.msra.mxu0 %v271
      %398 = vmatprep.subr.mxu0 %v274
      %399 = vmatpush1.msra.mxu0 %v273
      %400 = vmatprep.subr.mxu0 %v276
      %401 = vmatpush1.msra.mxu0 %v275
      %402 = vmatprep.subr.mxu0 %v278
      %403 = vmatpush1.msra.mxu0 %v277
      %404 = vmatprep.subr.mxu0 %v280
      %405 = vmatpush1.msra.mxu0 %v279
      %406 = vmatprep.subr.mxu0 0.0
      %407 = vmatpush1.msra.mxu0 0.0
      %408 = vmatprep.subr.mxu0 0.0
      %409 = vmatpush1.msra.mxu0 0.0
      %410 = vmatprep.subr.mxu0 0.0
      %411 = vmatpush1.msra.mxu0 0.0
      %412 = vmatprep.subr.mxu0 0.0
      %413 = vmatpush1.msra.mxu0 0.0
      %414 = vmatprep.subr.mxu0 0.0
      %415 = vmatpush1.msra.mxu0 0.0
      %416 = vmatprep.subr.mxu0 0.0
      %417 = vmatpush1.msra.mxu0 0.0
      %418 = vmatprep.subr.mxu0 0.0
      %419 = vmatpush1.msra.mxu0 0.0
      %420 = vmatprep.subr.mxu0 0.0
      %421 = vmatpush1.msra.mxu0 0.0
      %422 = vmatprep.subr.mxu0 0.0
      %423 = vmatpush1.msra.mxu0 0.0
      %424 = vmatprep.subr.mxu0 0.0
      %425 = vmatpush1.msra.mxu0 0.0
      %426 = vmatprep.subr.mxu0 0.0
      %427 = vmatpush1.msra.mxu0 0.0
      %428 = vmatprep.subr.mxu0 0.0
      %429 = vmatpush1.msra.mxu0 0.0
      %430 = vmatprep.subr.mxu0 0.0
      %431 = vmatpush1.msra.mxu0 0.0
      %432 = vmatprep.subr.mxu0 0.0
      %433 = vmatpush1.msra.mxu0 0.0
      %434 = vmatprep.subr.mxu0 0.0
      %435 = vmatpush1.msra.mxu0 0.0
      %436 = vmatprep.subr.mxu0 0.0
      %437 = vmatpush1.msra.mxu0 0.0
      %438 = vmatprep.subr.mxu0 0.0
      %439 = vmatpush1.msra.mxu0 0.0
      %440 = vmatprep.subr.mxu0 0.0
      %441 = vmatpush1.msra.mxu0 0.0
      %442 = vmatprep.subr.mxu0 0.0
      %443 = vmatpush1.msra.mxu0 0.0
      %444 = vmatprep.subr.mxu0 0.0
      %445 = vmatpush1.msra.mxu0 0.0
      %446 = vmatprep.subr.mxu0 0.0
      %447 = vmatpush1.msra.mxu0 0.0
      %448 = vmatprep.subr.mxu0 0.0
      %449 = vmatpush1.msra.mxu0 0.0
      %450 = vmatprep.subr.mxu0 0.0
      %451 = vmatpush1.msra.mxu0 0.0
      %452 = vmatprep.subr.mxu0 0.0
      %453 = vmatpush1.msra.mxu0 0.0
      %454 = vmatprep.mubr.f32.mxu0 0.0
      %455 = vmatmul.mubr.f32.gmra.mrb[0].mxu0 %v295
      %v456 = vpop.f32.mrb[0].mxu0
      %v457 = vadd.f32 %v286, %v456
      %v458 = vpop.f32.mrb[0].mxu0
      %v459 = vadd.f32 %v290, %v458
      %460 = vmatprep.mubr.f32.mxu0 0.0
      %461 = vmatmul.mubr.f32.gmra.mrb[0].mxu0 %v298
      %v462 = vpop.f32.mrb[0].mxu0
      %v463 = vadd.f32 %v286, %v462
      %v464 = vpop.f32.mrb[0].mxu0
      %v465 = vadd.f32 %v290, %v464
      %466 = vmatprep.mubr.f32.mxu0 0.0
      %467 = vmatmul.mubr.f32.gmra.mrb[0].mxu0 %v301
      %v468 = vpop.f32.mrb[0].mxu0
      %v469 = vadd.f32 %v286, %v468
      %v470 = vpop.f32.mrb[0].mxu0
      %v471 = vadd.f32 %v290, %v470
      %472 = vmatprep.mubr.f32.mxu0 0.0
      %473 = vmatmul.mubr.f32.gmra.mrb[0].mxu0 %v304
      %v474 = vpop.f32.mrb[0].mxu0
      %v475 = vadd.f32 %v286, %v474
      %v476 = vpop.f32.mrb[0].mxu0
      %v477 = vadd.f32 %v290, %v476
      %478 = vmatprep.mubr.f32.mxu0 0.0
      %479 = vmatmul.mubr.f32.gmra.mrb[0].mxu0 %v307
      %v480 = vpop.f32.mrb[0].mxu0
      %v481 = vadd.f32 %v286, %v480
      %v482 = vpop.f32.mrb[0].mxu0
      %v483 = vadd.f32 %v290, %v482
      %484 = vmatprep.mubr.f32.mxu0 0.0
      %485 = vmatmul.mubr.f32.gmra.mrb[0].mxu0 %v310
      %v486 = vpop.f32.mrb[0].mxu0
      %v487 = vadd.f32 %v286, %v486
      %v488 = vpop.f32.mrb[0].mxu0
      %v489 = vadd.f32 %v290, %v488
      %490 = vmatprep.mubr.f32.mxu0 0.0
      %491 = vmatmul.mubr.f32.gmra.mrb[0].mxu0 %v313
      %v492 = vpop.f32.mrb[0].mxu0
      %v493 = vadd.f32 %v286, %v492
      %v494 = vpop.f32.mrb[0].mxu0
      %v495 = vadd.f32 %v290, %v494
      %496 = vmatprep.mubr.f32.mxu0 0.0
      %497 = vmatmul.mubr.f32.gmra.mrb[0].mxu0 %v316
      %v498 = vpop.f32.mrb[0].mxu0
      %v499 = vadd.f32 %v286, %v498
      %v500 = vpop.f32.mrb[0].mxu0
      %v501 = vadd.f32 %v290, %v500
      %502 = vmatprep.mubr.f32.mxu0 0.0
      %503 = vmatmul.mubr.f32.gmra.mrb[0].mxu0 %v319
      %v504 = vpop.f32.mrb[0].mxu0
      %v505 = vadd.f32 %v286, %v504
      %v506 = vpop.f32.mrb[0].mxu0
      %v507 = vadd.f32 %v290, %v506
      %508 = vmatprep.mubr.f32.mxu0 0.0
      %509 = vmatmul.mubr.f32.gmra.mrb[0].mxu0 %v322
      %v510 = vpop.f32.mrb[0].mxu0
      %v511 = vadd.f32 %v286, %v510
      %v512 = vpop.f32.mrb[0].mxu0
      %v513 = vadd.f32 %v290, %v512
      %514 = vmatprep.mubr.f32.mxu0 0.0
      %515 = vmatmul.mubr.f32.gmra.mrb[0].mxu0 %v325
      %v516 = vpop.f32.mrb[0].mxu0
      %v517 = vadd.f32 %v286, %v516
      %v518 = vpop.f32.mrb[0].mxu0
      %v519 = vadd.f32 %v290, %v518
      %520 = vmatprep.mubr.f32.mxu0 0.0
      %521 = vmatmul.mubr.f32.gmra.mrb[0].mxu0 %v328
      %v522 = vpop.f32.mrb[0].mxu0
      %v523 = vadd.f32 %v286, %v522
      %v524 = vpop.f32.mrb[0].mxu0
      %v525 = vadd.f32 %v290, %v524
      %526 = vmatprep.mubr.f32.mxu0 0.0
      %527 = vmatmul.mubr.f32.gmra.mrb[0].mxu0 %v331
      %v528 = vpop.f32.mrb[0].mxu0
      %v529 = vadd.f32 %v286, %v528
      %v530 = vpop.f32.mrb[0].mxu0
      %v531 = vadd.f32 %v290, %v530
      %532 = vmatprep.mubr.f32.mxu0 0.0
      %533 = vmatmul.mubr.f32.gmra.mrb[0].mxu0 %v334
      %v534 = vpop.f32.mrb[0].mxu0
      %v535 = vadd.f32 %v286, %v534
      %v536 = vpop.f32.mrb[0].mxu0
      %v537 = vadd.f32 %v290, %v536
      %538 = vmatprep.mubr.f32.mxu0 0.0
      %539 = vmatmul.mubr.f32.gmra.mrb[0].mxu0 %v337
      %v540 = vpop.f32.mrb[0].mxu0
      %v541 = vadd.f32 %v286, %v540
      %v542 = vpop.f32.mrb[0].mxu0
      %v543 = vadd.f32 %v290, %v542
      %544 = vmatprep.mubr.f32.mxu0 0.0
      %545 = vmatmul.mubr.f32.gmra.mrb[0].mxu0 %v340
      %v546 = vpop.f32.mrb[0].mxu0
      %v547 = vadd.f32 %v286, %v546
      %v548 = vpop.f32.mrb[0].mxu0
      %v549 = vadd.f32 %v290, %v548
      %550 = vmatprep.mubr.f32.mxu0 0.0
      %551 = vmatmul.mubr.f32.gmra.mrb[0].mxu0 %v343
      %v552 = vpop.f32.mrb[0].mxu0
      %v553 = vadd.f32 %v286, %v552
      %v554 = vpop.f32.mrb[0].mxu0
      %v555 = vadd.f32 %v290, %v554
      %556 = vmatprep.mubr.f32.mxu0 0.0
      %557 = vmatmul.mubr.f32.gmra.mrb[0].mxu0 %v346
      %v558 = vpop.f32.mrb[0].mxu0
      %v559 = vadd.f32 %v286, %v558
      %v560 = vpop.f32.mrb[0].mxu0
      %v561 = vadd.f32 %v290, %v560
      %562 = vmatprep.mubr.f32.mxu0 0.0
      %563 = vmatmul.mubr.f32.gmra.mrb[0].mxu0 %v349
      %v564 = vpop.f32.mrb[0].mxu0
      %v565 = vadd.f32 %v286, %v564
      %v566 = vpop.f32.mrb[0].mxu0
      %v567 = vadd.f32 %v290, %v566
      %568 = vmatprep.mubr.f32.mxu0 0.0
      %569 = vmatmul.mubr.f32.gmra.mrb[0].mxu0 %v352
      %v570 = vpop.f32.mrb[0].mxu0
      %v571 = vadd.f32 %v286, %v570
      %v572 = vpop.f32.mrb[0].mxu0
      %v573 = vadd.f32 %v290, %v572
      %574 = vmatprep.mubr.f32.mxu0 0.0
      %575 = vmatmul.mubr.f32.gmra.mrb[0].mxu0 %v355
      %v576 = vpop.f32.mrb[0].mxu0
      %v577 = vadd.f32 %v286, %v576
      %v578 = vpop.f32.mrb[0].mxu0
      %v579 = vadd.f32 %v290, %v578
      %580 = vmatprep.mubr.f32.mxu0 0.0
      %581 = vmatmul.mubr.f32.gmra.mrb[0].mxu0 %v358
      %v582 = vpop.f32.mrb[0].mxu0
      %v583 = vadd.f32 %v286, %v582
      %v584 = vpop.f32.mrb[0].mxu0
      %v585 = vadd.f32 %v290, %v584
      %586 = vmatprep.mubr.f32.mxu0 0.0
      %587 = vmatmul.mubr.f32.gmra.mrb[0].mxu0 %v361
      %v588 = vpop.f32.mrb[0].mxu0
      %v589 = vadd.f32 %v286, %v588
      %v590 = vpop.f32.mrb[0].mxu0
      %v591 = vadd.f32 %v290, %v590
      %592 = vmatprep.mubr.f32.mxu0 0.0
      %593 = vmatmul.mubr.f32.gmra.mrb[0].mxu0 %v364
      %v594 = vpop.f32.mrb[0].mxu0
      %v595 = vadd.f32 %v286, %v594
      %v596 = vpop.f32.mrb[0].mxu0
      %v597 = vadd.f32 %v290, %v596
      %598 = vmatprep.mubr.f32.mxu0 0.0
      %599 = vmatmul.mubr.f32.gmra.mrb[0].mxu0 %v367
      %v600 = vpop.f32.mrb[0].mxu0
      %v601 = vadd.f32 %v286, %v600
      %v602 = vpop.f32.mrb[0].mxu0
      %v603 = vadd.f32 %v290, %v602
      %604 = vmatprep.mubr.f32.mxu0 0.0
      %605 = vmatmul.mubr.f32.gmra.mrb[0].mxu0 %v370
      %v606 = vpop.f32.mrb[0].mxu0
      %v607 = vadd.f32 %v286, %v606
      %v608 = vpop.f32.mrb[0].mxu0
      %v609 = vadd.f32 %v290, %v608
      %610 = vmatprep.mubr.f32.mxu0 0.0
      %611 = vmatmul.mubr.f32.gmra.mrb[0].mxu0 %v373
      %v612 = vpop.f32.mrb[0].mxu0
      %v613 = vadd.f32 %v286, %v612
      %v614 = vpop.f32.mrb[0].mxu0
      %v615 = vadd.f32 %v290, %v614
      %616 = vmatprep.mubr.f32.mxu0 0.0
      %617 = vmatmul.mubr.f32.gmra.mrb[0].mxu0 %v376
      %v618 = vpop.f32.mrb[0].mxu0
      %v619 = vadd.f32 %v286, %v618
      %v620 = vpop.f32.mrb[0].mxu0
      %v621 = vadd.f32 %v290, %v620
      %622 = vmatprep.mubr.f32.mxu0 0.0
      %623 = vmatmul.mubr.f32.gmra.mrb[0].mxu0 %v379
      %v624 = vpop.f32.mrb[0].mxu0
      %v625 = vadd.f32 %v286, %v624
      %v626 = vpop.f32.mrb[0].mxu0
      %v627 = vadd.f32 %v290, %v626
      %628 = vmatprep.mubr.f32.mxu0 0.0
      %629 = vmatmul.mubr.f32.gmra.mrb[0].mxu0 %v382
      %v630 = vpop.f32.mrb[0].mxu0
      %v631 = vadd.f32 %v286, %v630
      %v632 = vpop.f32.mrb[0].mxu0
      %v633 = vadd.f32 %v290, %v632
      %634 = vmatprep.mubr.f32.mxu0 0.0
      %635 = vmatmul.mubr.f32.gmra.mrb[0].mxu0 %v385
      %v636 = vpop.f32.mrb[0].mxu0
      %v637 = vadd.f32 %v286, %v636
      %v638 = vpop.f32.mrb[0].mxu0
      %v639 = vadd.f32 %v290, %v638
      %640 = vmatprep.mubr.f32.mxu0 0.0
      %641 = vmatmul.mubr.f32.gmra.mrb[0].mxu0 %v388
      %v642 = vpop.f32.mrb[0].mxu0
      %v643 = vadd.f32 %v286, %v642
      %v644 = vpop.f32.mrb[0].mxu0
      %v645 = vadd.f32 %v290, %v644
      %646 = vdwg.mxu0
      %679 = vrot.lane.b32.xlu0 %v457, 96
      %v680 = vpop.permute.xlu0 %679
      %681 = vrot.lane.b32.xlu0 %v463, 96
      %v682 = vpop.permute.xlu0 %681
      %683 = vrot.lane.b32.xlu0 %v469, 96
      %v684 = vpop.permute.xlu0 %683
      %685 = vrot.lane.b32.xlu0 %v475, 96
      %v686 = vpop.permute.xlu0 %685
      %687 = vrot.lane.b32.xlu0 %v481, 96
      %v688 = vpop.permute.xlu0 %687
      %689 = vrot.lane.b32.xlu0 %v487, 96
      %v690 = vpop.permute.xlu0 %689
      %691 = vrot.lane.b32.xlu0 %v493, 96
      %v692 = vpop.permute.xlu0 %691
      %693 = vrot.lane.b32.xlu0 %v499, 96
      %v694 = vpop.permute.xlu0 %693
      %695 = vrot.lane.b32.xlu0 %v505, 96
      %v696 = vpop.permute.xlu0 %695
      %697 = vrot.lane.b32.xlu0 %v511, 96
      %v698 = vpop.permute.xlu0 %697
      %699 = vrot.lane.b32.xlu0 %v517, 96
      %v700 = vpop.permute.xlu0 %699
      %701 = vrot.lane.b32.xlu0 %v523, 96
      %v702 = vpop.permute.xlu0 %701
      %703 = vrot.lane.b32.xlu0 %v529, 96
      %v704 = vpop.permute.xlu0 %703
      %705 = vrot.lane.b32.xlu0 %v535, 96
      %v706 = vpop.permute.xlu0 %705
      %707 = vrot.lane.b32.xlu0 %v541, 96
      %v708 = vpop.permute.xlu0 %707
      %709 = vrot.lane.b32.xlu0 %v547, 96
      %v710 = vpop.permute.xlu0 %709
      %711 = vrot.lane.b32.xlu0 %v553, 96
      %v712 = vpop.permute.xlu0 %711
      %713 = vrot.lane.b32.xlu0 %v559, 96
      %v714 = vpop.permute.xlu0 %713
      %715 = vrot.lane.b32.xlu0 %v565, 96
      %v716 = vpop.permute.xlu0 %715
      %717 = vrot.lane.b32.xlu0 %v571, 96
      %v718 = vpop.permute.xlu0 %717
      %719 = vrot.lane.b32.xlu0 %v577, 96
      %v720 = vpop.permute.xlu0 %719
      %721 = vrot.lane.b32.xlu0 %v583, 96
      %v722 = vpop.permute.xlu0 %721
      %723 = vrot.lane.b32.xlu0 %v589, 96
      %v724 = vpop.permute.xlu0 %723
      %725 = vrot.lane.b32.xlu0 %v595, 96
      %v726 = vpop.permute.xlu0 %725
      %727 = vrot.lane.b32.xlu0 %v601, 96
      %v728 = vpop.permute.xlu0 %727
      %729 = vrot.lane.b32.xlu0 %v607, 96
      %v730 = vpop.permute.xlu0 %729
      %731 = vrot.lane.b32.xlu0 %v613, 96
      %v732 = vpop.permute.xlu0 %731
      %733 = vrot.lane.b32.xlu0 %v619, 96
      %v734 = vpop.permute.xlu0 %733
      %735 = vrot.lane.b32.xlu0 %v625, 96
      %v736 = vpop.permute.xlu0 %735
      %737 = vrot.lane.b32.xlu0 %v631, 96
      %v738 = vpop.permute.xlu0 %737
      %739 = vrot.lane.b32.xlu0 %v637, 96
      %v740 = vpop.permute.xlu0 %739
      %741 = vrot.lane.b32.xlu0 %v643, 96
      %v742 = vpop.permute.xlu0 %741
      %775 = vrot.lane.b32.xlu0 %v459, 96
      %v776 = vpop.permute.xlu0 %775
      %777 = vrot.lane.b32.xlu0 %v465, 96
      %v778 = vpop.permute.xlu0 %777
      %779 = vrot.lane.b32.xlu0 %v471, 96
      %v780 = vpop.permute.xlu0 %779
      %781 = vrot.lane.b32.xlu0 %v477, 96
      %v782 = vpop.permute.xlu0 %781
      %783 = vrot.lane.b32.xlu0 %v483, 96
      %v784 = vpop.permute.xlu0 %783
      %785 = vrot.lane.b32.xlu0 %v489, 96
      %v786 = vpop.permute.xlu0 %785
      %787 = vrot.lane.b32.xlu0 %v495, 96
      %v788 = vpop.permute.xlu0 %787
      %789 = vrot.lane.b32.xlu0 %v501, 96
      %v790 = vpop.permute.xlu0 %789
      %791 = vrot.lane.b32.xlu0 %v507, 96
      %v792 = vpop.permute.xlu0 %791
      %793 = vrot.lane.b32.xlu0 %v513, 96
      %v794 = vpop.permute.xlu0 %793
      %795 = vrot.lane.b32.xlu0 %v519, 96
      %v796 = vpop.permute.xlu0 %795
      %797 = vrot.lane.b32.xlu0 %v525, 96
      %v798 = vpop.permute.xlu0 %797
      %799 = vrot.lane.b32.xlu0 %v531, 96
      %v800 = vpop.permute.xlu0 %799
      %801 = vrot.lane.b32.xlu0 %v537, 96
      %v802 = vpop.permute.xlu0 %801
      %803 = vrot.lane.b32.xlu0 %v543, 96
      %v804 = vpop.permute.xlu0 %803
      %805 = vrot.lane.b32.xlu0 %v549, 96
      %v806 = vpop.permute.xlu0 %805
      %807 = vrot.lane.b32.xlu0 %v555, 96
      %v808 = vpop.permute.xlu0 %807
      %809 = vrot.lane.b32.xlu0 %v561, 96
      %v810 = vpop.permute.xlu0 %809
      %811 = vrot.lane.b32.xlu0 %v567, 96
      %v812 = vpop.permute.xlu0 %811
      %813 = vrot.lane.b32.xlu0 %v573, 96
      %v814 = vpop.permute.xlu0 %813
      %815 = vrot.lane.b32.xlu0 %v579, 96
      %v816 = vpop.permute.xlu0 %815
      %817 = vrot.lane.b32.xlu0 %v585, 96
      %v818 = vpop.permute.xlu0 %817
      %819 = vrot.lane.b32.xlu0 %v591, 96
      %v820 = vpop.permute.xlu0 %819
      %821 = vrot.lane.b32.xlu0 %v597, 96
      %v822 = vpop.permute.xlu0 %821
      %823 = vrot.lane.b32.xlu0 %v603, 96
      %v824 = vpop.permute.xlu0 %823
      %825 = vrot.lane.b32.xlu0 %v609, 96
      %v826 = vpop.permute.xlu0 %825
      %827 = vrot.lane.b32.xlu0 %v615, 96
      %v828 = vpop.permute.xlu0 %827
      %829 = vrot.lane.b32.xlu0 %v621, 96
      %v830 = vpop.permute.xlu0 %829
      %831 = vrot.lane.b32.xlu0 %v627, 96
      %v832 = vpop.permute.xlu0 %831
      %833 = vrot.lane.b32.xlu0 %v633, 96
      %v834 = vpop.permute.xlu0 %833
      %835 = vrot.lane.b32.xlu0 %v639, 96
      %v836 = vpop.permute.xlu0 %835
      %837 = vrot.lane.b32.xlu0 %v645, 96
      %v838 = vpop.permute.xlu0 %837
      %871 = vrot.lane.b32.xlu0 %v457, 64
      %v872 = vpop.permute.xlu0 %871
      %873 = vrot.lane.b32.xlu0 %v463, 64
      %v874 = vpop.permute.xlu0 %873
      %875 = vrot.lane.b32.xlu0 %v469, 64
      %v876 = vpop.permute.xlu0 %875
      %877 = vrot.lane.b32.xlu0 %v475, 64
      %v878 = vpop.permute.xlu0 %877
      %879 = vrot.lane.b32.xlu0 %v481, 64
      %v880 = vpop.permute.xlu0 %879
      %881 = vrot.lane.b32.xlu0 %v487, 64
      %v882 = vpop.permute.xlu0 %881
      %883 = vrot.lane.b32.xlu0 %v493, 64
      %v884 = vpop.permute.xlu0 %883
      %885 = vrot.lane.b32.xlu0 %v499, 64
      %v886 = vpop.permute.xlu0 %885
      %887 = vrot.lane.b32.xlu0 %v505, 64
      %v888 = vpop.permute.xlu0 %887
      %889 = vrot.lane.b32.xlu0 %v511, 64
      %v890 = vpop.permute.xlu0 %889
      %891 = vrot.lane.b32.xlu0 %v517, 64
      %v892 = vpop.permute.xlu0 %891
      %893 = vrot.lane.b32.xlu0 %v523, 64
      %v894 = vpop.permute.xlu0 %893
      %895 = vrot.lane.b32.xlu0 %v529, 64
      %v896 = vpop.permute.xlu0 %895
      %897 = vrot.lane.b32.xlu0 %v535, 64
      %v898 = vpop.permute.xlu0 %897
      %899 = vrot.lane.b32.xlu0 %v541, 64
      %v900 = vpop.permute.xlu0 %899
      %901 = vrot.lane.b32.xlu0 %v547, 64
      %v902 = vpop.permute.xlu0 %901
      %vm903 = vcmask 261120
      %v904 = vsel %vm903, %v457, 0
      %v906 = vsel %vm903, %v463, 0
      %v908 = vsel %vm903, %v469, 0
      %v910 = vsel %vm903, %v475, 0
      %v912 = vsel %vm903, %v481, 0
      %v914 = vsel %vm903, %v487, 0
      %v916 = vsel %vm903, %v493, 0
      %v918 = vsel %vm903, %v499, 0
      %v920 = vsel %vm903, %v505, 0
      %v922 = vsel %vm903, %v511, 0
      %v924 = vsel %vm903, %v517, 0
      %v926 = vsel %vm903, %v523, 0
      %v928 = vsel %vm903, %v529, 0
      %v930 = vsel %vm903, %v535, 0
      %v932 = vsel %vm903, %v541, 0
      %v934 = vsel %vm903, %v547, 0
      %v936 = vsel %vm903, %v872, 0
      %v938 = vsel %vm903, %v874, 0
      %v940 = vsel %vm903, %v876, 0
      %v942 = vsel %vm903, %v878, 0
      %v944 = vsel %vm903, %v880, 0
      %v946 = vsel %vm903, %v882, 0
      %v948 = vsel %vm903, %v884, 0
      %v950 = vsel %vm903, %v886, 0
      %v952 = vsel %vm903, %v888, 0
      %v954 = vsel %vm903, %v890, 0
      %v956 = vsel %vm903, %v892, 0
      %v958 = vsel %vm903, %v894, 0
      %v960 = vsel %vm903, %v896, 0
      %v962 = vsel %vm903, %v898, 0
      %v964 = vsel %vm903, %v900, 0
      %v966 = vsel %vm903, %v902, 0
      %968 = vmatprep.subr.mxu0 0.0
      %969 = vmatpush1.xpose.msra.mxu0 %v936
      %970 = vmatprep.subr.mxu0 0.0
      %971 = vmatpush1.xpose.msra.mxu0 %v938
      %972 = vmatprep.subr.mxu0 0.0
      %973 = vmatpush1.xpose.msra.mxu0 %v940
      %974 = vmatprep.subr.mxu0 0.0
      %975 = vmatpush1.xpose.msra.mxu0 %v942
      %976 = vmatprep.subr.mxu0 0.0
      %977 = vmatpush1.xpose.msra.mxu0 %v944
      %978 = vmatprep.subr.mxu0 0.0
      %979 = vmatpush1.xpose.msra.mxu0 %v946
      %980 = vmatprep.subr.mxu0 0.0
      %981 = vmatpush1.xpose.msra.mxu0 %v948
      %982 = vmatprep.subr.mxu0 0.0
      %983 = vmatpush1.xpose.msra.mxu0 %v950
      %984 = vmatprep.subr.mxu0 0.0
      %985 = vmatpush1.xpose.msra.mxu0 %v952
      %986 = vmatprep.subr.mxu0 0.0
      %987 = vmatpush1.xpose.msra.mxu0 %v954
      %988 = vmatprep.subr.mxu0 0.0
      %989 = vmatpush1.xpose.msra.mxu0 %v956
      %990 = vmatprep.subr.mxu0 0.0
      %991 = vmatpush1.xpose.msra.mxu0 %v958
      %992 = vmatprep.subr.mxu0 0.0
      %993 = vmatpush1.xpose.msra.mxu0 %v960
      %994 = vmatprep.subr.mxu0 0.0
      %995 = vmatpush1.xpose.msra.mxu0 %v962
      %996 = vmatprep.subr.mxu0 0.0
      %997 = vmatpush1.xpose.msra.mxu0 %v964
      %998 = vmatprep.subr.mxu0 0.0
      %999 = vmatpush1.xpose.msra.mxu0 %v966
      %1000 = vmatprep.subr.mxu0 0.0
      %1001 = vmatpush1.xpose.msra.mxu0 0.0
      %1002 = vmatprep.subr.mxu0 0.0
      %1003 = vmatpush1.xpose.msra.mxu0 0.0
      %1004 = vmatprep.subr.mxu0 0.0
      %1005 = vmatpush1.xpose.msra.mxu0 0.0
      %1006 = vmatprep.subr.mxu0 0.0
      %1007 = vmatpush1.xpose.msra.mxu0 0.0
      %1008 = vmatprep.subr.mxu0 0.0
      %1009 = vmatpush1.xpose.msra.mxu0 0.0
      %1010 = vmatprep.subr.mxu0 0.0
      %1011 = vmatpush1.xpose.msra.mxu0 0.0
      %1012 = vmatprep.subr.mxu0 0.0
      %1013 = vmatpush1.xpose.msra.mxu0 0.0
      %1014 = vmatprep.subr.mxu0 0.0
      %1015 = vmatpush1.xpose.msra.mxu0 0.0
      %1016 = vmatprep.subr.mxu0 0.0
      %1017 = vmatpush1.xpose.msra.mxu0 0.0
      %1018 = vmatprep.subr.mxu0 0.0
      %1019 = vmatpush1.xpose.msra.mxu0 0.0
      %1020 = vmatprep.subr.mxu0 0.0
      %1021 = vmatpush1.xpose.msra.mxu0 0.0
      %1022 = vmatprep.subr.mxu0 0.0
      %1023 = vmatpush1.xpose.msra.mxu0 0.0
      %1024 = vmatprep.subr.mxu0 0.0
      %1025 = vmatpush1.xpose.msra.mxu0 0.0
      %1026 = vmatprep.subr.mxu0 0.0
      %1027 = vmatpush1.xpose.msra.mxu0 0.0
      %1028 = vmatprep.subr.mxu0 0.0
      %1029 = vmatpush1.xpose.msra.mxu0 0.0
      %1030 = vmatprep.subr.mxu0 0.0
      %1031 = vmatpush1.xpose.msra.mxu0 0.0
      %1032 = vmatprep.mubr.f32.mxu0 0.0
      %1033 = vmatmul.mubr.f32.gmra.mrb[0].mxu0 %v904
      %v1034 = vpop.f32.mrb[0].mxu0
      %v1035 = vadd.f32 0.0, %v1034
      %v1036 = vpop.f32.mrb[0].mxu0
      %1037 = vmatprep.mubr.f32.mxu0 0.0
      %1038 = vmatmul.mubr.f32.gmra.mrb[0].mxu0 %v906
      %v1039 = vpop.f32.mrb[0].mxu0
      %v1040 = vadd.f32 0.0, %v1039
      %v1041 = vpop.f32.mrb[0].mxu0
      %1042 = vmatprep.mubr.f32.mxu0 0.0
      %1043 = vmatmul.mubr.f32.gmra.mrb[0].mxu0 %v908
      %v1044 = vpop.f32.mrb[0].mxu0
      %v1045 = vadd.f32 0.0, %v1044
      %v1046 = vpop.f32.mrb[0].mxu0
      %1047 = vmatprep.mubr.f32.mxu0 0.0
      %1048 = vmatmul.mubr.f32.gmra.mrb[0].mxu0 %v910
      %v1049 = vpop.f32.mrb[0].mxu0
      %v1050 = vadd.f32 0.0, %v1049
      %v1051 = vpop.f32.mrb[0].mxu0
      %1052 = vmatprep.mubr.f32.mxu0 0.0
      %1053 = vmatmul.mubr.f32.gmra.mrb[0].mxu0 %v912
      %v1054 = vpop.f32.mrb[0].mxu0
      %v1055 = vadd.f32 0.0, %v1054
      %v1056 = vpop.f32.mrb[0].mxu0
      %1057 = vmatprep.mubr.f32.mxu0 0.0
      %1058 = vmatmul.mubr.f32.gmra.mrb[0].mxu0 %v914
      %v1059 = vpop.f32.mrb[0].mxu0
      %v1060 = vadd.f32 0.0, %v1059
      %v1061 = vpop.f32.mrb[0].mxu0
      %1062 = vmatprep.mubr.f32.mxu0 0.0
      %1063 = vmatmul.mubr.f32.gmra.mrb[0].mxu0 %v916
      %v1064 = vpop.f32.mrb[0].mxu0
      %v1065 = vadd.f32 0.0, %v1064
      %v1066 = vpop.f32.mrb[0].mxu0
      %1067 = vmatprep.mubr.f32.mxu0 0.0
      %1068 = vmatmul.mubr.f32.gmra.mrb[0].mxu0 %v918
      %v1069 = vpop.f32.mrb[0].mxu0
      %v1070 = vadd.f32 0.0, %v1069
      %v1071 = vpop.f32.mrb[0].mxu0
      %1072 = vmatprep.mubr.f32.mxu0 0.0
      %1073 = vmatmul.mubr.f32.gmra.mrb[0].mxu0 %v920
      %v1074 = vpop.f32.mrb[0].mxu0
      %v1075 = vadd.f32 0.0, %v1074
      %v1076 = vpop.f32.mrb[0].mxu0
      %1077 = vmatprep.mubr.f32.mxu0 0.0
      %1078 = vmatmul.mubr.f32.gmra.mrb[0].mxu0 %v922
      %v1079 = vpop.f32.mrb[0].mxu0
      %v1080 = vadd.f32 0.0, %v1079
      %v1081 = vpop.f32.mrb[0].mxu0
      %1082 = vmatprep.mubr.f32.mxu0 0.0
      %1083 = vmatmul.mubr.f32.gmra.mrb[0].mxu0 %v924
      %v1084 = vpop.f32.mrb[0].mxu0
      %v1085 = vadd.f32 0.0, %v1084
      %v1086 = vpop.f32.mrb[0].mxu0
      %1087 = vmatprep.mubr.f32.mxu0 0.0
      %1088 = vmatmul.mubr.f32.gmra.mrb[0].mxu0 %v926
      %v1089 = vpop.f32.mrb[0].mxu0
      %v1090 = vadd.f32 0.0, %v1089
      %v1091 = vpop.f32.mrb[0].mxu0
      %1092 = vmatprep.mubr.f32.mxu0 0.0
      %1093 = vmatmul.mubr.f32.gmra.mrb[0].mxu0 %v928
      %v1094 = vpop.f32.mrb[0].mxu0
      %v1095 = vadd.f32 0.0, %v1094
      %v1096 = vpop.f32.mrb[0].mxu0
      %1097 = vmatprep.mubr.f32.mxu0 0.0
      %1098 = vmatmul.mubr.f32.gmra.mrb[0].mxu0 %v930
      %v1099 = vpop.f32.mrb[0].mxu0
      %v1100 = vadd.f32 0.0, %v1099
      %v1101 = vpop.f32.mrb[0].mxu0
      %1102 = vmatprep.mubr.f32.mxu0 0.0
      %1103 = vmatmul.mubr.f32.gmra.mrb[0].mxu0 %v932
      %v1104 = vpop.f32.mrb[0].mxu0
      %v1105 = vadd.f32 0.0, %v1104
      %v1106 = vpop.f32.mrb[0].mxu0
      %1107 = vmatprep.mubr.f32.mxu0 0.0
      %1108 = vmatmul.mubr.f32.gmra.mrb[0].mxu0 %v934
      %v1109 = vpop.f32.mrb[0].mxu0
      %v1110 = vadd.f32 0.0, %v1109
      %v1111 = vpop.f32.mrb[0].mxu0
      %1112 = vdwg.mxu0
      %1113 = vrot.lane.b32.xlu0 %v553, 64
      %v1114 = vpop.permute.xlu0 %1113
      %1115 = vrot.lane.b32.xlu0 %v559, 64
      %v1116 = vpop.permute.xlu0 %1115
      %1117 = vrot.lane.b32.xlu0 %v565, 64
      %v1118 = vpop.permute.xlu0 %1117
      %1119 = vrot.lane.b32.xlu0 %v571, 64
      %v1120 = vpop.permute.xlu0 %1119
      %1121 = vrot.lane.b32.xlu0 %v577, 64
      %v1122 = vpop.permute.xlu0 %1121
      %1123 = vrot.lane.b32.xlu0 %v583, 64
      %v1124 = vpop.permute.xlu0 %1123
      %1125 = vrot.lane.b32.xlu0 %v589, 64
      %v1126 = vpop.permute.xlu0 %1125
      %1127 = vrot.lane.b32.xlu0 %v595, 64
      %v1128 = vpop.permute.xlu0 %1127
      %1129 = vrot.lane.b32.xlu0 %v601, 64
      %v1130 = vpop.permute.xlu0 %1129
      %1131 = vrot.lane.b32.xlu0 %v607, 64
      %v1132 = vpop.permute.xlu0 %1131
      %1133 = vrot.lane.b32.xlu0 %v613, 64
      %v1134 = vpop.permute.xlu0 %1133
      %1135 = vrot.lane.b32.xlu0 %v619, 64
      %v1136 = vpop.permute.xlu0 %1135
      %1137 = vrot.lane.b32.xlu0 %v625, 64
      %v1138 = vpop.permute.xlu0 %1137
      %1139 = vrot.lane.b32.xlu0 %v631, 64
      %v1140 = vpop.permute.xlu0 %1139
      %1141 = vrot.lane.b32.xlu0 %v637, 64
      %v1142 = vpop.permute.xlu0 %1141
      %1143 = vrot.lane.b32.xlu0 %v643, 64
      %v1144 = vpop.permute.xlu0 %1143
      %v1145 = vsel %vm903, %v553, 0
      %v1147 = vsel %vm903, %v559, 0
      %v1149 = vsel %vm903, %v565, 0
      %v1151 = vsel %vm903, %v571, 0
      %v1153 = vsel %vm903, %v577, 0
      %v1155 = vsel %vm903, %v583, 0
      %v1157 = vsel %vm903, %v589, 0
      %v1159 = vsel %vm903, %v595, 0
      %v1161 = vsel %vm903, %v601, 0
      %v1163 = vsel %vm903, %v607, 0
      %v1165 = vsel %vm903, %v613, 0
      %v1167 = vsel %vm903, %v619, 0
      %v1169 = vsel %vm903, %v625, 0
      %v1171 = vsel %vm903, %v631, 0
      %v1173 = vsel %vm903, %v637, 0
      %v1175 = vsel %vm903, %v643, 0
      %v1177 = vsel %vm903, %v1114, 0
      %v1179 = vsel %vm903, %v1116, 0
      %v1181 = vsel %vm903, %v1118, 0
      %v1183 = vsel %vm903, %v1120, 0
      %v1185 = vsel %vm903, %v1122, 0
      %v1187 = vsel %vm903, %v1124, 0
      %v1189 = vsel %vm903, %v1126, 0
      %v1191 = vsel %vm903, %v1128, 0
      %v1193 = vsel %vm903, %v1130, 0
      %v1195 = vsel %vm903, %v1132, 0
      %v1197 = vsel %vm903, %v1134, 0
      %v1199 = vsel %vm903, %v1136, 0
      %v1201 = vsel %vm903, %v1138, 0
      %v1203 = vsel %vm903, %v1140, 0
      %v1205 = vsel %vm903, %v1142, 0
      %v1207 = vsel %vm903, %v1144, 0
      %1209 = vmatprep.subr.mxu0 0.0
      %1210 = vmatpush1.xpose.msra.mxu0 %v1177
      %1211 = vmatprep.subr.mxu0 0.0
      %1212 = vmatpush1.xpose.msra.mxu0 %v1179
      %1213 = vmatprep.subr.mxu0 0.0
      %1214 = vmatpush1.xpose.msra.mxu0 %v1181
      %1215 = vmatprep.subr.mxu0 0.0
      %1216 = vmatpush1.xpose.msra.mxu0 %v1183
      %1217 = vmatprep.subr.mxu0 0.0
      %1218 = vmatpush1.xpose.msra.mxu0 %v1185
      %1219 = vmatprep.subr.mxu0 0.0
      %1220 = vmatpush1.xpose.msra.mxu0 %v1187
      %1221 = vmatprep.subr.mxu0 0.0
      %1222 = vmatpush1.xpose.msra.mxu0 %v1189
      %1223 = vmatprep.subr.mxu0 0.0
      %1224 = vmatpush1.xpose.msra.mxu0 %v1191
      %1225 = vmatprep.subr.mxu0 0.0
      %1226 = vmatpush1.xpose.msra.mxu0 %v1193
      %1227 = vmatprep.subr.mxu0 0.0
      %1228 = vmatpush1.xpose.msra.mxu0 %v1195
      %1229 = vmatprep.subr.mxu0 0.0
      %1230 = vmatpush1.xpose.msra.mxu0 %v1197
      %1231 = vmatprep.subr.mxu0 0.0
      %1232 = vmatpush1.xpose.msra.mxu0 %v1199
      %1233 = vmatprep.subr.mxu0 0.0
      %1234 = vmatpush1.xpose.msra.mxu0 %v1201
      %1235 = vmatprep.subr.mxu0 0.0
      %1236 = vmatpush1.xpose.msra.mxu0 %v1203
      %1237 = vmatprep.subr.mxu0 0.0
      %1238 = vmatpush1.xpose.msra.mxu0 %v1205
      %1239 = vmatprep.subr.mxu0 0.0
      %1240 = vmatpush1.xpose.msra.mxu0 %v1207
      %1241 = vmatprep.subr.mxu0 0.0
      %1242 = vmatpush1.xpose.msra.mxu0 0.0
      %1243 = vmatprep.subr.mxu0 0.0
      %1244 = vmatpush1.xpose.msra.mxu0 0.0
      %1245 = vmatprep.subr.mxu0 0.0
      %1246 = vmatpush1.xpose.msra.mxu0 0.0
      %1247 = vmatprep.subr.mxu0 0.0
      %1248 = vmatpush1.xpose.msra.mxu0 0.0
      %1249 = vmatprep.subr.mxu0 0.0
      %1250 = vmatpush1.xpose.msra.mxu0 0.0
      %1251 = vmatprep.subr.mxu0 0.0
      %1252 = vmatpush1.xpose.msra.mxu0 0.0
      %1253 = vmatprep.subr.mxu0 0.0
      %1254 = vmatpush1.xpose.msra.mxu0 0.0
      %1255 = vmatprep.subr.mxu0 0.0
      %1256 = vmatpush1.xpose.msra.mxu0 0.0
      %1257 = vmatprep.subr.mxu0 0.0
      %1258 = vmatpush1.xpose.msra.mxu0 0.0
      %1259 = vmatprep.subr.mxu0 0.0
      %1260 = vmatpush1.xpose.msra.mxu0 0.0
      %1261 = vmatprep.subr.mxu0 0.0
      %1262 = vmatpush1.xpose.msra.mxu0 0.0
      %1263 = vmatprep.subr.mxu0 0.0
      %1264 = vmatpush1.xpose.msra.mxu0 0.0
      %1265 = vmatprep.subr.mxu0 0.0
      %1266 = vmatpush1.xpose.msra.mxu0 0.0
      %1267 = vmatprep.subr.mxu0 0.0
      %1268 = vmatpush1.xpose.msra.mxu0 0.0
      %1269 = vmatprep.subr.mxu0 0.0
      %1270 = vmatpush1.xpose.msra.mxu0 0.0
      %1271 = vmatprep.subr.mxu0 0.0
      %1272 = vmatpush1.xpose.msra.mxu0 0.0
      %1273 = vmatprep.mubr.f32.mxu0 0.0
      %1274 = vmatmul.mubr.f32.gmra.mrb[0].mxu0 %v1145
      %v1275 = vpop.f32.mrb[0].mxu0
      %v1276 = vadd.f32 0.0, %v1275
      %v1277 = vpop.f32.mrb[0].mxu0
      %1278 = vmatprep.mubr.f32.mxu0 0.0
      %1279 = vmatmul.mubr.f32.gmra.mrb[0].mxu0 %v1147
      %v1280 = vpop.f32.mrb[0].mxu0
      %v1281 = vadd.f32 0.0, %v1280
      %v1282 = vpop.f32.mrb[0].mxu0
      %1283 = vmatprep.mubr.f32.mxu0 0.0
      %1284 = vmatmul.mubr.f32.gmra.mrb[0].mxu0 %v1149
      %v1285 = vpop.f32.mrb[0].mxu0
      %v1286 = vadd.f32 0.0, %v1285
      %v1287 = vpop.f32.mrb[0].mxu0
      %1288 = vmatprep.mubr.f32.mxu0 0.0
      %1289 = vmatmul.mubr.f32.gmra.mrb[0].mxu0 %v1151
      %v1290 = vpop.f32.mrb[0].mxu0
      %v1291 = vadd.f32 0.0, %v1290
      %v1292 = vpop.f32.mrb[0].mxu0
      %1293 = vmatprep.mubr.f32.mxu0 0.0
      %1294 = vmatmul.mubr.f32.gmra.mrb[0].mxu0 %v1153
      %v1295 = vpop.f32.mrb[0].mxu0
      %v1296 = vadd.f32 0.0, %v1295
      %v1297 = vpop.f32.mrb[0].mxu0
      %1298 = vmatprep.mubr.f32.mxu0 0.0
      %1299 = vmatmul.mubr.f32.gmra.mrb[0].mxu0 %v1155
      %v1300 = vpop.f32.mrb[0].mxu0
      %v1301 = vadd.f32 0.0, %v1300
      %v1302 = vpop.f32.mrb[0].mxu0
      %1303 = vmatprep.mubr.f32.mxu0 0.0
      %1304 = vmatmul.mubr.f32.gmra.mrb[0].mxu0 %v1157
      %v1305 = vpop.f32.mrb[0].mxu0
      %v1306 = vadd.f32 0.0, %v1305
      %v1307 = vpop.f32.mrb[0].mxu0
      %1308 = vmatprep.mubr.f32.mxu0 0.0
      %1309 = vmatmul.mubr.f32.gmra.mrb[0].mxu0 %v1159
      %v1310 = vpop.f32.mrb[0].mxu0
      %v1311 = vadd.f32 0.0, %v1310
      %v1312 = vpop.f32.mrb[0].mxu0
      %1313 = vmatprep.mubr.f32.mxu0 0.0
      %1314 = vmatmul.mubr.f32.gmra.mrb[0].mxu0 %v1161
      %v1315 = vpop.f32.mrb[0].mxu0
      %v1316 = vadd.f32 0.0, %v1315
      %v1317 = vpop.f32.mrb[0].mxu0
      %1318 = vmatprep.mubr.f32.mxu0 0.0
      %1319 = vmatmul.mubr.f32.gmra.mrb[0].mxu0 %v1163
      %v1320 = vpop.f32.mrb[0].mxu0
      %v1321 = vadd.f32 0.0, %v1320
      %v1322 = vpop.f32.mrb[0].mxu0
      %1323 = vmatprep.mubr.f32.mxu0 0.0
      %1324 = vmatmul.mubr.f32.gmra.mrb[0].mxu0 %v1165
      %v1325 = vpop.f32.mrb[0].mxu0
      %v1326 = vadd.f32 0.0, %v1325
      %v1327 = vpop.f32.mrb[0].mxu0
      %1328 = vmatprep.mubr.f32.mxu0 0.0
      %1329 = vmatmul.mubr.f32.gmra.mrb[0].mxu0 %v1167
      %v1330 = vpop.f32.mrb[0].mxu0
      %v1331 = vadd.f32 0.0, %v1330
      %v1332 = vpop.f32.mrb[0].mxu0
      %1333 = vmatprep.mubr.f32.mxu0 0.0
      %1334 = vmatmul.mubr.f32.gmra.mrb[0].mxu0 %v1169
      %v1335 = vpop.f32.mrb[0].mxu0
      %v1336 = vadd.f32 0.0, %v1335
      %v1337 = vpop.f32.mrb[0].mxu0
      %1338 = vmatprep.mubr.f32.mxu0 0.0
      %1339 = vmatmul.mubr.f32.gmra.mrb[0].mxu0 %v1171
      %v1340 = vpop.f32.mrb[0].mxu0
      %v1341 = vadd.f32 0.0, %v1340
      %v1342 = vpop.f32.mrb[0].mxu0
      %1343 = vmatprep.mubr.f32.mxu0 0.0
      %1344 = vmatmul.mubr.f32.gmra.mrb[0].mxu0 %v1173
      %v1345 = vpop.f32.mrb[0].mxu0
      %v1346 = vadd.f32 0.0, %v1345
      %v1347 = vpop.f32.mrb[0].mxu0
      %1348 = vmatprep.mubr.f32.mxu0 0.0
      %1349 = vmatmul.mubr.f32.gmra.mrb[0].mxu0 %v1175
      %v1350 = vpop.f32.mrb[0].mxu0
      %v1351 = vadd.f32 0.0, %v1350
      %v1352 = vpop.f32.mrb[0].mxu0
      %1353 = vdwg.mxu0
      %1354 = vrot.lane.b32.xlu0 %v680, 64
      %v1355 = vpop.permute.xlu0 %1354
      %1356 = vrot.lane.b32.xlu0 %v682, 64
      %v1357 = vpop.permute.xlu0 %1356
      %1358 = vrot.lane.b32.xlu0 %v684, 64
      %v1359 = vpop.permute.xlu0 %1358
      %1360 = vrot.lane.b32.xlu0 %v686, 64
      %v1361 = vpop.permute.xlu0 %1360
      %1362 = vrot.lane.b32.xlu0 %v688, 64
      %v1363 = vpop.permute.xlu0 %1362
      %1364 = vrot.lane.b32.xlu0 %v690, 64
      %v1365 = vpop.permute.xlu0 %1364
      %1366 = vrot.lane.b32.xlu0 %v692, 64
      %v1367 = vpop.permute.xlu0 %1366
      %1368 = vrot.lane.b32.xlu0 %v694, 64
      %v1369 = vpop.permute.xlu0 %1368
      %1370 = vrot.lane.b32.xlu0 %v696, 64
      %v1371 = vpop.permute.xlu0 %1370
      %1372 = vrot.lane.b32.xlu0 %v698, 64
      %v1373 = vpop.permute.xlu0 %1372
      %1374 = vrot.lane.b32.xlu0 %v700, 64
      %v1375 = vpop.permute.xlu0 %1374
      %1376 = vrot.lane.b32.xlu0 %v702, 64
      %v1377 = vpop.permute.xlu0 %1376
      %1378 = vrot.lane.b32.xlu0 %v704, 64
      %v1379 = vpop.permute.xlu0 %1378
      %1380 = vrot.lane.b32.xlu0 %v706, 64
      %v1381 = vpop.permute.xlu0 %1380
      %1382 = vrot.lane.b32.xlu0 %v708, 64
      %v1383 = vpop.permute.xlu0 %1382
      %1384 = vrot.lane.b32.xlu0 %v710, 64
      %v1385 = vpop.permute.xlu0 %1384
      %v1386 = vsel %vm903, %v680, 0
      %v1388 = vsel %vm903, %v682, 0
      %v1390 = vsel %vm903, %v684, 0
      %v1392 = vsel %vm903, %v686, 0
      %v1394 = vsel %vm903, %v688, 0
      %v1396 = vsel %vm903, %v690, 0
      %v1398 = vsel %vm903, %v692, 0
      %v1400 = vsel %vm903, %v694, 0
      %v1402 = vsel %vm903, %v696, 0
      %v1404 = vsel %vm903, %v698, 0
      %v1406 = vsel %vm903, %v700, 0
      %v1408 = vsel %vm903, %v702, 0
      %v1410 = vsel %vm903, %v704, 0
      %v1412 = vsel %vm903, %v706, 0
      %v1414 = vsel %vm903, %v708, 0
      %v1416 = vsel %vm903, %v710, 0
      %v1418 = vsel %vm903, %v1355, 0
      %v1420 = vsel %vm903, %v1357, 0
      %v1422 = vsel %vm903, %v1359, 0
      %v1424 = vsel %vm903, %v1361, 0
      %v1426 = vsel %vm903, %v1363, 0
      %v1428 = vsel %vm903, %v1365, 0
      %v1430 = vsel %vm903, %v1367, 0
      %v1432 = vsel %vm903, %v1369, 0
      %v1434 = vsel %vm903, %v1371, 0
      %v1436 = vsel %vm903, %v1373, 0
      %v1438 = vsel %vm903, %v1375, 0
      %v1440 = vsel %vm903, %v1377, 0
      %v1442 = vsel %vm903, %v1379, 0
      %v1444 = vsel %vm903, %v1381, 0
      %v1446 = vsel %vm903, %v1383, 0
      %v1448 = vsel %vm903, %v1385, 0
      %1450 = vmatprep.subr.mxu0 0.0
      %1451 = vmatpush1.xpose.msra.mxu0 %v1418
      %1452 = vmatprep.subr.mxu0 0.0
      %1453 = vmatpush1.xpose.msra.mxu0 %v1420
      %1454 = vmatprep.subr.mxu0 0.0
      %1455 = vmatpush1.xpose.msra.mxu0 %v1422
      %1456 = vmatprep.subr.mxu0 0.0
      %1457 = vmatpush1.xpose.msra.mxu0 %v1424
      %1458 = vmatprep.subr.mxu0 0.0
      %1459 = vmatpush1.xpose.msra.mxu0 %v1426
      %1460 = vmatprep.subr.mxu0 0.0
      %1461 = vmatpush1.xpose.msra.mxu0 %v1428
      %1462 = vmatprep.subr.mxu0 0.0
      %1463 = vmatpush1.xpose.msra.mxu0 %v1430
      %1464 = vmatprep.subr.mxu0 0.0
      %1465 = vmatpush1.xpose.msra.mxu0 %v1432
      %1466 = vmatprep.subr.mxu0 0.0
      %1467 = vmatpush1.xpose.msra.mxu0 %v1434
      %1468 = vmatprep.subr.mxu0 0.0
      %1469 = vmatpush1.xpose.msra.mxu0 %v1436
      %1470 = vmatprep.subr.mxu0 0.0
      %1471 = vmatpush1.xpose.msra.mxu0 %v1438
      %1472 = vmatprep.subr.mxu0 0.0
      %1473 = vmatpush1.xpose.msra.mxu0 %v1440
      %1474 = vmatprep.subr.mxu0 0.0
      %1475 = vmatpush1.xpose.msra.mxu0 %v1442
      %1476 = vmatprep.subr.mxu0 0.0
      %1477 = vmatpush1.xpose.msra.mxu0 %v1444
      %1478 = vmatprep.subr.mxu0 0.0
      %1479 = vmatpush1.xpose.msra.mxu0 %v1446
      %1480 = vmatprep.subr.mxu0 0.0
      %1481 = vmatpush1.xpose.msra.mxu0 %v1448
      %1482 = vmatprep.subr.mxu0 0.0
      %1483 = vmatpush1.xpose.msra.mxu0 0.0
      %1484 = vmatprep.subr.mxu0 0.0
      %1485 = vmatpush1.xpose.msra.mxu0 0.0
      %1486 = vmatprep.subr.mxu0 0.0
      %1487 = vmatpush1.xpose.msra.mxu0 0.0
      %1488 = vmatprep.subr.mxu0 0.0
      %1489 = vmatpush1.xpose.msra.mxu0 0.0
      %1490 = vmatprep.subr.mxu0 0.0
      %1491 = vmatpush1.xpose.msra.mxu0 0.0
      %1492 = vmatprep.subr.mxu0 0.0
      %1493 = vmatpush1.xpose.msra.mxu0 0.0
      %1494 = vmatprep.subr.mxu0 0.0
      %1495 = vmatpush1.xpose.msra.mxu0 0.0
      %1496 = vmatprep.subr.mxu0 0.0
      %1497 = vmatpush1.xpose.msra.mxu0 0.0
      %1498 = vmatprep.subr.mxu0 0.0
      %1499 = vmatpush1.xpose.msra.mxu0 0.0
      %1500 = vmatprep.subr.mxu0 0.0
      %1501 = vmatpush1.xpose.msra.mxu0 0.0
      %1502 = vmatprep.subr.mxu0 0.0
      %1503 = vmatpush1.xpose.msra.mxu0 0.0
      %1504 = vmatprep.subr.mxu0 0.0
      %1505 = vmatpush1.xpose.msra.mxu0 0.0
      %1506 = vmatprep.subr.mxu0 0.0
      %1507 = vmatpush1.xpose.msra.mxu0 0.0
      %1508 = vmatprep.subr.mxu0 0.0
      %1509 = vmatpush1.xpose.msra.mxu0 0.0
      %1510 = vmatprep.subr.mxu0 0.0
      %1511 = vmatpush1.xpose.msra.mxu0 0.0
      %1512 = vmatprep.subr.mxu0 0.0
      %1513 = vmatpush1.xpose.msra.mxu0 0.0
      %1514 = vmatprep.mubr.f32.mxu0 0.0
      %1515 = vmatmul.mubr.f32.gmra.mrb[0].mxu0 %v1386
      %v1516 = vpop.f32.mrb[0].mxu0
      %v1517 = vadd.f32 0.0, %v1516
      %v1518 = vpop.f32.mrb[0].mxu0
      %1519 = vmatprep.mubr.f32.mxu0 0.0
      %1520 = vmatmul.mubr.f32.gmra.mrb[0].mxu0 %v1388
      %v1521 = vpop.f32.mrb[0].mxu0
      %v1522 = vadd.f32 0.0, %v1521
      %v1523 = vpop.f32.mrb[0].mxu0
      %1524 = vmatprep.mubr.f32.mxu0 0.0
      %1525 = vmatmul.mubr.f32.gmra.mrb[0].mxu0 %v1390
      %v1526 = vpop.f32.mrb[0].mxu0
      %v1527 = vadd.f32 0.0, %v1526
      %v1528 = vpop.f32.mrb[0].mxu0
      %1529 = vmatprep.mubr.f32.mxu0 0.0
      %1530 = vmatmul.mubr.f32.gmra.mrb[0].mxu0 %v1392
      %v1531 = vpop.f32.mrb[0].mxu0
      %v1532 = vadd.f32 0.0, %v1531
      %v1533 = vpop.f32.mrb[0].mxu0
      %1534 = vmatprep.mubr.f32.mxu0 0.0
      %1535 = vmatmul.mubr.f32.gmra.mrb[0].mxu0 %v1394
      %v1536 = vpop.f32.mrb[0].mxu0
      %v1537 = vadd.f32 0.0, %v1536
      %v1538 = vpop.f32.mrb[0].mxu0
      %1539 = vmatprep.mubr.f32.mxu0 0.0
      %1540 = vmatmul.mubr.f32.gmra.mrb[0].mxu0 %v1396
      %v1541 = vpop.f32.mrb[0].mxu0
      %v1542 = vadd.f32 0.0, %v1541
      %v1543 = vpop.f32.mrb[0].mxu0
      %1544 = vmatprep.mubr.f32.mxu0 0.0
      %1545 = vmatmul.mubr.f32.gmra.mrb[0].mxu0 %v1398
      %v1546 = vpop.f32.mrb[0].mxu0
      %v1547 = vadd.f32 0.0, %v1546
      %v1548 = vpop.f32.mrb[0].mxu0
      %1549 = vmatprep.mubr.f32.mxu0 0.0
      %1550 = vmatmul.mubr.f32.gmra.mrb[0].mxu0 %v1400
      %v1551 = vpop.f32.mrb[0].mxu0
      %v1552 = vadd.f32 0.0, %v1551
      %v1553 = vpop.f32.mrb[0].mxu0
      %1554 = vmatprep.mubr.f32.mxu0 0.0
      %1555 = vmatmul.mubr.f32.gmra.mrb[0].mxu0 %v1402
      %v1556 = vpop.f32.mrb[0].mxu0
      %v1557 = vadd.f32 0.0, %v1556
      %v1558 = vpop.f32.mrb[0].mxu0
      %1559 = vmatprep.mubr.f32.mxu0 0.0
      %1560 = vmatmul.mubr.f32.gmra.mrb[0].mxu0 %v1404
      %v1561 = vpop.f32.mrb[0].mxu0
      %v1562 = vadd.f32 0.0, %v1561
      %v1563 = vpop.f32.mrb[0].mxu0
      %1564 = vmatprep.mubr.f32.mxu0 0.0
      %1565 = vmatmul.mubr.f32.gmra.mrb[0].mxu0 %v1406
      %v1566 = vpop.f32.mrb[0].mxu0
      %v1567 = vadd.f32 0.0, %v1566
      %v1568 = vpop.f32.mrb[0].mxu0
      %1569 = vmatprep.mubr.f32.mxu0 0.0
      %1570 = vmatmul.mubr.f32.gmra.mrb[0].mxu0 %v1408
      %v1571 = vpop.f32.mrb[0].mxu0
      %v1572 = vadd.f32 0.0, %v1571
      %v1573 = vpop.f32.mrb[0].mxu0
      %1574 = vmatprep.mubr.f32.mxu0 0.0
      %1575 = vmatmul.mubr.f32.gmra.mrb[0].mxu0 %v1410
      %v1576 = vpop.f32.mrb[0].mxu0
      %v1577 = vadd.f32 0.0, %v1576
      %v1578 = vpop.f32.mrb[0].mxu0
      %1579 = vmatprep.mubr.f32.mxu0 0.0
      %1580 = vmatmul.mubr.f32.gmra.mrb[0].mxu0 %v1412
      %v1581 = vpop.f32.mrb[0].mxu0
      %v1582 = vadd.f32 0.0, %v1581
      %v1583 = vpop.f32.mrb[0].mxu0
      %1584 = vmatprep.mubr.f32.mxu0 0.0
      %1585 = vmatmul.mubr.f32.gmra.mrb[0].mxu0 %v1414
      %v1586 = vpop.f32.mrb[0].mxu0
      %v1587 = vadd.f32 0.0, %v1586
      %v1588 = vpop.f32.mrb[0].mxu0
      %1589 = vmatprep.mubr.f32.mxu0 0.0
      %1590 = vmatmul.mubr.f32.gmra.mrb[0].mxu0 %v1416
      %v1591 = vpop.f32.mrb[0].mxu0
      %v1592 = vadd.f32 0.0, %v1591
      %v1593 = vpop.f32.mrb[0].mxu0
      %1594 = vdwg.mxu0
      %1595 = vrot.lane.b32.xlu0 %v712, 64
      %v1596 = vpop.permute.xlu0 %1595
      %1597 = vrot.lane.b32.xlu0 %v714, 64
      %v1598 = vpop.permute.xlu0 %1597
      %1599 = vrot.lane.b32.xlu0 %v716, 64
      %v1600 = vpop.permute.xlu0 %1599
      %1601 = vrot.lane.b32.xlu0 %v718, 64
      %v1602 = vpop.permute.xlu0 %1601
      %1603 = vrot.lane.b32.xlu0 %v720, 64
      %v1604 = vpop.permute.xlu0 %1603
      %1605 = vrot.lane.b32.xlu0 %v722, 64
      %v1606 = vpop.permute.xlu0 %1605
      %1607 = vrot.lane.b32.xlu0 %v724, 64
      %v1608 = vpop.permute.xlu0 %1607
      %1609 = vrot.lane.b32.xlu0 %v726, 64
      %v1610 = vpop.permute.xlu0 %1609
      %1611 = vrot.lane.b32.xlu0 %v728, 64
      %v1612 = vpop.permute.xlu0 %1611
      %1613 = vrot.lane.b32.xlu0 %v730, 64
      %v1614 = vpop.permute.xlu0 %1613
      %1615 = vrot.lane.b32.xlu0 %v732, 64
      %v1616 = vpop.permute.xlu0 %1615
      %1617 = vrot.lane.b32.xlu0 %v734, 64
      %v1618 = vpop.permute.xlu0 %1617
      %1619 = vrot.lane.b32.xlu0 %v736, 64
      %v1620 = vpop.permute.xlu0 %1619
      %1621 = vrot.lane.b32.xlu0 %v738, 64
      %v1622 = vpop.permute.xlu0 %1621
      %1623 = vrot.lane.b32.xlu0 %v740, 64
      %v1624 = vpop.permute.xlu0 %1623
      %1625 = vrot.lane.b32.xlu0 %v742, 64
      %v1626 = vpop.permute.xlu0 %1625
      %v1627 = vsel %vm903, %v712, 0
      %v1629 = vsel %vm903, %v714, 0
      %v1631 = vsel %vm903, %v716, 0
      %v1633 = vsel %vm903, %v718, 0
      %v1635 = vsel %vm903, %v720, 0
      %v1637 = vsel %vm903, %v722, 0
      %v1639 = vsel %vm903, %v724, 0
      %v1641 = vsel %vm903, %v726, 0
      %v1643 = vsel %vm903, %v728, 0
      %v1645 = vsel %vm903, %v730, 0
      %v1647 = vsel %vm903, %v732, 0
      %v1649 = vsel %vm903, %v734, 0
      %v1651 = vsel %vm903, %v736, 0
      %v1653 = vsel %vm903, %v738, 0
      %v1655 = vsel %vm903, %v740, 0
      %v1657 = vsel %vm903, %v742, 0
      %v1659 = vsel %vm903, %v1596, 0
      %v1661 = vsel %vm903, %v1598, 0
      %v1663 = vsel %vm903, %v1600, 0
      %v1665 = vsel %vm903, %v1602, 0
      %v1667 = vsel %vm903, %v1604, 0
      %v1669 = vsel %vm903, %v1606, 0
      %v1671 = vsel %vm903, %v1608, 0
      %v1673 = vsel %vm903, %v1610, 0
      %v1675 = vsel %vm903, %v1612, 0
      %v1677 = vsel %vm903, %v1614, 0
      %v1679 = vsel %vm903, %v1616, 0
      %v1681 = vsel %vm903, %v1618, 0
      %v1683 = vsel %vm903, %v1620, 0
      %v1685 = vsel %vm903, %v1622, 0
      %v1687 = vsel %vm903, %v1624, 0
      %v1689 = vsel %vm903, %v1626, 0
      %1691 = vmatprep.subr.mxu0 0.0
      %1692 = vmatpush1.xpose.msra.mxu0 %v1659
      %1693 = vmatprep.subr.mxu0 0.0
      %1694 = vmatpush1.xpose.msra.mxu0 %v1661
      %1695 = vmatprep.subr.mxu0 0.0
      %1696 = vmatpush1.xpose.msra.mxu0 %v1663
      %1697 = vmatprep.subr.mxu0 0.0
      %1698 = vmatpush1.xpose.msra.mxu0 %v1665
      %1699 = vmatprep.subr.mxu0 0.0
      %1700 = vmatpush1.xpose.msra.mxu0 %v1667
      %1701 = vmatprep.subr.mxu0 0.0
      %1702 = vmatpush1.xpose.msra.mxu0 %v1669
      %1703 = vmatprep.subr.mxu0 0.0
      %1704 = vmatpush1.xpose.msra.mxu0 %v1671
      %1705 = vmatprep.subr.mxu0 0.0
      %1706 = vmatpush1.xpose.msra.mxu0 %v1673
      %1707 = vmatprep.subr.mxu0 0.0
      %1708 = vmatpush1.xpose.msra.mxu0 %v1675
      %1709 = vmatprep.subr.mxu0 0.0
      %1710 = vmatpush1.xpose.msra.mxu0 %v1677
      %1711 = vmatprep.subr.mxu0 0.0
      %1712 = vmatpush1.xpose.msra.mxu0 %v1679
      %1713 = vmatprep.subr.mxu0 0.0
      %1714 = vmatpush1.xpose.msra.mxu0 %v1681
      %1715 = vmatprep.subr.mxu0 0.0
      %1716 = vmatpush1.xpose.msra.mxu0 %v1683
      %1717 = vmatprep.subr.mxu0 0.0
      %1718 = vmatpush1.xpose.msra.mxu0 %v1685
      %1719 = vmatprep.subr.mxu0 0.0
      %1720 = vmatpush1.xpose.msra.mxu0 %v1687
      %1721 = vmatprep.subr.mxu0 0.0
      %1722 = vmatpush1.xpose.msra.mxu0 %v1689
      %1723 = vmatprep.subr.mxu0 0.0
      %1724 = vmatpush1.xpose.msra.mxu0 0.0
      %1725 = vmatprep.subr.mxu0 0.0
      %1726 = vmatpush1.xpose.msra.mxu0 0.0
      %1727 = vmatprep.subr.mxu0 0.0
      %1728 = vmatpush1.xpose.msra.mxu0 0.0
      %1729 = vmatprep.subr.mxu0 0.0
      %1730 = vmatpush1.xpose.msra.mxu0 0.0
      %1731 = vmatprep.subr.mxu0 0.0
      %1732 = vmatpush1.xpose.msra.mxu0 0.0
      %1733 = vmatprep.subr.mxu0 0.0
      %1734 = vmatpush1.xpose.msra.mxu0 0.0
      %1735 = vmatprep.subr.mxu0 0.0
      %1736 = vmatpush1.xpose.msra.mxu0 0.0
      %1737 = vmatprep.subr.mxu0 0.0
      %1738 = vmatpush1.xpose.msra.mxu0 0.0
      %1739 = vmatprep.subr.mxu0 0.0
      %1740 = vmatpush1.xpose.msra.mxu0 0.0
      %1741 = vmatprep.subr.mxu0 0.0
      %1742 = vmatpush1.xpose.msra.mxu0 0.0
      %1743 = vmatprep.subr.mxu0 0.0
      %1744 = vmatpush1.xpose.msra.mxu0 0.0
      %1745 = vmatprep.subr.mxu0 0.0
      %1746 = vmatpush1.xpose.msra.mxu0 0.0
      %1747 = vmatprep.subr.mxu0 0.0
      %1748 = vmatpush1.xpose.msra.mxu0 0.0
      %1749 = vmatprep.subr.mxu0 0.0
      %1750 = vmatpush1.xpose.msra.mxu0 0.0
      %1751 = vmatprep.subr.mxu0 0.0
      %1752 = vmatpush1.xpose.msra.mxu0 0.0
      %1753 = vmatprep.subr.mxu0 0.0
      %1754 = vmatpush1.xpose.msra.mxu0 0.0
      %1755 = vmatprep.mubr.f32.mxu0 0.0
      %1756 = vmatmul.mubr.f32.gmra.mrb[0].mxu0 %v1627
      %v1757 = vpop.f32.mrb[0].mxu0
      %v1758 = vadd.f32 0.0, %v1757
      %v1759 = vpop.f32.mrb[0].mxu0
      %1760 = vmatprep.mubr.f32.mxu0 0.0
      %1761 = vmatmul.mubr.f32.gmra.mrb[0].mxu0 %v1629
      %v1762 = vpop.f32.mrb[0].mxu0
      %v1763 = vadd.f32 0.0, %v1762
      %v1764 = vpop.f32.mrb[0].mxu0
      %1765 = vmatprep.mubr.f32.mxu0 0.0
      %1766 = vmatmul.mubr.f32.gmra.mrb[0].mxu0 %v1631
      %v1767 = vpop.f32.mrb[0].mxu0
      %v1768 = vadd.f32 0.0, %v1767
      %v1769 = vpop.f32.mrb[0].mxu0
      %1770 = vmatprep.mubr.f32.mxu0 0.0
      %1771 = vmatmul.mubr.f32.gmra.mrb[0].mxu0 %v1633
      %v1772 = vpop.f32.mrb[0].mxu0
      %v1773 = vadd.f32 0.0, %v1772
      %v1774 = vpop.f32.mrb[0].mxu0
      %1775 = vmatprep.mubr.f32.mxu0 0.0
      %1776 = vmatmul.mubr.f32.gmra.mrb[0].mxu0 %v1635
      %v1777 = vpop.f32.mrb[0].mxu0
      %v1778 = vadd.f32 0.0, %v1777
      %v1779 = vpop.f32.mrb[0].mxu0
      %1780 = vmatprep.mubr.f32.mxu0 0.0
      %1781 = vmatmul.mubr.f32.gmra.mrb[0].mxu0 %v1637
      %v1782 = vpop.f32.mrb[0].mxu0
      %v1783 = vadd.f32 0.0, %v1782
      %v1784 = vpop.f32.mrb[0].mxu0
      %1785 = vmatprep.mubr.f32.mxu0 0.0
      %1786 = vmatmul.mubr.f32.gmra.mrb[0].mxu0 %v1639
      %v1787 = vpop.f32.mrb[0].mxu0
      %v1788 = vadd.f32 0.0, %v1787
      %v1789 = vpop.f32.mrb[0].mxu0
      %1790 = vmatprep.mubr.f32.mxu0 0.0
      %1791 = vmatmul.mubr.f32.gmra.mrb[0].mxu0 %v1641
      %v1792 = vpop.f32.mrb[0].mxu0
      %v1793 = vadd.f32 0.0, %v1792
      %v1794 = vpop.f32.mrb[0].mxu0
      %1795 = vmatprep.mubr.f32.mxu0 0.0
      %1796 = vmatmul.mubr.f32.gmra.mrb[0].mxu0 %v1643
      %v1797 = vpop.f32.mrb[0].mxu0
      %v1798 = vadd.f32 0.0, %v1797
      %v1799 = vpop.f32.mrb[0].mxu0
      %1800 = vmatprep.mubr.f32.mxu0 0.0
      %1801 = vmatmul.mubr.f32.gmra.mrb[0].mxu0 %v1645
      %v1802 = vpop.f32.mrb[0].mxu0
      %v1803 = vadd.f32 0.0, %v1802
      %v1804 = vpop.f32.mrb[0].mxu0
      %1805 = vmatprep.mubr.f32.mxu0 0.0
      %1806 = vmatmul.mubr.f32.gmra.mrb[0].mxu0 %v1647
      %v1807 = vpop.f32.mrb[0].mxu0
      %v1808 = vadd.f32 0.0, %v1807
      %v1809 = vpop.f32.mrb[0].mxu0
      %1810 = vmatprep.mubr.f32.mxu0 0.0
      %1811 = vmatmul.mubr.f32.gmra.mrb[0].mxu0 %v1649
      %v1812 = vpop.f32.mrb[0].mxu0
      %v1813 = vadd.f32 0.0, %v1812
      %v1814 = vpop.f32.mrb[0].mxu0
      %1815 = vmatprep.mubr.f32.mxu0 0.0
      %1816 = vmatmul.mubr.f32.gmra.mrb[0].mxu0 %v1651
      %v1817 = vpop.f32.mrb[0].mxu0
      %v1818 = vadd.f32 0.0, %v1817
      %v1819 = vpop.f32.mrb[0].mxu0
      %1820 = vmatprep.mubr.f32.mxu0 0.0
      %1821 = vmatmul.mubr.f32.gmra.mrb[0].mxu0 %v1653
      %v1822 = vpop.f32.mrb[0].mxu0
      %v1823 = vadd.f32 0.0, %v1822
      %v1824 = vpop.f32.mrb[0].mxu0
      %1825 = vmatprep.mubr.f32.mxu0 0.0
      %1826 = vmatmul.mubr.f32.gmra.mrb[0].mxu0 %v1655
      %v1827 = vpop.f32.mrb[0].mxu0
      %v1828 = vadd.f32 0.0, %v1827
      %v1829 = vpop.f32.mrb[0].mxu0
      %1830 = vmatprep.mubr.f32.mxu0 0.0
      %1831 = vmatmul.mubr.f32.gmra.mrb[0].mxu0 %v1657
      %v1832 = vpop.f32.mrb[0].mxu0
      %v1833 = vadd.f32 0.0, %v1832
      %v1834 = vpop.f32.mrb[0].mxu0
      %1835 = vdwg.mxu0
      %1836 = vmax.xlane.f32.xlu0 %v1035
      %v1837 = vpop.xlane.xlu0 %1836
      %1838 = vmax.xlane.f32.xlu0 %v1040
      %v1839 = vpop.xlane.xlu0 %1838
      %1840 = vmax.xlane.f32.xlu0 %v1045
      %v1841 = vpop.xlane.xlu0 %1840
      %1842 = vmax.xlane.f32.xlu0 %v1050
      %v1843 = vpop.xlane.xlu0 %1842
      %1844 = vmax.xlane.f32.xlu0 %v1055
      %v1845 = vpop.xlane.xlu0 %1844
      %1846 = vmax.xlane.f32.xlu0 %v1060
      %v1847 = vpop.xlane.xlu0 %1846
      %1848 = vmax.xlane.f32.xlu0 %v1065
      %v1849 = vpop.xlane.xlu0 %1848
      %1850 = vmax.xlane.f32.xlu0 %v1070
      %v1851 = vpop.xlane.xlu0 %1850
      %1852 = vmax.xlane.f32.xlu0 %v1075
      %v1853 = vpop.xlane.xlu0 %1852
      %1854 = vmax.xlane.f32.xlu0 %v1080
      %v1855 = vpop.xlane.xlu0 %1854
      %1856 = vmax.xlane.f32.xlu0 %v1085
      %v1857 = vpop.xlane.xlu0 %1856
      %1858 = vmax.xlane.f32.xlu0 %v1090
      %v1859 = vpop.xlane.xlu0 %1858
      %1860 = vmax.xlane.f32.xlu0 %v1095
      %v1861 = vpop.xlane.xlu0 %1860
      %1862 = vmax.xlane.f32.xlu0 %v1100
      %v1863 = vpop.xlane.xlu0 %1862
      %1864 = vmax.xlane.f32.xlu0 %v1105
      %v1865 = vpop.xlane.xlu0 %1864
      %1866 = vmax.xlane.f32.xlu0 %v1110
      %v1867 = vpop.xlane.xlu0 %1866
      %1868 = vmax.xlane.f32.xlu0 %v1276
      %v1869 = vpop.xlane.xlu0 %1868
      %1870 = vmax.xlane.f32.xlu0 %v1281
      %v1871 = vpop.xlane.xlu0 %1870
      %1872 = vmax.xlane.f32.xlu0 %v1286
      %v1873 = vpop.xlane.xlu0 %1872
      %1874 = vmax.xlane.f32.xlu0 %v1291
      %v1875 = vpop.xlane.xlu0 %1874
      %1876 = vmax.xlane.f32.xlu0 %v1296
      %v1877 = vpop.xlane.xlu0 %1876
      %1878 = vmax.xlane.f32.xlu0 %v1301
      %v1879 = vpop.xlane.xlu0 %1878
      %1880 = vmax.xlane.f32.xlu0 %v1306
      %v1881 = vpop.xlane.xlu0 %1880
      %1882 = vmax.xlane.f32.xlu0 %v1311
      %v1883 = vpop.xlane.xlu0 %1882
      %1884 = vmax.xlane.f32.xlu0 %v1316
      %v1885 = vpop.xlane.xlu0 %1884
      %1886 = vmax.xlane.f32.xlu0 %v1321
      %v1887 = vpop.xlane.xlu0 %1886
      %1888 = vmax.xlane.f32.xlu0 %v1326
      %v1889 = vpop.xlane.xlu0 %1888
      %1890 = vmax.xlane.f32.xlu0 %v1331
      %v1891 = vpop.xlane.xlu0 %1890
      %1892 = vmax.xlane.f32.xlu0 %v1336
      %v1893 = vpop.xlane.xlu0 %1892
      %1894 = vmax.xlane.f32.xlu0 %v1341
      %v1895 = vpop.xlane.xlu0 %1894
      %1896 = vmax.xlane.f32.xlu0 %v1346
      %v1897 = vpop.xlane.xlu0 %1896
      %1898 = vmax.xlane.f32.xlu0 %v1351
      %v1899 = vpop.xlane.xlu0 %1898
      %1900 = vmax.xlane.f32.xlu0 %v1517
      %v1901 = vpop.xlane.xlu0 %1900
      %1902 = vmax.xlane.f32.xlu0 %v1522
      %v1903 = vpop.xlane.xlu0 %1902
      %1904 = vmax.xlane.f32.xlu0 %v1527
      %v1905 = vpop.xlane.xlu0 %1904
      %1906 = vmax.xlane.f32.xlu0 %v1532
      %v1907 = vpop.xlane.xlu0 %1906
      %1908 = vmax.xlane.f32.xlu0 %v1537
      %v1909 = vpop.xlane.xlu0 %1908
      %1910 = vmax.xlane.f32.xlu0 %v1542
      %v1911 = vpop.xlane.xlu0 %1910
      %1912 = vmax.xlane.f32.xlu0 %v1547
      %v1913 = vpop.xlane.xlu0 %1912
      %1914 = vmax.xlane.f32.xlu0 %v1552
      %v1915 = vpop.xlane.xlu0 %1914
      %1916 = vmax.xlane.f32.xlu0 %v1557
      %v1917 = vpop.xlane.xlu0 %1916
      %1918 = vmax.xlane.f32.xlu0 %v1562
      %v1919 = vpop.xlane.xlu0 %1918
      %1920 = vmax.xlane.f32.xlu0 %v1567
      %v1921 = vpop.xlane.xlu0 %1920
      %1922 = vmax.xlane.f32.xlu0 %v1572
      %v1923 = vpop.xlane.xlu0 %1922
      %1924 = vmax.xlane.f32.xlu0 %v1577
      %v1925 = vpop.xlane.xlu0 %1924
      %1926 = vmax.xlane.f32.xlu0 %v1582
      %v1927 = vpop.xlane.xlu0 %1926
      %1928 = vmax.xlane.f32.xlu0 %v1587
      %v1929 = vpop.xlane.xlu0 %1928
      %1930 = vmax.xlane.f32.xlu0 %v1592
      %v1931 = vpop.xlane.xlu0 %1930
      %1932 = vmax.xlane.f32.xlu0 %v1758
      %v1933 = vpop.xlane.xlu0 %1932
      %1934 = vmax.xlane.f32.xlu0 %v1763
      %v1935 = vpop.xlane.xlu0 %1934
      %1936 = vmax.xlane.f32.xlu0 %v1768
      %v1937 = vpop.xlane.xlu0 %1936
      %1938 = vmax.xlane.f32.xlu0 %v1773
      %v1939 = vpop.xlane.xlu0 %1938
      %1940 = vmax.xlane.f32.xlu0 %v1778
      %v1941 = vpop.xlane.xlu0 %1940
      %1942 = vmax.xlane.f32.xlu0 %v1783
      %v1943 = vpop.xlane.xlu0 %1942
      %1944 = vmax.xlane.f32.xlu0 %v1788
      %v1945 = vpop.xlane.xlu0 %1944
      %1946 = vmax.xlane.f32.xlu0 %v1793
      %v1947 = vpop.xlane.xlu0 %1946
      %1948 = vmax.xlane.f32.xlu0 %v1798
      %v1949 = vpop.xlane.xlu0 %1948
      %1950 = vmax.xlane.f32.xlu0 %v1803
      %v1951 = vpop.xlane.xlu0 %1950
      %1952 = vmax.xlane.f32.xlu0 %v1808
      %v1953 = vpop.xlane.xlu0 %1952
      %1954 = vmax.xlane.f32.xlu0 %v1813
      %v1955 = vpop.xlane.xlu0 %1954
      %1956 = vmax.xlane.f32.xlu0 %v1818
      %v1957 = vpop.xlane.xlu0 %1956
      %1958 = vmax.xlane.f32.xlu0 %v1823
      %v1959 = vpop.xlane.xlu0 %1958
      %1960 = vmax.xlane.f32.xlu0 %v1828
      %v1961 = vpop.xlane.xlu0 %1960
      %1962 = vmax.xlane.f32.xlu0 %v1833
      %v1963 = vpop.xlane.xlu0 %1962
      %v1964 = vsub.f32 %v1035, %v1837
      %v1965 = vsub.f32 %v1040, %v1839
      %v1966 = vsub.f32 %v1045, %v1841
      %v1967 = vsub.f32 %v1050, %v1843
      %v1968 = vsub.f32 %v1055, %v1845
      %v1969 = vsub.f32 %v1060, %v1847
      %v1970 = vsub.f32 %v1065, %v1849
      %v1971 = vsub.f32 %v1070, %v1851
      %v1972 = vsub.f32 %v1075, %v1853
      %v1973 = vsub.f32 %v1080, %v1855
      %v1974 = vsub.f32 %v1085, %v1857
      %v1975 = vsub.f32 %v1090, %v1859
      %v1976 = vsub.f32 %v1095, %v1861
      %v1977 = vsub.f32 %v1100, %v1863
      %v1978 = vsub.f32 %v1105, %v1865
      %v1979 = vsub.f32 %v1110, %v1867
      %v1980 = vsub.f32 %v1276, %v1869
      %v1981 = vsub.f32 %v1281, %v1871
      %v1982 = vsub.f32 %v1286, %v1873
      %v1983 = vsub.f32 %v1291, %v1875
      %v1984 = vsub.f32 %v1296, %v1877
      %v1985 = vsub.f32 %v1301, %v1879
      %v1986 = vsub.f32 %v1306, %v1881
      %v1987 = vsub.f32 %v1311, %v1883
      %v1988 = vsub.f32 %v1316, %v1885
      %v1989 = vsub.f32 %v1321, %v1887
      %v1990 = vsub.f32 %v1326, %v1889
      %v1991 = vsub.f32 %v1331, %v1891
      %v1992 = vsub.f32 %v1336, %v1893
      %v1993 = vsub.f32 %v1341, %v1895
      %v1994 = vsub.f32 %v1346, %v1897
      %v1995 = vsub.f32 %v1351, %v1899
      %v1996 = vsub.f32 %v1517, %v1901
      %v1997 = vsub.f32 %v1522, %v1903
      %v1998 = vsub.f32 %v1527, %v1905
      %v1999 = vsub.f32 %v1532, %v1907
      %v2000 = vsub.f32 %v1537, %v1909
      %v2001 = vsub.f32 %v1542, %v1911
      %v2002 = vsub.f32 %v1547, %v1913
      %v2003 = vsub.f32 %v1552, %v1915
      %v2004 = vsub.f32 %v1557, %v1917
      %v2005 = vsub.f32 %v1562, %v1919
      %v2006 = vsub.f32 %v1567, %v1921
      %v2007 = vsub.f32 %v1572, %v1923
      %v2008 = vsub.f32 %v1577, %v1925
      %v2009 = vsub.f32 %v1582, %v1927
      %v2010 = vsub.f32 %v1587, %v1929
      %v2011 = vsub.f32 %v1592, %v1931
      %v2012 = vsub.f32 %v1758, %v1933
      %v2013 = vsub.f32 %v1763, %v1935
      %v2014 = vsub.f32 %v1768, %v1937
      %v2015 = vsub.f32 %v1773, %v1939
      %v2016 = vsub.f32 %v1778, %v1941
      %v2017 = vsub.f32 %v1783, %v1943
      %v2018 = vsub.f32 %v1788, %v1945
      %v2019 = vsub.f32 %v1793, %v1947
      %v2020 = vsub.f32 %v1798, %v1949
      %v2021 = vsub.f32 %v1803, %v1951
      %v2022 = vsub.f32 %v1808, %v1953
      %v2023 = vsub.f32 %v1813, %v1955
      %v2024 = vsub.f32 %v1818, %v1957
      %v2025 = vsub.f32 %v1823, %v1959
      %v2026 = vsub.f32 %v1828, %v1961
      %v2027 = vsub.f32 %v1833, %v1963
      %v2028 = vmul.f32 %v1964, 1.442695
      %v2029 = vpow.pop %v2028
      %v2030 = vmul.f32 %v1965, 1.442695
      %v2031 = vpow.pop %v2030
      %v2032 = vmul.f32 %v1966, 1.442695
      %v2033 = vpow.pop %v2032
      %v2034 = vmul.f32 %v1967, 1.442695
      %v2035 = vpow.pop %v2034
      %v2036 = vmul.f32 %v1968, 1.442695
      %v2037 = vpow.pop %v2036
      %v2038 = vmul.f32 %v1969, 1.442695
      %v2039 = vpow.pop %v2038
      %v2040 = vmul.f32 %v1970, 1.442695
      %v2041 = vpow.pop %v2040
      %v2042 = vmul.f32 %v1971, 1.442695
      %v2043 = vpow.pop %v2042
      %v2044 = vmul.f32 %v1972, 1.442695
      %v2045 = vpow.pop %v2044
      %v2046 = vmul.f32 %v1973, 1.442695
      %v2047 = vpow.pop %v2046
      %v2048 = vmul.f32 %v1974, 1.442695
      %v2049 = vpow.pop %v2048
      %v2050 = vmul.f32 %v1975, 1.442695
      %v2051 = vpow.pop %v2050
      %v2052 = vmul.f32 %v1976, 1.442695
      %v2053 = vpow.pop %v2052
      %v2054 = vmul.f32 %v1977, 1.442695
      %v2055 = vpow.pop %v2054
      %v2056 = vmul.f32 %v1978, 1.442695
      %v2057 = vpow.pop %v2056
      %v2058 = vmul.f32 %v1979, 1.442695
      %v2059 = vpow.pop %v2058
      %v2060 = vmul.f32 %v1980, 1.442695
      %v2061 = vpow.pop %v2060
      %v2062 = vmul.f32 %v1981, 1.442695
      %v2063 = vpow.pop %v2062
      %v2064 = vmul.f32 %v1982, 1.442695
      %v2065 = vpow.pop %v2064
      %v2066 = vmul.f32 %v1983, 1.442695
      %v2067 = vpow.pop %v2066
      %v2068 = vmul.f32 %v1984, 1.442695
      %v2069 = vpow.pop %v2068
      %v2070 = vmul.f32 %v1985, 1.442695
      %v2071 = vpow.pop %v2070
      %v2072 = vmul.f32 %v1986, 1.442695
      %v2073 = vpow.pop %v2072
      %v2074 = vmul.f32 %v1987, 1.442695
      %v2075 = vpow.pop %v2074
      %v2076 = vmul.f32 %v1988, 1.442695
      %v2077 = vpow.pop %v2076
      %v2078 = vmul.f32 %v1989, 1.442695
      %v2079 = vpow.pop %v2078
      %v2080 = vmul.f32 %v1990, 1.442695
      %v2081 = vpow.pop %v2080
      %v2082 = vmul.f32 %v1991, 1.442695
      %v2083 = vpow.pop %v2082
      %v2084 = vmul.f32 %v1992, 1.442695
      %v2085 = vpow.pop %v2084
      %v2086 = vmul.f32 %v1993, 1.442695
      %v2087 = vpow.pop %v2086
      %v2088 = vmul.f32 %v1994, 1.442695
      %v2089 = vpow.pop %v2088
      %v2090 = vmul.f32 %v1995, 1.442695
      %v2091 = vpow.pop %v2090
      %v2092 = vmul.f32 %v1996, 1.442695
      %v2093 = vpow.pop %v2092
      %v2094 = vmul.f32 %v1997, 1.442695
      %v2095 = vpow.pop %v2094
      %v2096 = vmul.f32 %v1998, 1.442695
      %v2097 = vpow.pop %v2096
      %v2098 = vmul.f32 %v1999, 1.442695
      %v2099 = vpow.pop %v2098
      %v2100 = vmul.f32 %v2000, 1.442695
      %v2101 = vpow.pop %v2100
      %v2102 = vmul.f32 %v2001, 1.442695
      %v2103 = vpow.pop %v2102
      %v2104 = vmul.f32 %v2002, 1.442695
      %v2105 = vpow.pop %v2104
      %v2106 = vmul.f32 %v2003, 1.442695
      %v2107 = vpow.pop %v2106
      %v2108 = vmul.f32 %v2004, 1.442695
      %v2109 = vpow.pop %v2108
      %v2110 = vmul.f32 %v2005, 1.442695
      %v2111 = vpow.pop %v2110
      %v2112 = vmul.f32 %v2006, 1.442695
      %v2113 = vpow.pop %v2112
      %v2114 = vmul.f32 %v2007, 1.442695
      %v2115 = vpow.pop %v2114
      %v2116 = vmul.f32 %v2008, 1.442695
      %v2117 = vpow.pop %v2116
      %v2118 = vmul.f32 %v2009, 1.442695
      %v2119 = vpow.pop %v2118
      %v2120 = vmul.f32 %v2010, 1.442695
      %v2121 = vpow.pop %v2120
      %v2122 = vmul.f32 %v2011, 1.442695
      %v2123 = vpow.pop %v2122
      %v2124 = vmul.f32 %v2012, 1.442695
      %v2125 = vpow.pop %v2124
      %v2126 = vmul.f32 %v2013, 1.442695
      %v2127 = vpow.pop %v2126
      %v2128 = vmul.f32 %v2014, 1.442695
      %v2129 = vpow.pop %v2128
      %v2130 = vmul.f32 %v2015, 1.442695
      %v2131 = vpow.pop %v2130
      %v2132 = vmul.f32 %v2016, 1.442695
      %v2133 = vpow.pop %v2132
      %v2134 = vmul.f32 %v2017, 1.442695
      %v2135 = vpow.pop %v2134
      %v2136 = vmul.f32 %v2018, 1.442695
      %v2137 = vpow.pop %v2136
      %v2138 = vmul.f32 %v2019, 1.442695
      %v2139 = vpow.pop %v2138
      %v2140 = vmul.f32 %v2020, 1.442695
      %v2141 = vpow.pop %v2140
      %v2142 = vmul.f32 %v2021, 1.442695
      %v2143 = vpow.pop %v2142
      %v2144 = vmul.f32 %v2022, 1.442695
      %v2145 = vpow.pop %v2144
      %v2146 = vmul.f32 %v2023, 1.442695
      %v2147 = vpow.pop %v2146
      %v2148 = vmul.f32 %v2024, 1.442695
      %v2149 = vpow.pop %v2148
      %v2150 = vmul.f32 %v2025, 1.442695
      %v2151 = vpow.pop %v2150
      %v2152 = vmul.f32 %v2026, 1.442695
      %v2153 = vpow.pop %v2152
      %v2154 = vmul.f32 %v2027, 1.442695
      %v2155 = vpow.pop %v2154
      %2156 = vadd.xlane.f32.xlu0 %v2029
      %v2157 = vpop.xlane.xlu0 %2156
      %2158 = vadd.xlane.f32.xlu0 %v2031
      %v2159 = vpop.xlane.xlu0 %2158
      %2160 = vadd.xlane.f32.xlu0 %v2033
      %v2161 = vpop.xlane.xlu0 %2160
      %2162 = vadd.xlane.f32.xlu0 %v2035
      %v2163 = vpop.xlane.xlu0 %2162
      %2164 = vadd.xlane.f32.xlu0 %v2037
      %v2165 = vpop.xlane.xlu0 %2164
      %2166 = vadd.xlane.f32.xlu0 %v2039
      %v2167 = vpop.xlane.xlu0 %2166
      %2168 = vadd.xlane.f32.xlu0 %v2041
      %v2169 = vpop.xlane.xlu0 %2168
      %2170 = vadd.xlane.f32.xlu0 %v2043
      %v2171 = vpop.xlane.xlu0 %2170
      %2172 = vadd.xlane.f32.xlu0 %v2045
      %v2173 = vpop.xlane.xlu0 %2172
      %2174 = vadd.xlane.f32.xlu0 %v2047
      %v2175 = vpop.xlane.xlu0 %2174
      %2176 = vadd.xlane.f32.xlu0 %v2049
      %v2177 = vpop.xlane.xlu0 %2176
      %2178 = vadd.xlane.f32.xlu0 %v2051
      %v2179 = vpop.xlane.xlu0 %2178
      %2180 = vadd.xlane.f32.xlu0 %v2053
      %v2181 = vpop.xlane.xlu0 %2180
      %2182 = vadd.xlane.f32.xlu0 %v2055
      %v2183 = vpop.xlane.xlu0 %2182
      %2184 = vadd.xlane.f32.xlu0 %v2057
      %v2185 = vpop.xlane.xlu0 %2184
      %2186 = vadd.xlane.f32.xlu0 %v2059
      %v2187 = vpop.xlane.xlu0 %2186
      %2188 = vadd.xlane.f32.xlu0 %v2061
      %v2189 = vpop.xlane.xlu0 %2188
      %2190 = vadd.xlane.f32.xlu0 %v2063
      %v2191 = vpop.xlane.xlu0 %2190
      %2192 = vadd.xlane.f32.xlu0 %v2065
      %v2193 = vpop.xlane.xlu0 %2192
      %2194 = vadd.xlane.f32.xlu0 %v2067
      %v2195 = vpop.xlane.xlu0 %2194
      %2196 = vadd.xlane.f32.xlu0 %v2069
      %v2197 = vpop.xlane.xlu0 %2196
      %2198 = vadd.xlane.f32.xlu0 %v2071
      %v2199 = vpop.xlane.xlu0 %2198
      %2200 = vadd.xlane.f32.xlu0 %v2073
      %v2201 = vpop.xlane.xlu0 %2200
      %2202 = vadd.xlane.f32.xlu0 %v2075
      %v2203 = vpop.xlane.xlu0 %2202
      %2204 = vadd.xlane.f32.xlu0 %v2077
      %v2205 = vpop.xlane.xlu0 %2204
      %2206 = vadd.xlane.f32.xlu0 %v2079
      %v2207 = vpop.xlane.xlu0 %2206
      %2208 = vadd.xlane.f32.xlu0 %v2081
      %v2209 = vpop.xlane.xlu0 %2208
      %2210 = vadd.xlane.f32.xlu0 %v2083
      %v2211 = vpop.xlane.xlu0 %2210
      %2212 = vadd.xlane.f32.xlu0 %v2085
      %v2213 = vpop.xlane.xlu0 %2212
      %2214 = vadd.xlane.f32.xlu0 %v2087
      %v2215 = vpop.xlane.xlu0 %2214
      %2216 = vadd.xlane.f32.xlu0 %v2089
      %v2217 = vpop.xlane.xlu0 %2216
      %2218 = vadd.xlane.f32.xlu0 %v2091
      %v2219 = vpop.xlane.xlu0 %2218
      %2220 = vadd.xlane.f32.xlu0 %v2093
      %v2221 = vpop.xlane.xlu0 %2220
      %2222 = vadd.xlane.f32.xlu0 %v2095
      %v2223 = vpop.xlane.xlu0 %2222
      %2224 = vadd.xlane.f32.xlu0 %v2097
      %v2225 = vpop.xlane.xlu0 %2224
      %2226 = vadd.xlane.f32.xlu0 %v2099
      %v2227 = vpop.xlane.xlu0 %2226
      %2228 = vadd.xlane.f32.xlu0 %v2101
      %v2229 = vpop.xlane.xlu0 %2228
      %2230 = vadd.xlane.f32.xlu0 %v2103
      %v2231 = vpop.xlane.xlu0 %2230
      %2232 = vadd.xlane.f32.xlu0 %v2105
      %v2233 = vpop.xlane.xlu0 %2232
      %2234 = vadd.xlane.f32.xlu0 %v2107
      %v2235 = vpop.xlane.xlu0 %2234
      %2236 = vadd.xlane.f32.xlu0 %v2109
      %v2237 = vpop.xlane.xlu0 %2236
      %2238 = vadd.xlane.f32.xlu0 %v2111
      %v2239 = vpop.xlane.xlu0 %2238
      %2240 = vadd.xlane.f32.xlu0 %v2113
      %v2241 = vpop.xlane.xlu0 %2240
      %2242 = vadd.xlane.f32.xlu0 %v2115
      %v2243 = vpop.xlane.xlu0 %2242
      %2244 = vadd.xlane.f32.xlu0 %v2117
      %v2245 = vpop.xlane.xlu0 %2244
      %2246 = vadd.xlane.f32.xlu0 %v2119
      %v2247 = vpop.xlane.xlu0 %2246
      %2248 = vadd.xlane.f32.xlu0 %v2121
      %v2249 = vpop.xlane.xlu0 %2248
      %2250 = vadd.xlane.f32.xlu0 %v2123
      %v2251 = vpop.xlane.xlu0 %2250
      %2252 = vadd.xlane.f32.xlu0 %v2125
      %v2253 = vpop.xlane.xlu0 %2252
      %2254 = vadd.xlane.f32.xlu0 %v2127
      %v2255 = vpop.xlane.xlu0 %2254
      %2256 = vadd.xlane.f32.xlu0 %v2129
      %v2257 = vpop.xlane.xlu0 %2256
      %2258 = vadd.xlane.f32.xlu0 %v2131
      %v2259 = vpop.xlane.xlu0 %2258
      %2260 = vadd.xlane.f32.xlu0 %v2133
      %v2261 = vpop.xlane.xlu0 %2260
      %2262 = vadd.xlane.f32.xlu0 %v2135
      %v2263 = vpop.xlane.xlu0 %2262
      %2264 = vadd.xlane.f32.xlu0 %v2137
      %v2265 = vpop.xlane.xlu0 %2264
      %2266 = vadd.xlane.f32.xlu0 %v2139
      %v2267 = vpop.xlane.xlu0 %2266
      %2268 = vadd.xlane.f32.xlu0 %v2141
      %v2269 = vpop.xlane.xlu0 %2268
      %2270 = vadd.xlane.f32.xlu0 %v2143
      %v2271 = vpop.xlane.xlu0 %2270
      %2272 = vadd.xlane.f32.xlu0 %v2145
      %v2273 = vpop.xlane.xlu0 %2272
      %2274 = vadd.xlane.f32.xlu0 %v2147
      %v2275 = vpop.xlane.xlu0 %2274
      %2276 = vadd.xlane.f32.xlu0 %v2149
      %v2277 = vpop.xlane.xlu0 %2276
      %2278 = vadd.xlane.f32.xlu0 %v2151
      %v2279 = vpop.xlane.xlu0 %2278
      %2280 = vadd.xlane.f32.xlu0 %v2153
      %v2281 = vpop.xlane.xlu0 %2280
      %2282 = vadd.xlane.f32.xlu0 %v2155
      %v2283 = vpop.xlane.xlu0 %2282
      %v2284 = vrcp.pop %v2157
      %v2285 = vmul.f32 1.0, %v2284
      %v2286 = vrcp.pop %v2159
      %v2287 = vmul.f32 1.0, %v2286
      %v2288 = vrcp.pop %v2161
      %v2289 = vmul.f32 1.0, %v2288
      %v2290 = vrcp.pop %v2163
      %v2291 = vmul.f32 1.0, %v2290
      %v2292 = vrcp.pop %v2165
      %v2293 = vmul.f32 1.0, %v2292
      %v2294 = vrcp.pop %v2167
      %v2295 = vmul.f32 1.0, %v2294
      %v2296 = vrcp.pop %v2169
      %v2297 = vmul.f32 1.0, %v2296
      %v2298 = vrcp.pop %v2171
      %v2299 = vmul.f32 1.0, %v2298
      %v2300 = vrcp.pop %v2173
      %v2301 = vmul.f32 1.0, %v2300
      %v2302 = vrcp.pop %v2175
      %v2303 = vmul.f32 1.0, %v2302
      %v2304 = vrcp.pop %v2177
      %v2305 = vmul.f32 1.0, %v2304
      %v2306 = vrcp.pop %v2179
      %v2307 = vmul.f32 1.0, %v2306
      %v2308 = vrcp.pop %v2181
      %v2309 = vmul.f32 1.0, %v2308
      %v2310 = vrcp.pop %v2183
      %v2311 = vmul.f32 1.0, %v2310
      %v2312 = vrcp.pop %v2185
      %v2313 = vmul.f32 1.0, %v2312
      %v2314 = vrcp.pop %v2187
      %v2315 = vmul.f32 1.0, %v2314
      %v2316 = vrcp.pop %v2189
      %v2317 = vmul.f32 1.0, %v2316
      %v2318 = vrcp.pop %v2191
      %v2319 = vmul.f32 1.0, %v2318
      %v2320 = vrcp.pop %v2193
      %v2321 = vmul.f32 1.0, %v2320
      %v2322 = vrcp.pop %v2195
      %v2323 = vmul.f32 1.0, %v2322
      %v2324 = vrcp.pop %v2197
      %v2325 = vmul.f32 1.0, %v2324
      %v2326 = vrcp.pop %v2199
      %v2327 = vmul.f32 1.0, %v2326
      %v2328 = vrcp.pop %v2201
      %v2329 = vmul.f32 1.0, %v2328
      %v2330 = vrcp.pop %v2203
      %v2331 = vmul.f32 1.0, %v2330
      %v2332 = vrcp.pop %v2205
      %v2333 = vmul.f32 1.0, %v2332
      %v2334 = vrcp.pop %v2207
      %v2335 = vmul.f32 1.0, %v2334
      %v2336 = vrcp.pop %v2209
      %v2337 = vmul.f32 1.0, %v2336
      %v2338 = vrcp.pop %v2211
      %v2339 = vmul.f32 1.0, %v2338
      %v2340 = vrcp.pop %v2213
      %v2341 = vmul.f32 1.0, %v2340
      %v2342 = vrcp.pop %v2215
      %v2343 = vmul.f32 1.0, %v2342
      %v2344 = vrcp.pop %v2217
      %v2345 = vmul.f32 1.0, %v2344
      %v2346 = vrcp.pop %v2219
      %v2347 = vmul.f32 1.0, %v2346
      %v2348 = vrcp.pop %v2221
      %v2349 = vmul.f32 1.0, %v2348
      %v2350 = vrcp.pop %v2223
      %v2351 = vmul.f32 1.0, %v2350
      %v2352 = vrcp.pop %v2225
      %v2353 = vmul.f32 1.0, %v2352
      %v2354 = vrcp.pop %v2227
      %v2355 = vmul.f32 1.0, %v2354
      %v2356 = vrcp.pop %v2229
      %v2357 = vmul.f32 1.0, %v2356
      %v2358 = vrcp.pop %v2231
      %v2359 = vmul.f32 1.0, %v2358
      %v2360 = vrcp.pop %v2233
      %v2361 = vmul.f32 1.0, %v2360
      %v2362 = vrcp.pop %v2235
      %v2363 = vmul.f32 1.0, %v2362
      %v2364 = vrcp.pop %v2237
      %v2365 = vmul.f32 1.0, %v2364
      %v2366 = vrcp.pop %v2239
      %v2367 = vmul.f32 1.0, %v2366
      %v2368 = vrcp.pop %v2241
      %v2369 = vmul.f32 1.0, %v2368
      %v2370 = vrcp.pop %v2243
      %v2371 = vmul.f32 1.0, %v2370
      %v2372 = vrcp.pop %v2245
      %v2373 = vmul.f32 1.0, %v2372
      %v2374 = vrcp.pop %v2247
      %v2375 = vmul.f32 1.0, %v2374
      %v2376 = vrcp.pop %v2249
      %v2377 = vmul.f32 1.0, %v2376
      %v2378 = vrcp.pop %v2251
      %v2379 = vmul.f32 1.0, %v2378
      %v2380 = vrcp.pop %v2253
      %v2381 = vmul.f32 1.0, %v2380
      %v2382 = vrcp.pop %v2255
      %v2383 = vmul.f32 1.0, %v2382
      %v2384 = vrcp.pop %v2257
      %v2385 = vmul.f32 1.0, %v2384
      %v2386 = vrcp.pop %v2259
      %v2387 = vmul.f32 1.0, %v2386
      %v2388 = vrcp.pop %v2261
      %v2389 = vmul.f32 1.0, %v2388
      %v2390 = vrcp.pop %v2263
      %v2391 = vmul.f32 1.0, %v2390
      %v2392 = vrcp.pop %v2265
      %v2393 = vmul.f32 1.0, %v2392
      %v2394 = vrcp.pop %v2267
      %v2395 = vmul.f32 1.0, %v2394
      %v2396 = vrcp.pop %v2269
      %v2397 = vmul.f32 1.0, %v2396
      %v2398 = vrcp.pop %v2271
      %v2399 = vmul.f32 1.0, %v2398
      %v2400 = vrcp.pop %v2273
      %v2401 = vmul.f32 1.0, %v2400
      %v2402 = vrcp.pop %v2275
      %v2403 = vmul.f32 1.0, %v2402
      %v2404 = vrcp.pop %v2277
      %v2405 = vmul.f32 1.0, %v2404
      %v2406 = vrcp.pop %v2279
      %v2407 = vmul.f32 1.0, %v2406
      %v2408 = vrcp.pop %v2281
      %v2409 = vmul.f32 1.0, %v2408
      %v2410 = vrcp.pop %v2283
      %v2411 = vmul.f32 1.0, %v2410
      %v2412 = vmul.f32 %v2029, %v2285
      %v2413 = vmul.f32 %v2031, %v2287
      %v2414 = vmul.f32 %v2033, %v2289
      %v2415 = vmul.f32 %v2035, %v2291
      %v2416 = vmul.f32 %v2037, %v2293
      %v2417 = vmul.f32 %v2039, %v2295
      %v2418 = vmul.f32 %v2041, %v2297
      %v2419 = vmul.f32 %v2043, %v2299
      %v2420 = vmul.f32 %v2045, %v2301
      %v2421 = vmul.f32 %v2047, %v2303
      %v2422 = vmul.f32 %v2049, %v2305
      %v2423 = vmul.f32 %v2051, %v2307
      %v2424 = vmul.f32 %v2053, %v2309
      %v2425 = vmul.f32 %v2055, %v2311
      %v2426 = vmul.f32 %v2057, %v2313
      %v2427 = vmul.f32 %v2059, %v2315
      %v2428 = vmul.f32 %v2061, %v2317
      %v2429 = vmul.f32 %v2063, %v2319
      %v2430 = vmul.f32 %v2065, %v2321
      %v2431 = vmul.f32 %v2067, %v2323
      %v2432 = vmul.f32 %v2069, %v2325
      %v2433 = vmul.f32 %v2071, %v2327
      %v2434 = vmul.f32 %v2073, %v2329
      %v2435 = vmul.f32 %v2075, %v2331
      %v2436 = vmul.f32 %v2077, %v2333
      %v2437 = vmul.f32 %v2079, %v2335
      %v2438 = vmul.f32 %v2081, %v2337
      %v2439 = vmul.f32 %v2083, %v2339
      %v2440 = vmul.f32 %v2085, %v2341
      %v2441 = vmul.f32 %v2087, %v2343
      %v2442 = vmul.f32 %v2089, %v2345
      %v2443 = vmul.f32 %v2091, %v2347
      %v2444 = vmul.f32 %v2093, %v2349
      %v2445 = vmul.f32 %v2095, %v2351
      %v2446 = vmul.f32 %v2097, %v2353
      %v2447 = vmul.f32 %v2099, %v2355
      %v2448 = vmul.f32 %v2101, %v2357
      %v2449 = vmul.f32 %v2103, %v2359
      %v2450 = vmul.f32 %v2105, %v2361
      %v2451 = vmul.f32 %v2107, %v2363
      %v2452 = vmul.f32 %v2109, %v2365
      %v2453 = vmul.f32 %v2111, %v2367
      %v2454 = vmul.f32 %v2113, %v2369
      %v2455 = vmul.f32 %v2115, %v2371
      %v2456 = vmul.f32 %v2117, %v2373
      %v2457 = vmul.f32 %v2119, %v2375
      %v2458 = vmul.f32 %v2121, %v2377
      %v2459 = vmul.f32 %v2123, %v2379
      %v2460 = vmul.f32 %v2125, %v2381
      %v2461 = vmul.f32 %v2127, %v2383
      %v2462 = vmul.f32 %v2129, %v2385
      %v2463 = vmul.f32 %v2131, %v2387
      %v2464 = vmul.f32 %v2133, %v2389
      %v2465 = vmul.f32 %v2135, %v2391
      %v2466 = vmul.f32 %v2137, %v2393
      %v2467 = vmul.f32 %v2139, %v2395
      %v2468 = vmul.f32 %v2141, %v2397
      %v2469 = vmul.f32 %v2143, %v2399
      %v2470 = vmul.f32 %v2145, %v2401
      %v2471 = vmul.f32 %v2147, %v2403
      %v2472 = vmul.f32 %v2149, %v2405
      %v2473 = vmul.f32 %v2151, %v2407
      %v2474 = vmul.f32 %v2153, %v2409
      %v2475 = vmul.f32 %v2155, %v2411
      %2476 = vmatprep.subr.mxu0 0.0
      %2477 = vmatpush1.msra.mxu0 %v459
      %2478 = vmatprep.subr.mxu0 0.0
      %2479 = vmatpush1.msra.mxu0 %v465
      %2480 = vmatprep.subr.mxu0 0.0
      %2481 = vmatpush1.msra.mxu0 %v471
      %2482 = vmatprep.subr.mxu0 0.0
      %2483 = vmatpush1.msra.mxu0 %v477
      %2484 = vmatprep.subr.mxu0 0.0
      %2485 = vmatpush1.msra.mxu0 %v483
      %2486 = vmatprep.subr.mxu0 0.0
      %2487 = vmatpush1.msra.mxu0 %v489
      %2488 = vmatprep.subr.mxu0 0.0
      %2489 = vmatpush1.msra.mxu0 %v495
      %2490 = vmatprep.subr.mxu0 0.0
      %2491 = vmatpush1.msra.mxu0 %v501
      %2492 = vmatprep.subr.mxu0 0.0
      %2493 = vmatpush1.msra.mxu0 %v507
      %2494 = vmatprep.subr.mxu0 0.0
      %2495 = vmatpush1.msra.mxu0 %v513
      %2496 = vmatprep.subr.mxu0 0.0
      %2497 = vmatpush1.msra.mxu0 %v519
      %2498 = vmatprep.subr.mxu0 0.0
      %2499 = vmatpush1.msra.mxu0 %v525
      %2500 = vmatprep.subr.mxu0 0.0
      %2501 = vmatpush1.msra.mxu0 %v531
      %2502 = vmatprep.subr.mxu0 0.0
      %2503 = vmatpush1.msra.mxu0 %v537
      %2504 = vmatprep.subr.mxu0 0.0
      %2505 = vmatpush1.msra.mxu0 %v543
      %2506 = vmatprep.subr.mxu0 0.0
      %2507 = vmatpush1.msra.mxu0 %v549
      %2508 = vmatprep.subr.mxu0 0.0
      %2509 = vmatpush1.msra.mxu0 0.0
      %2510 = vmatprep.subr.mxu0 0.0
      %2511 = vmatpush1.msra.mxu0 0.0
      %2512 = vmatprep.subr.mxu0 0.0
      %2513 = vmatpush1.msra.mxu0 0.0
      %2514 = vmatprep.subr.mxu0 0.0
      %2515 = vmatpush1.msra.mxu0 0.0
      %2516 = vmatprep.subr.mxu0 0.0
      %2517 = vmatpush1.msra.mxu0 0.0
      %2518 = vmatprep.subr.mxu0 0.0
      %2519 = vmatpush1.msra.mxu0 0.0
      %2520 = vmatprep.subr.mxu0 0.0
      %2521 = vmatpush1.msra.mxu0 0.0
      %2522 = vmatprep.subr.mxu0 0.0
      %2523 = vmatpush1.msra.mxu0 0.0
      %2524 = vmatprep.subr.mxu0 0.0
      %2525 = vmatpush1.msra.mxu0 0.0
      %2526 = vmatprep.subr.mxu0 0.0
      %2527 = vmatpush1.msra.mxu0 0.0
      %2528 = vmatprep.subr.mxu0 0.0
      %2529 = vmatpush1.msra.mxu0 0.0
      %2530 = vmatprep.subr.mxu0 0.0
      %2531 = vmatpush1.msra.mxu0 0.0
      %2532 = vmatprep.subr.mxu0 0.0
      %2533 = vmatpush1.msra.mxu0 0.0
      %2534 = vmatprep.subr.mxu0 0.0
      %2535 = vmatpush1.msra.mxu0 0.0
      %2536 = vmatprep.subr.mxu0 0.0
      %2537 = vmatpush1.msra.mxu0 0.0
      %2538 = vmatprep.subr.mxu0 0.0
      %2539 = vmatpush1.msra.mxu0 0.0
      %2540 = vmatprep.mubr.f32.mxu0 0.0
      %2541 = vmatmul.mubr.f32.gmra.mrb[0].mxu0 %v2412
      %v2542 = vpop.f32.mrb[0].mxu0
      %v2543 = vadd.f32 0.0, %v2542
      %v2544 = vpop.f32.mrb[0].mxu0
      %2545 = vmatprep.mubr.f32.mxu0 0.0
      %2546 = vmatmul.mubr.f32.gmra.mrb[0].mxu0 %v2413
      %v2547 = vpop.f32.mrb[0].mxu0
      %v2548 = vadd.f32 0.0, %v2547
      %v2549 = vpop.f32.mrb[0].mxu0
      %2550 = vmatprep.mubr.f32.mxu0 0.0
      %2551 = vmatmul.mubr.f32.gmra.mrb[0].mxu0 %v2414
      %v2552 = vpop.f32.mrb[0].mxu0
      %v2553 = vadd.f32 0.0, %v2552
      %v2554 = vpop.f32.mrb[0].mxu0
      %2555 = vmatprep.mubr.f32.mxu0 0.0
      %2556 = vmatmul.mubr.f32.gmra.mrb[0].mxu0 %v2415
      %v2557 = vpop.f32.mrb[0].mxu0
      %v2558 = vadd.f32 0.0, %v2557
      %v2559 = vpop.f32.mrb[0].mxu0
      %2560 = vmatprep.mubr.f32.mxu0 0.0
      %2561 = vmatmul.mubr.f32.gmra.mrb[0].mxu0 %v2416
      %v2562 = vpop.f32.mrb[0].mxu0
      %v2563 = vadd.f32 0.0, %v2562
      %v2564 = vpop.f32.mrb[0].mxu0
      %2565 = vmatprep.mubr.f32.mxu0 0.0
      %2566 = vmatmul.mubr.f32.gmra.mrb[0].mxu0 %v2417
      %v2567 = vpop.f32.mrb[0].mxu0
      %v2568 = vadd.f32 0.0, %v2567
      %v2569 = vpop.f32.mrb[0].mxu0
      %2570 = vmatprep.mubr.f32.mxu0 0.0
      %2571 = vmatmul.mubr.f32.gmra.mrb[0].mxu0 %v2418
      %v2572 = vpop.f32.mrb[0].mxu0
      %v2573 = vadd.f32 0.0, %v2572
      %v2574 = vpop.f32.mrb[0].mxu0
      %2575 = vmatprep.mubr.f32.mxu0 0.0
      %2576 = vmatmul.mubr.f32.gmra.mrb[0].mxu0 %v2419
      %v2577 = vpop.f32.mrb[0].mxu0
      %v2578 = vadd.f32 0.0, %v2577
      %v2579 = vpop.f32.mrb[0].mxu0
      %2580 = vmatprep.mubr.f32.mxu0 0.0
      %2581 = vmatmul.mubr.f32.gmra.mrb[0].mxu0 %v2420
      %v2582 = vpop.f32.mrb[0].mxu0
      %v2583 = vadd.f32 0.0, %v2582
      %v2584 = vpop.f32.mrb[0].mxu0
      %2585 = vmatprep.mubr.f32.mxu0 0.0
      %2586 = vmatmul.mubr.f32.gmra.mrb[0].mxu0 %v2421
      %v2587 = vpop.f32.mrb[0].mxu0
      %v2588 = vadd.f32 0.0, %v2587
      %v2589 = vpop.f32.mrb[0].mxu0
      %2590 = vmatprep.mubr.f32.mxu0 0.0
      %2591 = vmatmul.mubr.f32.gmra.mrb[0].mxu0 %v2422
      %v2592 = vpop.f32.mrb[0].mxu0
      %v2593 = vadd.f32 0.0, %v2592
      %v2594 = vpop.f32.mrb[0].mxu0
      %2595 = vmatprep.mubr.f32.mxu0 0.0
      %2596 = vmatmul.mubr.f32.gmra.mrb[0].mxu0 %v2423
      %v2597 = vpop.f32.mrb[0].mxu0
      %v2598 = vadd.f32 0.0, %v2597
      %v2599 = vpop.f32.mrb[0].mxu0
      %2600 = vmatprep.mubr.f32.mxu0 0.0
      %2601 = vmatmul.mubr.f32.gmra.mrb[0].mxu0 %v2424
      %v2602 = vpop.f32.mrb[0].mxu0
      %v2603 = vadd.f32 0.0, %v2602
      %v2604 = vpop.f32.mrb[0].mxu0
      %2605 = vmatprep.mubr.f32.mxu0 0.0
      %2606 = vmatmul.mubr.f32.gmra.mrb[0].mxu0 %v2425
      %v2607 = vpop.f32.mrb[0].mxu0
      %v2608 = vadd.f32 0.0, %v2607
      %v2609 = vpop.f32.mrb[0].mxu0
      %2610 = vmatprep.mubr.f32.mxu0 0.0
      %2611 = vmatmul.mubr.f32.gmra.mrb[0].mxu0 %v2426
      %v2612 = vpop.f32.mrb[0].mxu0
      %v2613 = vadd.f32 0.0, %v2612
      %v2614 = vpop.f32.mrb[0].mxu0
      %2615 = vmatprep.mubr.f32.mxu0 0.0
      %2616 = vmatmul.mubr.f32.gmra.mrb[0].mxu0 %v2427
      %v2617 = vpop.f32.mrb[0].mxu0
      %v2618 = vadd.f32 0.0, %v2617
      %v2619 = vpop.f32.mrb[0].mxu0
      %2620 = vdwg.mxu0
      %2621 = vmatprep.subr.mxu0 0.0
      %2622 = vmatpush1.msra.mxu0 %v555
      %2623 = vmatprep.subr.mxu0 0.0
      %2624 = vmatpush1.msra.mxu0 %v561
      %2625 = vmatprep.subr.mxu0 0.0
      %2626 = vmatpush1.msra.mxu0 %v567
      %2627 = vmatprep.subr.mxu0 0.0
      %2628 = vmatpush1.msra.mxu0 %v573
      %2629 = vmatprep.subr.mxu0 0.0
      %2630 = vmatpush1.msra.mxu0 %v579
      %2631 = vmatprep.subr.mxu0 0.0
      %2632 = vmatpush1.msra.mxu0 %v585
      %2633 = vmatprep.subr.mxu0 0.0
      %2634 = vmatpush1.msra.mxu0 %v591
      %2635 = vmatprep.subr.mxu0 0.0
      %2636 = vmatpush1.msra.mxu0 %v597
      %2637 = vmatprep.subr.mxu0 0.0
      %2638 = vmatpush1.msra.mxu0 %v603
      %2639 = vmatprep.subr.mxu0 0.0
      %2640 = vmatpush1.msra.mxu0 %v609
      %2641 = vmatprep.subr.mxu0 0.0
      %2642 = vmatpush1.msra.mxu0 %v615
      %2643 = vmatprep.subr.mxu0 0.0
      %2644 = vmatpush1.msra.mxu0 %v621
      %2645 = vmatprep.subr.mxu0 0.0
      %2646 = vmatpush1.msra.mxu0 %v627
      %2647 = vmatprep.subr.mxu0 0.0
      %2648 = vmatpush1.msra.mxu0 %v633
      %2649 = vmatprep.subr.mxu0 0.0
      %2650 = vmatpush1.msra.mxu0 %v639
      %2651 = vmatprep.subr.mxu0 0.0
      %2652 = vmatpush1.msra.mxu0 %v645
      %2653 = vmatprep.subr.mxu0 0.0
      %2654 = vmatpush1.msra.mxu0 0.0
      %2655 = vmatprep.subr.mxu0 0.0
      %2656 = vmatpush1.msra.mxu0 0.0
      %2657 = vmatprep.subr.mxu0 0.0
      %2658 = vmatpush1.msra.mxu0 0.0
      %2659 = vmatprep.subr.mxu0 0.0
      %2660 = vmatpush1.msra.mxu0 0.0
      %2661 = vmatprep.subr.mxu0 0.0
      %2662 = vmatpush1.msra.mxu0 0.0
      %2663 = vmatprep.subr.mxu0 0.0
      %2664 = vmatpush1.msra.mxu0 0.0
      %2665 = vmatprep.subr.mxu0 0.0
      %2666 = vmatpush1.msra.mxu0 0.0
      %2667 = vmatprep.subr.mxu0 0.0
      %2668 = vmatpush1.msra.mxu0 0.0
      %2669 = vmatprep.subr.mxu0 0.0
      %2670 = vmatpush1.msra.mxu0 0.0
      %2671 = vmatprep.subr.mxu0 0.0
      %2672 = vmatpush1.msra.mxu0 0.0
      %2673 = vmatprep.subr.mxu0 0.0
      %2674 = vmatpush1.msra.mxu0 0.0
      %2675 = vmatprep.subr.mxu0 0.0
      %2676 = vmatpush1.msra.mxu0 0.0
      %2677 = vmatprep.subr.mxu0 0.0
      %2678 = vmatpush1.msra.mxu0 0.0
      %2679 = vmatprep.subr.mxu0 0.0
      %2680 = vmatpush1.msra.mxu0 0.0
      %2681 = vmatprep.subr.mxu0 0.0
      %2682 = vmatpush1.msra.mxu0 0.0
      %2683 = vmatprep.subr.mxu0 0.0
      %2684 = vmatpush1.msra.mxu0 0.0
      %2685 = vmatprep.mubr.f32.mxu0 0.0
      %2686 = vmatmul.mubr.f32.gmra.mrb[0].mxu0 %v2428
      %v2687 = vpop.f32.mrb[0].mxu0
      %v2688 = vadd.f32 0.0, %v2687
      %v2689 = vpop.f32.mrb[0].mxu0
      %2690 = vmatprep.mubr.f32.mxu0 0.0
      %2691 = vmatmul.mubr.f32.gmra.mrb[0].mxu0 %v2429
      %v2692 = vpop.f32.mrb[0].mxu0
      %v2693 = vadd.f32 0.0, %v2692
      %v2694 = vpop.f32.mrb[0].mxu0
      %2695 = vmatprep.mubr.f32.mxu0 0.0
      %2696 = vmatmul.mubr.f32.gmra.mrb[0].mxu0 %v2430
      %v2697 = vpop.f32.mrb[0].mxu0
      %v2698 = vadd.f32 0.0, %v2697
      %v2699 = vpop.f32.mrb[0].mxu0
      %2700 = vmatprep.mubr.f32.mxu0 0.0
      %2701 = vmatmul.mubr.f32.gmra.mrb[0].mxu0 %v2431
      %v2702 = vpop.f32.mrb[0].mxu0
      %v2703 = vadd.f32 0.0, %v2702
      %v2704 = vpop.f32.mrb[0].mxu0
      %2705 = vmatprep.mubr.f32.mxu0 0.0
      %2706 = vmatmul.mubr.f32.gmra.mrb[0].mxu0 %v2432
      %v2707 = vpop.f32.mrb[0].mxu0
      %v2708 = vadd.f32 0.0, %v2707
      %v2709 = vpop.f32.mrb[0].mxu0
      %2710 = vmatprep.mubr.f32.mxu0 0.0
      %2711 = vmatmul.mubr.f32.gmra.mrb[0].mxu0 %v2433
      %v2712 = vpop.f32.mrb[0].mxu0
      %v2713 = vadd.f32 0.0, %v2712
      %v2714 = vpop.f32.mrb[0].mxu0
      %2715 = vmatprep.mubr.f32.mxu0 0.0
      %2716 = vmatmul.mubr.f32.gmra.mrb[0].mxu0 %v2434
      %v2717 = vpop.f32.mrb[0].mxu0
      %v2718 = vadd.f32 0.0, %v2717
      %v2719 = vpop.f32.mrb[0].mxu0
      %2720 = vmatprep.mubr.f32.mxu0 0.0
      %2721 = vmatmul.mubr.f32.gmra.mrb[0].mxu0 %v2435
      %v2722 = vpop.f32.mrb[0].mxu0
      %v2723 = vadd.f32 0.0, %v2722
      %v2724 = vpop.f32.mrb[0].mxu0
      %2725 = vmatprep.mubr.f32.mxu0 0.0
      %2726 = vmatmul.mubr.f32.gmra.mrb[0].mxu0 %v2436
      %v2727 = vpop.f32.mrb[0].mxu0
      %v2728 = vadd.f32 0.0, %v2727
      %v2729 = vpop.f32.mrb[0].mxu0
      %2730 = vmatprep.mubr.f32.mxu0 0.0
      %2731 = vmatmul.mubr.f32.gmra.mrb[0].mxu0 %v2437
      %v2732 = vpop.f32.mrb[0].mxu0
      %v2733 = vadd.f32 0.0, %v2732
      %v2734 = vpop.f32.mrb[0].mxu0
      %2735 = vmatprep.mubr.f32.mxu0 0.0
      %2736 = vmatmul.mubr.f32.gmra.mrb[0].mxu0 %v2438
      %v2737 = vpop.f32.mrb[0].mxu0
      %v2738 = vadd.f32 0.0, %v2737
      %v2739 = vpop.f32.mrb[0].mxu0
      %2740 = vmatprep.mubr.f32.mxu0 0.0
      %2741 = vmatmul.mubr.f32.gmra.mrb[0].mxu0 %v2439
      %v2742 = vpop.f32.mrb[0].mxu0
      %v2743 = vadd.f32 0.0, %v2742
      %v2744 = vpop.f32.mrb[0].mxu0
      %2745 = vmatprep.mubr.f32.mxu0 0.0
      %2746 = vmatmul.mubr.f32.gmra.mrb[0].mxu0 %v2440
      %v2747 = vpop.f32.mrb[0].mxu0
      %v2748 = vadd.f32 0.0, %v2747
      %v2749 = vpop.f32.mrb[0].mxu0
      %2750 = vmatprep.mubr.f32.mxu0 0.0
      %2751 = vmatmul.mubr.f32.gmra.mrb[0].mxu0 %v2441
      %v2752 = vpop.f32.mrb[0].mxu0
      %v2753 = vadd.f32 0.0, %v2752
      %v2754 = vpop.f32.mrb[0].mxu0
      %2755 = vmatprep.mubr.f32.mxu0 0.0
      %2756 = vmatmul.mubr.f32.gmra.mrb[0].mxu0 %v2442
      %v2757 = vpop.f32.mrb[0].mxu0
      %v2758 = vadd.f32 0.0, %v2757
      %v2759 = vpop.f32.mrb[0].mxu0
      %2760 = vmatprep.mubr.f32.mxu0 0.0
      %2761 = vmatmul.mubr.f32.gmra.mrb[0].mxu0 %v2443
      %v2762 = vpop.f32.mrb[0].mxu0
      %v2763 = vadd.f32 0.0, %v2762
      %v2764 = vpop.f32.mrb[0].mxu0
      %2765 = vdwg.mxu0
      %2766 = vmatprep.subr.mxu0 0.0
      %2767 = vmatpush1.msra.mxu0 %v776
      %2768 = vmatprep.subr.mxu0 0.0
      %2769 = vmatpush1.msra.mxu0 %v778
      %2770 = vmatprep.subr.mxu0 0.0
      %2771 = vmatpush1.msra.mxu0 %v780
      %2772 = vmatprep.subr.mxu0 0.0
      %2773 = vmatpush1.msra.mxu0 %v782
      %2774 = vmatprep.subr.mxu0 0.0
      %2775 = vmatpush1.msra.mxu0 %v784
      %2776 = vmatprep.subr.mxu0 0.0
      %2777 = vmatpush1.msra.mxu0 %v786
      %2778 = vmatprep.subr.mxu0 0.0
      %2779 = vmatpush1.msra.mxu0 %v788
      %2780 = vmatprep.subr.mxu0 0.0
      %2781 = vmatpush1.msra.mxu0 %v790
      %2782 = vmatprep.subr.mxu0 0.0
      %2783 = vmatpush1.msra.mxu0 %v792
      %2784 = vmatprep.subr.mxu0 0.0
      %2785 = vmatpush1.msra.mxu0 %v794
      %2786 = vmatprep.subr.mxu0 0.0
      %2787 = vmatpush1.msra.mxu0 %v796
      %2788 = vmatprep.subr.mxu0 0.0
      %2789 = vmatpush1.msra.mxu0 %v798
      %2790 = vmatprep.subr.mxu0 0.0
      %2791 = vmatpush1.msra.mxu0 %v800
      %2792 = vmatprep.subr.mxu0 0.0
      %2793 = vmatpush1.msra.mxu0 %v802
      %2794 = vmatprep.subr.mxu0 0.0
      %2795 = vmatpush1.msra.mxu0 %v804
      %2796 = vmatprep.subr.mxu0 0.0
      %2797 = vmatpush1.msra.mxu0 %v806
      %2798 = vmatprep.subr.mxu0 0.0
      %2799 = vmatpush1.msra.mxu0 0.0
      %2800 = vmatprep.subr.mxu0 0.0
      %2801 = vmatpush1.msra.mxu0 0.0
      %2802 = vmatprep.subr.mxu0 0.0
      %2803 = vmatpush1.msra.mxu0 0.0
      %2804 = vmatprep.subr.mxu0 0.0
      %2805 = vmatpush1.msra.mxu0 0.0
      %2806 = vmatprep.subr.mxu0 0.0
      %2807 = vmatpush1.msra.mxu0 0.0
      %2808 = vmatprep.subr.mxu0 0.0
      %2809 = vmatpush1.msra.mxu0 0.0
      %2810 = vmatprep.subr.mxu0 0.0
      %2811 = vmatpush1.msra.mxu0 0.0
      %2812 = vmatprep.subr.mxu0 0.0
      %2813 = vmatpush1.msra.mxu0 0.0
      %2814 = vmatprep.subr.mxu0 0.0
      %2815 = vmatpush1.msra.mxu0 0.0
      %2816 = vmatprep.subr.mxu0 0.0
      %2817 = vmatpush1.msra.mxu0 0.0
      %2818 = vmatprep.subr.mxu0 0.0
      %2819 = vmatpush1.msra.mxu0 0.0
      %2820 = vmatprep.subr.mxu0 0.0
      %2821 = vmatpush1.msra.mxu0 0.0
      %2822 = vmatprep.subr.mxu0 0.0
      %2823 = vmatpush1.msra.mxu0 0.0
      %2824 = vmatprep.subr.mxu0 0.0
      %2825 = vmatpush1.msra.mxu0 0.0
      %2826 = vmatprep.subr.mxu0 0.0
      %2827 = vmatpush1.msra.mxu0 0.0
      %2828 = vmatprep.subr.mxu0 0.0
      %2829 = vmatpush1.msra.mxu0 0.0
      %2830 = vmatprep.mubr.f32.mxu0 0.0
      %2831 = vmatmul.mubr.f32.gmra.mrb[0].mxu0 %v2444
      %v2832 = vpop.f32.mrb[0].mxu0
      %v2833 = vadd.f32 0.0, %v2832
      %v2834 = vpop.f32.mrb[0].mxu0
      %2835 = vmatprep.mubr.f32.mxu0 0.0
      %2836 = vmatmul.mubr.f32.gmra.mrb[0].mxu0 %v2445
      %v2837 = vpop.f32.mrb[0].mxu0
      %v2838 = vadd.f32 0.0, %v2837
      %v2839 = vpop.f32.mrb[0].mxu0
      %2840 = vmatprep.mubr.f32.mxu0 0.0
      %2841 = vmatmul.mubr.f32.gmra.mrb[0].mxu0 %v2446
      %v2842 = vpop.f32.mrb[0].mxu0
      %v2843 = vadd.f32 0.0, %v2842
      %v2844 = vpop.f32.mrb[0].mxu0
      %2845 = vmatprep.mubr.f32.mxu0 0.0
      %2846 = vmatmul.mubr.f32.gmra.mrb[0].mxu0 %v2447
      %v2847 = vpop.f32.mrb[0].mxu0
      %v2848 = vadd.f32 0.0, %v2847
      %v2849 = vpop.f32.mrb[0].mxu0
      %2850 = vmatprep.mubr.f32.mxu0 0.0
      %2851 = vmatmul.mubr.f32.gmra.mrb[0].mxu0 %v2448
      %v2852 = vpop.f32.mrb[0].mxu0
      %v2853 = vadd.f32 0.0, %v2852
      %v2854 = vpop.f32.mrb[0].mxu0
      %2855 = vmatprep.mubr.f32.mxu0 0.0
      %2856 = vmatmul.mubr.f32.gmra.mrb[0].mxu0 %v2449
      %v2857 = vpop.f32.mrb[0].mxu0
      %v2858 = vadd.f32 0.0, %v2857
      %v2859 = vpop.f32.mrb[0].mxu0
      %2860 = vmatprep.mubr.f32.mxu0 0.0
      %2861 = vmatmul.mubr.f32.gmra.mrb[0].mxu0 %v2450
      %v2862 = vpop.f32.mrb[0].mxu0
      %v2863 = vadd.f32 0.0, %v2862
      %v2864 = vpop.f32.mrb[0].mxu0
      %2865 = vmatprep.mubr.f32.mxu0 0.0
      %2866 = vmatmul.mubr.f32.gmra.mrb[0].mxu0 %v2451
      %v2867 = vpop.f32.mrb[0].mxu0
      %v2868 = vadd.f32 0.0, %v2867
      %v2869 = vpop.f32.mrb[0].mxu0
      %2870 = vmatprep.mubr.f32.mxu0 0.0
      %2871 = vmatmul.mubr.f32.gmra.mrb[0].mxu0 %v2452
      %v2872 = vpop.f32.mrb[0].mxu0
      %v2873 = vadd.f32 0.0, %v2872
      %v2874 = vpop.f32.mrb[0].mxu0
      %2875 = vmatprep.mubr.f32.mxu0 0.0
      %2876 = vmatmul.mubr.f32.gmra.mrb[0].mxu0 %v2453
      %v2877 = vpop.f32.mrb[0].mxu0
      %v2878 = vadd.f32 0.0, %v2877
      %v2879 = vpop.f32.mrb[0].mxu0
      %2880 = vmatprep.mubr.f32.mxu0 0.0
      %2881 = vmatmul.mubr.f32.gmra.mrb[0].mxu0 %v2454
      %v2882 = vpop.f32.mrb[0].mxu0
      %v2883 = vadd.f32 0.0, %v2882
      %v2884 = vpop.f32.mrb[0].mxu0
      %2885 = vmatprep.mubr.f32.mxu0 0.0
      %2886 = vmatmul.mubr.f32.gmra.mrb[0].mxu0 %v2455
      %v2887 = vpop.f32.mrb[0].mxu0
      %v2888 = vadd.f32 0.0, %v2887
      %v2889 = vpop.f32.mrb[0].mxu0
      %2890 = vmatprep.mubr.f32.mxu0 0.0
      %2891 = vmatmul.mubr.f32.gmra.mrb[0].mxu0 %v2456
      %v2892 = vpop.f32.mrb[0].mxu0
      %v2893 = vadd.f32 0.0, %v2892
      %v2894 = vpop.f32.mrb[0].mxu0
      %2895 = vmatprep.mubr.f32.mxu0 0.0
      %2896 = vmatmul.mubr.f32.gmra.mrb[0].mxu0 %v2457
      %v2897 = vpop.f32.mrb[0].mxu0
      %v2898 = vadd.f32 0.0, %v2897
      %v2899 = vpop.f32.mrb[0].mxu0
      %2900 = vmatprep.mubr.f32.mxu0 0.0
      %2901 = vmatmul.mubr.f32.gmra.mrb[0].mxu0 %v2458
      %v2902 = vpop.f32.mrb[0].mxu0
      %v2903 = vadd.f32 0.0, %v2902
      %v2904 = vpop.f32.mrb[0].mxu0
      %2905 = vmatprep.mubr.f32.mxu0 0.0
      %2906 = vmatmul.mubr.f32.gmra.mrb[0].mxu0 %v2459
      %v2907 = vpop.f32.mrb[0].mxu0
      %v2908 = vadd.f32 0.0, %v2907
      %v2909 = vpop.f32.mrb[0].mxu0
      %2910 = vdwg.mxu0
      %2911 = vmatprep.subr.mxu0 0.0
      %2912 = vmatpush1.msra.mxu0 %v808
      %2913 = vmatprep.subr.mxu0 0.0
      %2914 = vmatpush1.msra.mxu0 %v810
      %2915 = vmatprep.subr.mxu0 0.0
      %2916 = vmatpush1.msra.mxu0 %v812
      %2917 = vmatprep.subr.mxu0 0.0
      %2918 = vmatpush1.msra.mxu0 %v814
      %2919 = vmatprep.subr.mxu0 0.0
      %2920 = vmatpush1.msra.mxu0 %v816
      %2921 = vmatprep.subr.mxu0 0.0
      %2922 = vmatpush1.msra.mxu0 %v818
      %2923 = vmatprep.subr.mxu0 0.0
      %2924 = vmatpush1.msra.mxu0 %v820
      %2925 = vmatprep.subr.mxu0 0.0
      %2926 = vmatpush1.msra.mxu0 %v822
      %2927 = vmatprep.subr.mxu0 0.0
      %2928 = vmatpush1.msra.mxu0 %v824
      %2929 = vmatprep.subr.mxu0 0.0
      %2930 = vmatpush1.msra.mxu0 %v826
      %2931 = vmatprep.subr.mxu0 0.0
      %2932 = vmatpush1.msra.mxu0 %v828
      %2933 = vmatprep.subr.mxu0 0.0
      %2934 = vmatpush1.msra.mxu0 %v830
      %2935 = vmatprep.subr.mxu0 0.0
      %2936 = vmatpush1.msra.mxu0 %v832
      %2937 = vmatprep.subr.mxu0 0.0
      %2938 = vmatpush1.msra.mxu0 %v834
      %2939 = vmatprep.subr.mxu0 0.0
      %2940 = vmatpush1.msra.mxu0 %v836
      %2941 = vmatprep.subr.mxu0 0.0
      %2942 = vmatpush1.msra.mxu0 %v838
      %2943 = vmatprep.subr.mxu0 0.0
      %2944 = vmatpush1.msra.mxu0 0.0
      %2945 = vmatprep.subr.mxu0 0.0
      %2946 = vmatpush1.msra.mxu0 0.0
      %2947 = vmatprep.subr.mxu0 0.0
      %2948 = vmatpush1.msra.mxu0 0.0
      %2949 = vmatprep.subr.mxu0 0.0
      %2950 = vmatpush1.msra.mxu0 0.0
      %2951 = vmatprep.subr.mxu0 0.0
      %2952 = vmatpush1.msra.mxu0 0.0
      %2953 = vmatprep.subr.mxu0 0.0
      %2954 = vmatpush1.msra.mxu0 0.0
      %2955 = vmatprep.subr.mxu0 0.0
      %2956 = vmatpush1.msra.mxu0 0.0
      %2957 = vmatprep.subr.mxu0 0.0
      %2958 = vmatpush1.msra.mxu0 0.0
      %2959 = vmatprep.subr.mxu0 0.0
      %2960 = vmatpush1.msra.mxu0 0.0
      %2961 = vmatprep.subr.mxu0 0.0
      %2962 = vmatpush1.msra.mxu0 0.0
      %2963 = vmatprep.subr.mxu0 0.0
      %2964 = vmatpush1.msra.mxu0 0.0
      %2965 = vmatprep.subr.mxu0 0.0
      %2966 = vmatpush1.msra.mxu0 0.0
      %2967 = vmatprep.subr.mxu0 0.0
      %2968 = vmatpush1.msra.mxu0 0.0
      %2969 = vmatprep.subr.mxu0 0.0
      %2970 = vmatpush1.msra.mxu0 0.0
      %2971 = vmatprep.subr.mxu0 0.0
      %2972 = vmatpush1.msra.mxu0 0.0
      %2973 = vmatprep.subr.mxu0 0.0
      %2974 = vmatpush1.msra.mxu0 0.0
      %2975 = vmatprep.mubr.f32.mxu0 0.0
      %2976 = vmatmul.mubr.f32.gmra.mrb[0].mxu0 %v2460
      %v2977 = vpop.f32.mrb[0].mxu0
      %v2978 = vadd.f32 0.0, %v2977
      %v2979 = vpop.f32.mrb[0].mxu0
      %2980 = vmatprep.mubr.f32.mxu0 0.0
      %2981 = vmatmul.mubr.f32.gmra.mrb[0].mxu0 %v2461
      %v2982 = vpop.f32.mrb[0].mxu0
      %v2983 = vadd.f32 0.0, %v2982
      %v2984 = vpop.f32.mrb[0].mxu0
      %2985 = vmatprep.mubr.f32.mxu0 0.0
      %2986 = vmatmul.mubr.f32.gmra.mrb[0].mxu0 %v2462
      %v2987 = vpop.f32.mrb[0].mxu0
      %v2988 = vadd.f32 0.0, %v2987
      %v2989 = vpop.f32.mrb[0].mxu0
      %2990 = vmatprep.mubr.f32.mxu0 0.0
      %2991 = vmatmul.mubr.f32.gmra.mrb[0].mxu0 %v2463
      %v2992 = vpop.f32.mrb[0].mxu0
      %v2993 = vadd.f32 0.0, %v2992
      %v2994 = vpop.f32.mrb[0].mxu0
      %2995 = vmatprep.mubr.f32.mxu0 0.0
      %2996 = vmatmul.mubr.f32.gmra.mrb[0].mxu0 %v2464
      %v2997 = vpop.f32.mrb[0].mxu0
      %v2998 = vadd.f32 0.0, %v2997
      %v2999 = vpop.f32.mrb[0].mxu0
      %3000 = vmatprep.mubr.f32.mxu0 0.0
      %3001 = vmatmul.mubr.f32.gmra.mrb[0].mxu0 %v2465
      %v3002 = vpop.f32.mrb[0].mxu0
      %v3003 = vadd.f32 0.0, %v3002
      %v3004 = vpop.f32.mrb[0].mxu0
      %3005 = vmatprep.mubr.f32.mxu0 0.0
      %3006 = vmatmul.mubr.f32.gmra.mrb[0].mxu0 %v2466
      %v3007 = vpop.f32.mrb[0].mxu0
      %v3008 = vadd.f32 0.0, %v3007
      %v3009 = vpop.f32.mrb[0].mxu0
      %3010 = vmatprep.mubr.f32.mxu0 0.0
      %3011 = vmatmul.mubr.f32.gmra.mrb[0].mxu0 %v2467
      %v3012 = vpop.f32.mrb[0].mxu0
      %v3013 = vadd.f32 0.0, %v3012
      %v3014 = vpop.f32.mrb[0].mxu0
      %3015 = vmatprep.mubr.f32.mxu0 0.0
      %3016 = vmatmul.mubr.f32.gmra.mrb[0].mxu0 %v2468
      %v3017 = vpop.f32.mrb[0].mxu0
      %v3018 = vadd.f32 0.0, %v3017
      %v3019 = vpop.f32.mrb[0].mxu0
      %3020 = vmatprep.mubr.f32.mxu0 0.0
      %3021 = vmatmul.mubr.f32.gmra.mrb[0].mxu0 %v2469
      %v3022 = vpop.f32.mrb[0].mxu0
      %v3023 = vadd.f32 0.0, %v3022
      %v3024 = vpop.f32.mrb[0].mxu0
      %3025 = vmatprep.mubr.f32.mxu0 0.0
      %3026 = vmatmul.mubr.f32.gmra.mrb[0].mxu0 %v2470
      %v3027 = vpop.f32.mrb[0].mxu0
      %v3028 = vadd.f32 0.0, %v3027
      %v3029 = vpop.f32.mrb[0].mxu0
      %3030 = vmatprep.mubr.f32.mxu0 0.0
      %3031 = vmatmul.mubr.f32.gmra.mrb[0].mxu0 %v2471
      %v3032 = vpop.f32.mrb[0].mxu0
      %v3033 = vadd.f32 0.0, %v3032
      %v3034 = vpop.f32.mrb[0].mxu0
      %3035 = vmatprep.mubr.f32.mxu0 0.0
      %3036 = vmatmul.mubr.f32.gmra.mrb[0].mxu0 %v2472
      %v3037 = vpop.f32.mrb[0].mxu0
      %v3038 = vadd.f32 0.0, %v3037
      %v3039 = vpop.f32.mrb[0].mxu0
      %3040 = vmatprep.mubr.f32.mxu0 0.0
      %3041 = vmatmul.mubr.f32.gmra.mrb[0].mxu0 %v2473
      %v3042 = vpop.f32.mrb[0].mxu0
      %v3043 = vadd.f32 0.0, %v3042
      %v3044 = vpop.f32.mrb[0].mxu0
      %3045 = vmatprep.mubr.f32.mxu0 0.0
      %3046 = vmatmul.mubr.f32.gmra.mrb[0].mxu0 %v2474
      %v3047 = vpop.f32.mrb[0].mxu0
      %v3048 = vadd.f32 0.0, %v3047
      %v3049 = vpop.f32.mrb[0].mxu0
      %3050 = vmatprep.mubr.f32.mxu0 0.0
      %3051 = vmatmul.mubr.f32.gmra.mrb[0].mxu0 %v2475
      %v3052 = vpop.f32.mrb[0].mxu0
      %v3053 = vadd.f32 0.0, %v3052
      %v3054 = vpop.f32.mrb[0].mxu0
      %3055 = vdwg.mxu0
      %3088 = vrot.lane.b32.xlu0 %v2833, 32
      %v3089 = vpop.permute.xlu0 %3088
      %3090 = vrot.lane.b32.xlu0 %v2838, 32
      %v3091 = vpop.permute.xlu0 %3090
      %3092 = vrot.lane.b32.xlu0 %v2843, 32
      %v3093 = vpop.permute.xlu0 %3092
      %3094 = vrot.lane.b32.xlu0 %v2848, 32
      %v3095 = vpop.permute.xlu0 %3094
      %3096 = vrot.lane.b32.xlu0 %v2853, 32
      %v3097 = vpop.permute.xlu0 %3096
      %3098 = vrot.lane.b32.xlu0 %v2858, 32
      %v3099 = vpop.permute.xlu0 %3098
      %3100 = vrot.lane.b32.xlu0 %v2863, 32
      %v3101 = vpop.permute.xlu0 %3100
      %3102 = vrot.lane.b32.xlu0 %v2868, 32
      %v3103 = vpop.permute.xlu0 %3102
      %3104 = vrot.lane.b32.xlu0 %v2873, 32
      %v3105 = vpop.permute.xlu0 %3104
      %3106 = vrot.lane.b32.xlu0 %v2878, 32
      %v3107 = vpop.permute.xlu0 %3106
      %3108 = vrot.lane.b32.xlu0 %v2883, 32
      %v3109 = vpop.permute.xlu0 %3108
      %3110 = vrot.lane.b32.xlu0 %v2888, 32
      %v3111 = vpop.permute.xlu0 %3110
      %3112 = vrot.lane.b32.xlu0 %v2893, 32
      %v3113 = vpop.permute.xlu0 %3112
      %3114 = vrot.lane.b32.xlu0 %v2898, 32
      %v3115 = vpop.permute.xlu0 %3114
      %3116 = vrot.lane.b32.xlu0 %v2903, 32
      %v3117 = vpop.permute.xlu0 %3116
      %3118 = vrot.lane.b32.xlu0 %v2908, 32
      %v3119 = vpop.permute.xlu0 %3118
      %3120 = vrot.lane.b32.xlu0 %v2978, 32
      %v3121 = vpop.permute.xlu0 %3120
      %3122 = vrot.lane.b32.xlu0 %v2983, 32
      %v3123 = vpop.permute.xlu0 %3122
      %3124 = vrot.lane.b32.xlu0 %v2988, 32
      %v3125 = vpop.permute.xlu0 %3124
      %3126 = vrot.lane.b32.xlu0 %v2993, 32
      %v3127 = vpop.permute.xlu0 %3126
      %3128 = vrot.lane.b32.xlu0 %v2998, 32
      %v3129 = vpop.permute.xlu0 %3128
      %3130 = vrot.lane.b32.xlu0 %v3003, 32
      %v3131 = vpop.permute.xlu0 %3130
      %3132 = vrot.lane.b32.xlu0 %v3008, 32
      %v3133 = vpop.permute.xlu0 %3132
      %3134 = vrot.lane.b32.xlu0 %v3013, 32
      %v3135 = vpop.permute.xlu0 %3134
      %3136 = vrot.lane.b32.xlu0 %v3018, 32
      %v3137 = vpop.permute.xlu0 %3136
      %3138 = vrot.lane.b32.xlu0 %v3023, 32
      %v3139 = vpop.permute.xlu0 %3138
      %3140 = vrot.lane.b32.xlu0 %v3028, 32
      %v3141 = vpop.permute.xlu0 %3140
      %3142 = vrot.lane.b32.xlu0 %v3033, 32
      %v3143 = vpop.permute.xlu0 %3142
      %3144 = vrot.lane.b32.xlu0 %v3038, 32
      %v3145 = vpop.permute.xlu0 %3144
      %3146 = vrot.lane.b32.xlu0 %v3043, 32
      %v3147 = vpop.permute.xlu0 %3146
      %3148 = vrot.lane.b32.xlu0 %v3048, 32
      %v3149 = vpop.permute.xlu0 %3148
      %3150 = vrot.lane.b32.xlu0 %v3053, 32
      %v3151 = vpop.permute.xlu0 %3150
      %v3184 = vsel %vm903, %v2543, %v3089
      %v3185 = vsel %vm903, %v2548, %v3091
      %v3186 = vsel %vm903, %v2553, %v3093
      %v3187 = vsel %vm903, %v2558, %v3095
      %v3188 = vsel %vm903, %v2563, %v3097
      %v3189 = vsel %vm903, %v2568, %v3099
      %v3190 = vsel %vm903, %v2573, %v3101
      %v3191 = vsel %vm903, %v2578, %v3103
      %v3192 = vsel %vm903, %v2583, %v3105
      %v3193 = vsel %vm903, %v2588, %v3107
      %v3194 = vsel %vm903, %v2593, %v3109
      %v3195 = vsel %vm903, %v2598, %v3111
      %v3196 = vsel %vm903, %v2603, %v3113
      %v3197 = vsel %vm903, %v2608, %v3115
      %v3198 = vsel %vm903, %v2613, %v3117
      %v3199 = vsel %vm903, %v2618, %v3119
      %v3200 = vsel %vm903, %v2688, %v3121
      %v3201 = vsel %vm903, %v2693, %v3123
      %v3202 = vsel %vm903, %v2698, %v3125
      %v3203 = vsel %vm903, %v2703, %v3127
      %v3204 = vsel %vm903, %v2708, %v3129
      %v3205 = vsel %vm903, %v2713, %v3131
      %v3206 = vsel %vm903, %v2718, %v3133
      %v3207 = vsel %vm903, %v2723, %v3135
      %v3208 = vsel %vm903, %v2728, %v3137
      %v3209 = vsel %vm903, %v2733, %v3139
      %v3210 = vsel %vm903, %v2738, %v3141
      %v3211 = vsel %vm903, %v2743, %v3143
      %v3212 = vsel %vm903, %v2748, %v3145
      %v3213 = vsel %vm903, %v2753, %v3147
      %v3214 = vsel %vm903, %v2758, %v3149
      %v3215 = vsel %vm903, %v2763, %v3151
      %v3216 = vld [vmem:[%s3] sm:$0xff]
      %v3217 = vld [vmem:[%s3 + $0x8] sm:$0xff]
      %v3218 = vld [vmem:[%s3 + $0x10] sm:$0xff]
      %v3219 = vld [vmem:[%s3 + $0x18] sm:$0xff]
      %v3220 = vld [vmem:[%s3 + $0x20] sm:$0xff]
      %v3221 = vld [vmem:[%s3 + $0x28] sm:$0xff]
      %v3222 = vld [vmem:[%s3 + $0x30] sm:$0xff]
      %v3223 = vld [vmem:[%s3 + $0x38] sm:$0xff]
      %v3224 = vld [vmem:[%s4] sm:$0x1]
      %v3226 = vlaneseq
      %v3227 = vshrl.u32 %v3226, 7
      %v3228 = vsub.s32 0, %v3227
      %v3229 = vrot.slane %v3224, %v3228
      %v3232 = vsel %vm293, %v3184, 0
      %v3235 = vsel %vm293, %v3185, 0
      %v3238 = vsel %vm293, %v3186, 0
      %v3241 = vsel %vm293, %v3187, 0
      %v3244 = vsel %vm293, %v3188, 0
      %v3247 = vsel %vm293, %v3189, 0
      %v3250 = vsel %vm293, %v3190, 0
      %v3253 = vsel %vm293, %v3191, 0
      %v3256 = vsel %vm293, %v3192, 0
      %v3259 = vsel %vm293, %v3193, 0
      %v3262 = vsel %vm293, %v3194, 0
      %v3265 = vsel %vm293, %v3195, 0
      %v3268 = vsel %vm293, %v3196, 0
      %v3271 = vsel %vm293, %v3197, 0
      %v3274 = vsel %vm293, %v3198, 0
      %v3277 = vsel %vm293, %v3199, 0
      %v3280 = vsel %vm293, %v3200, 0
      %v3283 = vsel %vm293, %v3201, 0
      %v3286 = vsel %vm293, %v3202, 0
      %v3289 = vsel %vm293, %v3203, 0
      %v3292 = vsel %vm293, %v3204, 0
      %v3295 = vsel %vm293, %v3205, 0
      %v3298 = vsel %vm293, %v3206, 0
      %v3301 = vsel %vm293, %v3207, 0
      %v3304 = vsel %vm293, %v3208, 0
      %v3307 = vsel %vm293, %v3209, 0
      %v3310 = vsel %vm293, %v3210, 0
      %v3313 = vsel %vm293, %v3211, 0
      %v3316 = vsel %vm293, %v3212, 0
      %v3319 = vsel %vm293, %v3213, 0
      %v3322 = vsel %vm293, %v3214, 0
      %v3325 = vsel %vm293, %v3215, 0
      %3327 = vmatprep.subr.mxu0 0.0
      %3328 = vmatpush1.msra.mxu0 %v3216
      %3329 = vmatprep.subr.mxu0 0.0
      %3330 = vmatpush1.msra.mxu0 %v3217
      %3331 = vmatprep.subr.mxu0 0.0
      %3332 = vmatpush1.msra.mxu0 %v3218
      %3333 = vmatprep.subr.mxu0 0.0
      %3334 = vmatpush1.msra.mxu0 %v3219
      %3335 = vmatprep.subr.mxu0 0.0
      %3336 = vmatpush1.msra.mxu0 %v3220
      %3337 = vmatprep.subr.mxu0 0.0
      %3338 = vmatpush1.msra.mxu0 %v3221
      %3339 = vmatprep.subr.mxu0 0.0
      %3340 = vmatpush1.msra.mxu0 %v3222
      %3341 = vmatprep.subr.mxu0 0.0
      %3342 = vmatpush1.msra.mxu0 %v3223
      %3343 = vmatprep.subr.mxu0 0.0
      %3344 = vmatpush1.msra.mxu0 0.0
      %3345 = vmatprep.subr.mxu0 0.0
      %3346 = vmatpush1.msra.mxu0 0.0
      %3347 = vmatprep.subr.mxu0 0.0
      %3348 = vmatpush1.msra.mxu0 0.0
      %3349 = vmatprep.subr.mxu0 0.0
      %3350 = vmatpush1.msra.mxu0 0.0
      %3351 = vmatprep.subr.mxu0 0.0
      %3352 = vmatpush1.msra.mxu0 0.0
      %3353 = vmatprep.subr.mxu0 0.0
      %3354 = vmatpush1.msra.mxu0 0.0
      %3355 = vmatprep.subr.mxu0 0.0
      %3356 = vmatpush1.msra.mxu0 0.0
      %3357 = vmatprep.subr.mxu0 0.0
      %3358 = vmatpush1.msra.mxu0 0.0
      %3359 = vmatprep.subr.mxu0 0.0
      %3360 = vmatpush1.msra.mxu0 0.0
      %3361 = vmatprep.subr.mxu0 0.0
      %3362 = vmatpush1.msra.mxu0 0.0
      %3363 = vmatprep.subr.mxu0 0.0
      %3364 = vmatpush1.msra.mxu0 0.0
      %3365 = vmatprep.subr.mxu0 0.0
      %3366 = vmatpush1.msra.mxu0 0.0
      %3367 = vmatprep.subr.mxu0 0.0
      %3368 = vmatpush1.msra.mxu0 0.0
      %3369 = vmatprep.subr.mxu0 0.0
      %3370 = vmatpush1.msra.mxu0 0.0
      %3371 = vmatprep.subr.mxu0 0.0
      %3372 = vmatpush1.msra.mxu0 0.0
      %3373 = vmatprep.subr.mxu0 0.0
      %3374 = vmatpush1.msra.mxu0 0.0
      %3375 = vmatprep.subr.mxu0 0.0
      %3376 = vmatpush1.msra.mxu0 0.0
      %3377 = vmatprep.subr.mxu0 0.0
      %3378 = vmatpush1.msra.mxu0 0.0
      %3379 = vmatprep.subr.mxu0 0.0
      %3380 = vmatpush1.msra.mxu0 0.0
      %3381 = vmatprep.subr.mxu0 0.0
      %3382 = vmatpush1.msra.mxu0 0.0
      %3383 = vmatprep.subr.mxu0 0.0
      %3384 = vmatpush1.msra.mxu0 0.0
      %3385 = vmatprep.subr.mxu0 0.0
      %3386 = vmatpush1.msra.mxu0 0.0
      %3387 = vmatprep.subr.mxu0 0.0
      %3388 = vmatpush1.msra.mxu0 0.0
      %3389 = vmatprep.subr.mxu0 0.0
      %3390 = vmatpush1.msra.mxu0 0.0
      %3391 = vmatprep.mubr.f32.mxu0 0.0
      %3392 = vmatmul.mubr.f32.gmra.mrb[0].mxu0 %v3232
      %v3393 = vpop.f32.mrb[0].mxu0
      %v3394 = vadd.f32 %v3229, %v3393
      %v3395 = vpop.f32.mrb[0].mxu0
      %3396 = vmatprep.mubr.f32.mxu0 0.0
      %3397 = vmatmul.mubr.f32.gmra.mrb[0].mxu0 %v3235
      %v3398 = vpop.f32.mrb[0].mxu0
      %v3399 = vadd.f32 %v3229, %v3398
      %v3400 = vpop.f32.mrb[0].mxu0
      %3401 = vmatprep.mubr.f32.mxu0 0.0
      %3402 = vmatmul.mubr.f32.gmra.mrb[0].mxu0 %v3238
      %v3403 = vpop.f32.mrb[0].mxu0
      %v3404 = vadd.f32 %v3229, %v3403
      %v3405 = vpop.f32.mrb[0].mxu0
      %3406 = vmatprep.mubr.f32.mxu0 0.0
      %3407 = vmatmul.mubr.f32.gmra.mrb[0].mxu0 %v3241
      %v3408 = vpop.f32.mrb[0].mxu0
      %v3409 = vadd.f32 %v3229, %v3408
      %v3410 = vpop.f32.mrb[0].mxu0
      %3411 = vmatprep.mubr.f32.mxu0 0.0
      %3412 = vmatmul.mubr.f32.gmra.mrb[0].mxu0 %v3244
      %v3413 = vpop.f32.mrb[0].mxu0
      %v3414 = vadd.f32 %v3229, %v3413
      %v3415 = vpop.f32.mrb[0].mxu0
      %3416 = vmatprep.mubr.f32.mxu0 0.0
      %3417 = vmatmul.mubr.f32.gmra.mrb[0].mxu0 %v3247
      %v3418 = vpop.f32.mrb[0].mxu0
      %v3419 = vadd.f32 %v3229, %v3418
      %v3420 = vpop.f32.mrb[0].mxu0
      %3421 = vmatprep.mubr.f32.mxu0 0.0
      %3422 = vmatmul.mubr.f32.gmra.mrb[0].mxu0 %v3250
      %v3423 = vpop.f32.mrb[0].mxu0
      %v3424 = vadd.f32 %v3229, %v3423
      %v3425 = vpop.f32.mrb[0].mxu0
      %3426 = vmatprep.mubr.f32.mxu0 0.0
      %3427 = vmatmul.mubr.f32.gmra.mrb[0].mxu0 %v3253
      %v3428 = vpop.f32.mrb[0].mxu0
      %v3429 = vadd.f32 %v3229, %v3428
      %v3430 = vpop.f32.mrb[0].mxu0
      %3431 = vmatprep.mubr.f32.mxu0 0.0
      %3432 = vmatmul.mubr.f32.gmra.mrb[0].mxu0 %v3256
      %v3433 = vpop.f32.mrb[0].mxu0
      %v3434 = vadd.f32 %v3229, %v3433
      %v3435 = vpop.f32.mrb[0].mxu0
      %3436 = vmatprep.mubr.f32.mxu0 0.0
      %3437 = vmatmul.mubr.f32.gmra.mrb[0].mxu0 %v3259
      %v3438 = vpop.f32.mrb[0].mxu0
      %v3439 = vadd.f32 %v3229, %v3438
      %v3440 = vpop.f32.mrb[0].mxu0
      %3441 = vmatprep.mubr.f32.mxu0 0.0
      %3442 = vmatmul.mubr.f32.gmra.mrb[0].mxu0 %v3262
      %v3443 = vpop.f32.mrb[0].mxu0
      %v3444 = vadd.f32 %v3229, %v3443
      %v3445 = vpop.f32.mrb[0].mxu0
      %3446 = vmatprep.mubr.f32.mxu0 0.0
      %3447 = vmatmul.mubr.f32.gmra.mrb[0].mxu0 %v3265
      %v3448 = vpop.f32.mrb[0].mxu0
      %v3449 = vadd.f32 %v3229, %v3448
      %v3450 = vpop.f32.mrb[0].mxu0
      %3451 = vmatprep.mubr.f32.mxu0 0.0
      %3452 = vmatmul.mubr.f32.gmra.mrb[0].mxu0 %v3268
      %v3453 = vpop.f32.mrb[0].mxu0
      %v3454 = vadd.f32 %v3229, %v3453
      %v3455 = vpop.f32.mrb[0].mxu0
      %3456 = vmatprep.mubr.f32.mxu0 0.0
      %3457 = vmatmul.mubr.f32.gmra.mrb[0].mxu0 %v3271
      %v3458 = vpop.f32.mrb[0].mxu0
      %v3459 = vadd.f32 %v3229, %v3458
      %v3460 = vpop.f32.mrb[0].mxu0
      %3461 = vmatprep.mubr.f32.mxu0 0.0
      %3462 = vmatmul.mubr.f32.gmra.mrb[0].mxu0 %v3274
      %v3463 = vpop.f32.mrb[0].mxu0
      %v3464 = vadd.f32 %v3229, %v3463
      %v3465 = vpop.f32.mrb[0].mxu0
      %3466 = vmatprep.mubr.f32.mxu0 0.0
      %3467 = vmatmul.mubr.f32.gmra.mrb[0].mxu0 %v3277
      %v3468 = vpop.f32.mrb[0].mxu0
      %v3469 = vadd.f32 %v3229, %v3468
      %v3470 = vpop.f32.mrb[0].mxu0
      %3471 = vmatprep.mubr.f32.mxu0 0.0
      %3472 = vmatmul.mubr.f32.gmra.mrb[0].mxu0 %v3280
      %v3473 = vpop.f32.mrb[0].mxu0
      %v3474 = vadd.f32 %v3229, %v3473
      %v3475 = vpop.f32.mrb[0].mxu0
      %3476 = vmatprep.mubr.f32.mxu0 0.0
      %3477 = vmatmul.mubr.f32.gmra.mrb[0].mxu0 %v3283
      %v3478 = vpop.f32.mrb[0].mxu0
      %v3479 = vadd.f32 %v3229, %v3478
      %v3480 = vpop.f32.mrb[0].mxu0
      %3481 = vmatprep.mubr.f32.mxu0 0.0
      %3482 = vmatmul.mubr.f32.gmra.mrb[0].mxu0 %v3286
      %v3483 = vpop.f32.mrb[0].mxu0
      %v3484 = vadd.f32 %v3229, %v3483
      %v3485 = vpop.f32.mrb[0].mxu0
      %3486 = vmatprep.mubr.f32.mxu0 0.0
      %3487 = vmatmul.mubr.f32.gmra.mrb[0].mxu0 %v3289
      %v3488 = vpop.f32.mrb[0].mxu0
      %v3489 = vadd.f32 %v3229, %v3488
      %v3490 = vpop.f32.mrb[0].mxu0
      %3491 = vmatprep.mubr.f32.mxu0 0.0
      %3492 = vmatmul.mubr.f32.gmra.mrb[0].mxu0 %v3292
      %v3493 = vpop.f32.mrb[0].mxu0
      %v3494 = vadd.f32 %v3229, %v3493
      %v3495 = vpop.f32.mrb[0].mxu0
      %3496 = vmatprep.mubr.f32.mxu0 0.0
      %3497 = vmatmul.mubr.f32.gmra.mrb[0].mxu0 %v3295
      %v3498 = vpop.f32.mrb[0].mxu0
      %v3499 = vadd.f32 %v3229, %v3498
      %v3500 = vpop.f32.mrb[0].mxu0
      %3501 = vmatprep.mubr.f32.mxu0 0.0
      %3502 = vmatmul.mubr.f32.gmra.mrb[0].mxu0 %v3298
      %v3503 = vpop.f32.mrb[0].mxu0
      %v3504 = vadd.f32 %v3229, %v3503
      %v3505 = vpop.f32.mrb[0].mxu0
      %3506 = vmatprep.mubr.f32.mxu0 0.0
      %3507 = vmatmul.mubr.f32.gmra.mrb[0].mxu0 %v3301
      %v3508 = vpop.f32.mrb[0].mxu0
      %v3509 = vadd.f32 %v3229, %v3508
      %v3510 = vpop.f32.mrb[0].mxu0
      %3511 = vmatprep.mubr.f32.mxu0 0.0
      %3512 = vmatmul.mubr.f32.gmra.mrb[0].mxu0 %v3304
      %v3513 = vpop.f32.mrb[0].mxu0
      %v3514 = vadd.f32 %v3229, %v3513
      %v3515 = vpop.f32.mrb[0].mxu0
      %3516 = vmatprep.mubr.f32.mxu0 0.0
      %3517 = vmatmul.mubr.f32.gmra.mrb[0].mxu0 %v3307
      %v3518 = vpop.f32.mrb[0].mxu0
      %v3519 = vadd.f32 %v3229, %v3518
      %v3520 = vpop.f32.mrb[0].mxu0
      %3521 = vmatprep.mubr.f32.mxu0 0.0
      %3522 = vmatmul.mubr.f32.gmra.mrb[0].mxu0 %v3310
      %v3523 = vpop.f32.mrb[0].mxu0
      %v3524 = vadd.f32 %v3229, %v3523
      %v3525 = vpop.f32.mrb[0].mxu0
      %3526 = vmatprep.mubr.f32.mxu0 0.0
      %3527 = vmatmul.mubr.f32.gmra.mrb[0].mxu0 %v3313
      %v3528 = vpop.f32.mrb[0].mxu0
      %v3529 = vadd.f32 %v3229, %v3528
      %v3530 = vpop.f32.mrb[0].mxu0
      %3531 = vmatprep.mubr.f32.mxu0 0.0
      %3532 = vmatmul.mubr.f32.gmra.mrb[0].mxu0 %v3316
      %v3533 = vpop.f32.mrb[0].mxu0
      %v3534 = vadd.f32 %v3229, %v3533
      %v3535 = vpop.f32.mrb[0].mxu0
      %3536 = vmatprep.mubr.f32.mxu0 0.0
      %3537 = vmatmul.mubr.f32.gmra.mrb[0].mxu0 %v3319
      %v3538 = vpop.f32.mrb[0].mxu0
      %v3539 = vadd.f32 %v3229, %v3538
      %v3540 = vpop.f32.mrb[0].mxu0
      %3541 = vmatprep.mubr.f32.mxu0 0.0
      %3542 = vmatmul.mubr.f32.gmra.mrb[0].mxu0 %v3322
      %v3543 = vpop.f32.mrb[0].mxu0
      %v3544 = vadd.f32 %v3229, %v3543
      %v3545 = vpop.f32.mrb[0].mxu0
      %3546 = vmatprep.mubr.f32.mxu0 0.0
      %3547 = vmatmul.mubr.f32.gmra.mrb[0].mxu0 %v3325
      %v3548 = vpop.f32.mrb[0].mxu0
      %v3549 = vadd.f32 %v3229, %v3548
      %v3550 = vpop.f32.mrb[0].mxu0
      %3551 = vdwg.mxu0
      %3552 = vst.msk [vmem:[%s231] sm:$0xff] %vm293, %v3394
      %3553 = vst.msk [vmem:[%s231 + $0x8] sm:$0xff] %vm293, %v3399
      %3554 = vst.msk [vmem:[%s231 + $0x10] sm:$0xff] %vm293, %v3404
      %3555 = vst.msk [vmem:[%s231 + $0x18] sm:$0xff] %vm293, %v3409
      %3556 = vst.msk [vmem:[%s231 + $0x20] sm:$0xff] %vm293, %v3414
      %3557 = vst.msk [vmem:[%s231 + $0x28] sm:$0xff] %vm293, %v3419
      %3558 = vst.msk [vmem:[%s231 + $0x30] sm:$0xff] %vm293, %v3424
      %3559 = vst.msk [vmem:[%s231 + $0x38] sm:$0xff] %vm293, %v3429
      %3560 = vst.msk [vmem:[%s231 + $0x40] sm:$0xff] %vm293, %v3434
      %3561 = vst.msk [vmem:[%s231 + $0x48] sm:$0xff] %vm293, %v3439
      %3562 = vst.msk [vmem:[%s231 + $0x50] sm:$0xff] %vm293, %v3444
      %3563 = vst.msk [vmem:[%s231 + $0x58] sm:$0xff] %vm293, %v3449
      %3564 = vst.msk [vmem:[%s231 + $0x60] sm:$0xff] %vm293, %v3454
      %3565 = vst.msk [vmem:[%s231 + $0x68] sm:$0xff] %vm293, %v3459
      %3566 = vst.msk [vmem:[%s231 + $0x70] sm:$0xff] %vm293, %v3464
      %3567 = vst.msk [vmem:[%s231 + $0x78] sm:$0xff] %vm293, %v3469
      %3568 = vst.msk [vmem:[%s231 + $0x80] sm:$0xff] %vm293, %v3474
      %3569 = vst.msk [vmem:[%s231 + $0x88] sm:$0xff] %vm293, %v3479
      %3570 = vst.msk [vmem:[%s231 + $0x90] sm:$0xff] %vm293, %v3484
      %3571 = vst.msk [vmem:[%s231 + $0x98] sm:$0xff] %vm293, %v3489
      %3572 = vst.msk [vmem:[%s231 + $0xa0] sm:$0xff] %vm293, %v3494
      %3573 = vst.msk [vmem:[%s231 + $0xa8] sm:$0xff] %vm293, %v3499
      %3574 = vst.msk [vmem:[%s231 + $0xb0] sm:$0xff] %vm293, %v3504
      %3575 = vst.msk [vmem:[%s231 + $0xb8] sm:$0xff] %vm293, %v3509
      %3576 = vst.msk [vmem:[%s231 + $0xc0] sm:$0xff] %vm293, %v3514
      %3577 = vst.msk [vmem:[%s231 + $0xc8] sm:$0xff] %vm293, %v3519
      %3578 = vst.msk [vmem:[%s231 + $0xd0] sm:$0xff] %vm293, %v3524
      %3579 = vst.msk [vmem:[%s231 + $0xd8] sm:$0xff] %vm293, %v3529
      %3580 = vst.msk [vmem:[%s231 + $0xe0] sm:$0xff] %vm293, %v3534
      %3581 = vst.msk [vmem:[%s231 + $0xe8] sm:$0xff] %vm293, %v3539
      %3582 = vst.msk [vmem:[%s231 + $0xf0] sm:$0xff] %vm293, %v3544
      %3583 = vst.msk [vmem:[%s231 + $0xf8] sm:$0xff] %vm293, %v3549
      %s3584 = smul.u32 2, %s16
      %p3585 = scmp.lt.s32.totalorder %s3584, 3
      %s3586 = scalar_select %p3585, %s3584, 3
      %s3587 = smul.addr %s3586, 16
      %s3588 = smul.addr %s3587, 8
      %s3589 = scalar_lea.vmem %s5, %s3588
      // Predicated region
      $region41: #{tpu_custom_call.1} parent=39 // pred_check
        %p3590 = pneg %p144
      $region42: #{tpu_custom_call.1} parent=39 // pred_check_branch
        %3592 = sbr.rel (%p3590) target = $region44
      $region43: #{tpu_custom_call.1} parent=39 // pred_region
        %s3593 = smul.u32 2, %s16
      $region44: #{tpu_custom_call.1} parent=39 // pred_fallthru
        _
    $region40: #{tpu_custom_call.1} parent=5 // pred_fallthru
      _
    %p3594 = scmp.le.s32.totalorder 2, %s11
    // Predicated region
    $region45: #{tpu_custom_call.1} parent=5 // pred_check
      %p3595 = pneg %p3594
    $region46: #{tpu_custom_call.1} parent=5 // pred_check_branch
      %3597 = sbr.rel (%p3595) target = $region48
    $region47: #{tpu_custom_call.1} parent=5 // pred_region
      %s3598 = ssub.s32 %s11, 2
      // Predicated region
      $region49: #{tpu_custom_call.1} parent=47 // pred_check
        %p3599 = pneg %p150
      $region50: #{tpu_custom_call.1} parent=47 // pred_check_branch
        %3601 = sbr.rel (%p3599) target = $region52
      $region51: #{tpu_custom_call.1} parent=47 // pred_region
        %s3602 = smul.u32 2, %s17
        %p3603 = scmp.lt.s32.totalorder %s3602, 3
        %s3604 = scalar_select %p3603, %s3602, 3
        %s3605 = smul.addr %s3604, 16
        %s3606 = smul.addr %s3605, 8
        %s3607 = scalar_lea.vmem %s5, %s3606
      $region52: #{tpu_custom_call.1} parent=47 // pred_fallthru
        _
    $region48: #{tpu_custom_call.1} parent=5 // pred_fallthru
      _
  $region6: #{tpu_custom_call.1} parent=0 // loop_footer
    %s15 = sadd.s32 1, %s11
  $region7: #{tpu_custom_call.1} parent=0 // loop_footer_branch
    %10 = sbr.rel target = $region3
  $region8: #{tpu_custom_call.1} parent=0 // loop_exit
    _

</llo_original>
